<compile_context>
chip_gen: v7x
topology: tpu7x:2x2x1
jax: 0.10.0
libtpu: 0.0.40
codegen_flags: <defaults>
</compile_context>

<pallas_src>
import functools

import jax
import jax.numpy as jnp
from jax.experimental import pallas as pl
from jax.experimental.pallas import tpu as pltpu

_EPS = 1e-5


# ---------------------------------------------------------------------------
# In-kernel helpers
# ---------------------------------------------------------------------------
def _flat_tap(pad_ref, off, length, stride, cdim):
    """One (kh, kw) tap of a flat padded scratch as a (C, length) bf16 value."""
    if stride == 1:
        return pad_ref[:, off:off + length]
    hi = off + stride * (length - 1) + 1
    return jax.lax.slice(pad_ref[...], (0, off), (cdim, hi), (1, stride))


def _compact_rows(acc, Ho, Wo, Wp):
    """(C, Ho*Wp) valid-first-Wo-per-row -> (C, Ho*(Wo+2)) with 2 zero cols/row.

    Only used on the (slower) stride > 1 fallback path.
    """
    C = acc.shape[0]
    a = acc.reshape(C, Ho, Wp)[:, :, :Wo]
    a = jnp.concatenate([a, jnp.zeros((C, Ho, 2), acc.dtype)], axis=2)
    return a.reshape(C, Ho * (Wo + 2))


# ---------------------------------------------------------------------------
# Kernel A: fused (BN1 affine + ReLU + conv1)  and  skip conv, shared input
# ---------------------------------------------------------------------------
def _conv1_skip_kernel(x_ref, w1_ref, b1_ref, s1_ref, t1_ref, ws_ref, bs_ref,
                       m_ref, y1_ref, sk_ref, st_ref, hpad_ref, xpad_ref, *,
                       stride, H, W, Ho, Wo):
    Cin = x_ref.shape[1]
    Cout = w1_ref.shape[1]
    Wp = W + 2                       # padded flat row width (padding == 1)
    L = Ho * Wp                      # flat matmul width (junk cols included)

    x = x_ref[0]                     # (Cin, H, W) f32
    s1 = s1_ref[...]                 # (Cin, 1)
    t1 = t1_ref[...]

    # Zero-filled flat padded scratches; write each interior image row once.
    # Row r lands at flat offset (1+r)*Wp + 1, so the left/right zero columns
    # and the top/bottom zero rows all come from the single zero fill.
    hpad_ref[...] = jnp.zeros_like(hpad_ref)
    xpad_ref[...] = jnp.zeros_like(xpad_ref)
    for r in range(H):
        row = x[:, r, :]                                    # (Cin, W) f32
        hrow = jnp.maximum(row * s1 + t1, 0.0)              # BN1 affine + ReLU
        base = (1 + r) * Wp + 1
        hpad_ref[:, base:base + W] = hrow.astype(jnp.bfloat16)
        xpad_ref[:, base:base + W] = row.astype(jnp.bfloat16)

    # 9-tap accumulation; the two convolutions interleaved on the MXU.
    acc1 = jnp.zeros((Cout, L), jnp.float32)
    accs = jnp.zeros((Cout, L), jnp.float32)
    for kh in range(3):
        for kw in range(3):
            t = kh * 3 + kw
            off = kh * Wp + kw
            a_sl = _flat_tap(hpad_ref, off, L, stride, Cin)
            x_sl = _flat_tap(xpad_ref, off, L, stride, Cin)
            acc1 = acc1 + jnp.dot(w1_ref[t], a_sl,
                                  preferred_element_type=jnp.float32)
            accs = accs + jnp.dot(ws_ref[t], x_sl,
                                  preferred_element_type=jnp.float32)

    if stride == 1:
        # Natural layout already has rows of Wo + 2; zero the 2 junk columns.
        y1 = (acc1 + b1_ref[...]) * m_ref[...]
        sk = (accs + bs_ref[...]) * m_ref[...]
    else:
        # General-stride fallback: compact Wp-wide rows to (Wo + 2)-wide rows.
        y1 = _compact_rows(acc1 + b1_ref[...], Ho, Wo, Wp)
        sk = _compact_rows(accs + bs_ref[...], Ho, Wo, Wp)

    # Per-sample per-channel moments for BN2 / BN_skip (junk columns are 0, so
    # sums over the flat layout equal sums over the valid Ho*Wo pixels).
    st = jnp.concatenate(
        [jnp.sum(y1, axis=1, keepdims=True),
         jnp.sum(y1 * y1, axis=1, keepdims=True),
         jnp.sum(sk, axis=1, keepdims=True),
         jnp.sum(sk * sk, axis=1, keepdims=True)], axis=1)   # (Cout, 4)

    y1_ref[...] = y1.astype(jnp.bfloat16).reshape(y1_ref.shape)
    sk_ref[...] = sk.astype(jnp.bfloat16).reshape(sk_ref.shape)
    st_ref[...] = st.reshape(st_ref.shape)


# ---------------------------------------------------------------------------
# Kernel B: fused (BN2 affine + ReLU + conv2 + residual add + skip-BN affine)
# ---------------------------------------------------------------------------
def _conv2_residual_kernel(y1_ref, sk_ref, w2_ref, b2_ref, s2_ref, t2_ref,
                           ss_ref, ts_ref, m_ref, o_ref, pscr_ref, *, Ho, Wo):
    Cout = y1_ref.shape[1]
    Wr = Wo + 2
    L = Ho * Wr

    y1 = y1_ref[0].astype(jnp.float32)                       # (Cout, L)
    # BN2 affine + ReLU; the mask re-zeroes the 2 pad columns of every flat
    # row (ReLU of the shift would otherwise leak into the conv zero padding).
    h = jnp.maximum(y1 * s2_ref[...] + t2_ref[...], 0.0) * m_ref[...]

    # The masked flat layout of h is exactly the interior of conv2's
    # zero-padded flat input shifted by Wr + 1: one zero fill + one slice store.
    pscr_ref[...] = jnp.zeros_like(pscr_ref)
    pscr_ref[:, Wr + 1:Wr + 1 + L] = h.astype(jnp.bfloat16)

    acc = jnp.zeros((Cout, L), jnp.float32)
    for kh in range(3):
        for kw in range(3):
            off = kh * Wr + kw
            acc = acc + jnp.dot(w2_ref[kh * 3 + kw], pscr_ref[:, off:off + L],
                                preferred_element_type=jnp.float32)

    # Fused epilogue: conv2 bias + residual add + skip-branch BatchNorm affine.
    res = (acc + b2_ref[...]
           + sk_ref[0].astype(jnp.float32) * ss_ref[...] + ts_ref[...])
    o_ref[...] = res.reshape(o_ref.shape)


# ---------------------------------------------------------------------------
# Host-side glue
# ---------------------------------------------------------------------------
def _bn_fold_from_moments(sum_, sumsq, count, gamma, beta, eps=_EPS):
    mean = sum_ / count
    var = sumsq / count - jnp.square(mean)
    scale = gamma * jax.lax.rsqrt(var + eps)
    shift = beta - mean * scale
    return scale, shift


def _ceil_to(a, m):
    return -(-a // m) * m


def _tile_bytes(shape, itemsize):
    s = tuple(int(d) for d in shape)
    if len(s) < 2:
        s = (1,) * (2 - len(s)) + s
    lead = 1
    for d in s[:-2]:
        lead *= d
    return lead * _ceil_to(s[-2], 8) * _ceil_to(s[-1], 128) * itemsize


def _vmem_limit(blocks, scratch):
    """Scoped-VMEM limit from per-step block sizes (double-buffered) + scratch."""
    est = 2 * sum(_tile_bytes(s, i) for s, i in blocks)
    est += sum(_tile_bytes(s, i) for s, i in scratch)
    est = 2 * est + (4 << 20)                  # headroom for temporaries/accs
    return int(min(max(est, 32 << 20), 64 << 20))


def residual_conv_forward(x_nchw, params, *, stride, padding):
    x = x_nchw.astype(jnp.float32)             # NCHW is the kernel-native layout
    N, Cin, H, W = x.shape
    Cout = params["w1"].shape[-1]

    # The residual add only shape-checks for padding == 1 with a 3x3 kernel
    # (as used by the reference network).
    assert padding == 1, "ResidualConv requires padding == 1"

    Ho = (H + 2 * padding - 3) // stride + 1
    Wo = (W + 2 * padding - 3) // stride + 1
    Hos = (H - 1) // stride + 1
    Wos = (W - 1) // stride + 1
    assert (Ho, Wo) == (Hos, Wos), "residual add requires matching shapes"

    Wp = W + 2                      # padded flat row width (kernel A)
    Wr = Wo + 2                     # stored flat row width (Wo valid + 2 zeros)
    Lr = Ho * Wr
    Lpad_a = (H + 2 + stride) * Wp  # flat padded scratch length, kernel A
    Lpad_b = (Ho + 3) * Wr          # flat padded scratch length, kernel B

    # BN1 (training-mode batch stats): one fused XLA pass over x, folded into a
    # per-input-channel affine applied inside kernel A (no extra x copies).
    mean1 = jnp.mean(x, axis=(0, 2, 3))
    sq1 = jnp.mean(jnp.square(x), axis=(0, 2, 3))
    s1 = params["bn1_gamma"] * jax.lax.rsqrt(sq1 - jnp.square(mean1) + _EPS)
    t1 = params["bn1_beta"] - mean1 * s1

    # Weights as 9 taps of (Cout, Cin) for the per-tap matmuls (bf16 operands).
    w1 = params["w1"].reshape(9, Cin, Cout).transpose(0, 2, 1).astype(jnp.bfloat16)
    ws = params["ws"].reshape(9, Cin, Cout).transpose(0, 2, 1).astype(jnp.bfloat16)
    w2 = params["w2"].reshape(9, Cout, Cout).transpose(0, 2, 1).astype(jnp.bfloat16)

    # Lane mask zeroing the 2 junk columns of every flat output row.
    mask = (jnp.arange(Lr) % Wr < Wo).astype(jnp.float32).reshape(1, Lr)

    b1 = params["b1"].reshape(Cout, 1)
    bs = params["bs"].reshape(Cout, 1)
    s1k = s1.reshape(Cin, 1)
    t1k = t1.reshape(Cin, 1)

    kernel_a = functools.partial(_conv1_skip_kernel, stride=stride,
                                 H=H, W=W, Ho=Ho, Wo=Wo)
    blocks_a = [((1, Cin, H, W), 4),
                ((9, Cout, Cin), 2), ((Cout, 1), 4),
                ((Cin, 1), 4), ((Cin, 1), 4),
                ((9, Cout, Cin), 2), ((Cout, 1), 4),
                ((1, Lr), 4),
                ((1, Cout, Lr), 2), ((1, Cout, Lr), 2), ((1, Cout, 4), 4)]
    scratch_a = [((Cin, Lpad_a), 2), ((Cin, Lpad_a), 2)]

    y1, sk, stats = pl.pallas_call(
        kernel_a,
        out_shape=(jax.ShapeDtypeStruct((N, Cout, Lr), jnp.bfloat16),
                   jax.ShapeDtypeStruct((N, Cout, Lr), jnp.bfloat16),
                   jax.ShapeDtypeStruct((N, Cout, 4), jnp.float32)),
        grid=(N,),
        in_specs=[
            pl.BlockSpec((1, Cin, H, W), lambda n: (n, 0, 0, 0)),
            pl.BlockSpec((9, Cout, Cin), lambda n: (0, 0, 0)),
            pl.BlockSpec((Cout, 1), lambda n: (0, 0)),
            pl.BlockSpec((Cin, 1), lambda n: (0, 0)),
            pl.BlockSpec((Cin, 1), lambda n: (0, 0)),
            pl.BlockSpec((9, Cout, Cin), lambda n: (0, 0, 0)),
            pl.BlockSpec((Cout, 1), lambda n: (0, 0)),
            pl.BlockSpec((1, Lr), lambda n: (0, 0)),
        ],
        out_specs=(
            pl.BlockSpec((1, Cout, Lr), lambda n: (n, 0, 0)),
            pl.BlockSpec((1, Cout, Lr), lambda n: (n, 0, 0)),
            pl.BlockSpec((1, Cout, 4), lambda n: (n, 0, 0)),
        ),
        scratch_shapes=[pltpu.VMEM((Cin, Lpad_a), jnp.bfloat16),
                        pltpu.VMEM((Cin, Lpad_a), jnp.bfloat16)],
        compiler_params=pltpu.CompilerParams(
            dimension_semantics=("parallel",),
            vmem_limit_bytes=_vmem_limit(blocks_a, scratch_a)),
    )(x, w1, b1, s1k, t1k, ws, bs, mask)

    # Fold BN2 / BN_skip from the kernel-emitted per-channel moments (tiny).
    tot = jnp.sum(stats, axis=0)                               # (Cout, 4)
    cnt = float(N * Ho * Wo)
    s2, t2 = _bn_fold_from_moments(tot[:, 0], tot[:, 1], cnt,
                                   params["bn2_gamma"], params["bn2_beta"])
    ss, ts = _bn_fold_from_moments(tot[:, 2], tot[:, 3], cnt,
                                   params["bns_gamma"], params["bns_beta"])

    kernel_b = functools.partial(_conv2_residual_kernel, Ho=Ho, Wo=Wo)
    blocks_b = [((1, Cout, Lr), 2), ((1, Cout, Lr), 2),
                ((9, Cout, Cout), 2)] + [((Cout, 1), 4)] * 5 + \
               [((1, Lr), 4), ((1, Cout, Lr), 4)]
    scratch_b = [((Cout, Lpad_b), 2)]

    out = pl.pallas_call(
        kernel_b,
        out_shape=jax.ShapeDtypeStruct((N, Cout, Lr), jnp.float32),
        grid=(N,),
        in_specs=[
            pl.BlockSpec((1, Cout, Lr), lambda n: (n, 0, 0)),
            pl.BlockSpec((1, Cout, Lr), lambda n: (n, 0, 0)),
            pl.BlockSpec((9, Cout, Cout), lambda n: (0, 0, 0)),
            pl.BlockSpec((Cout, 1), lambda n: (0, 0)),
            pl.BlockSpec((Cout, 1), lambda n: (0, 0)),
            pl.BlockSpec((Cout, 1), lambda n: (0, 0)),
            pl.BlockSpec((Cout, 1), lambda n: (0, 0)),
            pl.BlockSpec((Cout, 1), lambda n: (0, 0)),
            pl.BlockSpec((1, Lr), lambda n: (0, 0)),
        ],
        out_specs=pl.BlockSpec((1, Cout, Lr), lambda n: (n, 0, 0)),
        scratch_shapes=[pltpu.VMEM((Cout, Lpad_b), jnp.bfloat16)],
        compiler_params=pltpu.CompilerParams(
            dimension_semantics=("parallel",),
            vmem_limit_bytes=_vmem_limit(blocks_b, scratch_b)),
    )(y1, sk, w2, params["b2"].reshape(Cout, 1),
      s2.reshape(Cout, 1), t2.reshape(Cout, 1),
      ss.reshape(Cout, 1), ts.reshape(Cout, 1), mask)

    # Strip the 2 zero columns per flat row: (N, Cout, Ho*Wr) -> NCHW output.
    return out.reshape(N, Cout, Ho, Wr)[:, :, :, :Wo]


# ---------------------------------------------------------------------------
# Deterministic parameter init (shapes per the PyTorch __init__)
# ---------------------------------------------------------------------------
def init_params(key, input_dim, output_dim):
    ks = jax.random.split(key, 12)

    def conv_w(k, cin, cout):
        bound = 1.0 / (cin * 9) ** 0.5
        return jax.random.uniform(k, (3, 3, cin, cout), jnp.float32,
                                  -bound, bound)

    def conv_b(k, cin, cout):
        bound = 1.0 / (cin * 9) ** 0.5
        return jax.random.uniform(k, (cout,), jnp.float32, -bound, bound)

    return {
        "bn1_gamma": 1.0 + 0.1 * jax.random.normal(ks[0], (input_dim,), jnp.float32),
        "bn1_beta": 0.1 * jax.random.normal(ks[1], (input_dim,), jnp.float32),
        "w1": conv_w(ks[2], input_dim, output_dim),
        "b1": conv_b(ks[3], input_dim, output_dim),
        "bn2_gamma": 1.0 + 0.1 * jax.random.normal(ks[4], (output_dim,), jnp.float32),
        "bn2_beta": 0.1 * jax.random.normal(ks[5], (output_dim,), jnp.float32),
        "w2": conv_w(ks[6], output_dim, output_dim),
        "b2": conv_b(ks[7], output_dim, output_dim),
        "ws": conv_w(ks[8], input_dim, output_dim),
        "bs": conv_b(ks[9], input_dim, output_dim),
        "bns_gamma": 1.0 + 0.1 * jax.random.normal(ks[10], (output_dim,), jnp.float32),
        "bns_beta": 0.1 * jax.random.normal(ks[11], (output_dim,), jnp.float32),
    }


# ---------------------------------------------------------------------------
# Pure-JAX reference (f32, HIGHEST precision) for the correctness check
# ---------------------------------------------------------------------------
def reference_forward(x_nchw, params, *, stride, padding, eps=_EPS):
    x = jnp.transpose(x_nchw, (0, 2, 3, 1)).astype(jnp.float32)

    def bn(h, g, b):
        m = jnp.mean(h, axis=(0, 1, 2))
        v = jnp.mean(jnp.square(h), axis=(0, 1, 2)) - jnp.square(m)
        return (h - m) * jax.lax.rsqrt(v + eps) * g + b

    def conv(h, w, b, s, p):
        return jax.lax.conv_general_dilated(
            h, w, window_strides=(s, s), padding=[(p, p), (p, p)],
            dimension_numbers=("NHWC", "HWIO", "NHWC"),
            precision=jax.lax.Precision.HIGHEST) + b

    blk = conv(jax.nn.relu(bn(x, params["bn1_gamma"], params["bn1_beta"])),
               params["w1"], params["b1"], stride, padding)
    blk = conv(jax.nn.relu(bn(blk, params["bn2_gamma"], params["bn2_beta"])),
               params["w2"], params["b2"], 1, 1)
    sk = bn(conv(x, params["ws"], params["bs"], stride, 1),
            params["bns_gamma"], params["bns_beta"])
    return jnp.transpose(blk + sk, (0, 3, 1, 2))


if __name__ == "__main__":
    key = jax.random.PRNGKey(0)
    kx, kp = jax.random.split(key)

    N, Cin, H, W = 2, 4, 16, 16        # input_dim = 4
    Cout = 8                           # output_dim = 8
    stride, padding = 1, 1

    x = jax.random.normal(kx, (N, Cin, H, W), jnp.float32)
    params = init_params(kp, Cin, Cout)

    out = residual_conv_forward(x, params, stride=stride, padding=padding)
    out = jax.block_until_ready(out)
    assert out.shape == (N, Cout, H, W), out.shape

    ref = reference_forward(x, params, stride=stride, padding=padding)
    max_err = float(jnp.max(jnp.abs(out - ref)))
    mean_err = float(jnp.mean(jnp.abs(out - ref)))
    ref_max = float(jnp.max(jnp.abs(ref)))
    # bf16-operand MXU math (two stacked convs, bf16 inter-kernel activations,
    # batch-norm) vs an f32 HIGHEST reference: proportionally loose but still
    # bug-catching bounds.
    tol = 5e-2 * max(1.0, ref_max)
    if max_err > tol or mean_err > 2e-2:
        raise AssertionError(
            f"mismatch vs reference: max abs err {max_err}, mean {mean_err}")

    print("KERNEL_OK")
</pallas_src>

<mosaic_0001>
module attributes {stable_mosaic.version = 11 : i64} {
  func.func @_conv1_skip_kernel(%arg0: i32, %arg1: memref<1x4x16x16xf32, #tpu.memory_space<vmem>>, %arg2: memref<9x8x4xbf16, #tpu.memory_space<vmem>>, %arg3: memref<8x1xf32, #tpu.memory_space<vmem>>, %arg4: memref<4x1xf32, #tpu.memory_space<vmem>>, %arg5: memref<4x1xf32, #tpu.memory_space<vmem>>, %arg6: memref<9x8x4xbf16, #tpu.memory_space<vmem>>, %arg7: memref<8x1xf32, #tpu.memory_space<vmem>>, %arg8: memref<1x288xf32, #tpu.memory_space<vmem>>, %arg9: memref<1x8x288xbf16, #tpu.memory_space<vmem>>, %arg10: memref<1x8x288xbf16, #tpu.memory_space<vmem>>, %arg11: memref<1x8x4xf32, #tpu.memory_space<vmem>>, %arg12: memref<4x342xbf16, #tpu.memory_space<vmem>>, %arg13: memref<4x342xbf16, #tpu.memory_space<vmem>>) attributes {dimension_semantics = [#tpu.dimension_semantics<parallel>], iteration_bounds = array<i64: 2>, scalar_prefetch = 0 : i64, scratch_operands = 2 : i64, tpu.core_type = #tpu.core_type<tc>, window_params = [{transform_indices = @transform_0, window_bounds = array<i64: 1, 4, 16, 16>}, {pipeline_mode = #tpu.pipeline_mode<synchronous>, transform_indices = @transform_1, window_bounds = array<i64: 9, 8, 4>}, {pipeline_mode = #tpu.pipeline_mode<synchronous>, transform_indices = @transform_2, window_bounds = array<i64: 8, 1>}, {pipeline_mode = #tpu.pipeline_mode<synchronous>, transform_indices = @transform_3, window_bounds = array<i64: 4, 1>}, {pipeline_mode = #tpu.pipeline_mode<synchronous>, transform_indices = @transform_4, window_bounds = array<i64: 4, 1>}, {pipeline_mode = #tpu.pipeline_mode<synchronous>, transform_indices = @transform_5, window_bounds = array<i64: 9, 8, 4>}, {pipeline_mode = #tpu.pipeline_mode<synchronous>, transform_indices = @transform_6, window_bounds = array<i64: 8, 1>}, {pipeline_mode = #tpu.pipeline_mode<synchronous>, transform_indices = @transform_7, window_bounds = array<i64: 1, 288>}, {transform_indices = @transform_8, window_bounds = array<i64: 1, 8, 288>}, {transform_indices = @transform_9, window_bounds = array<i64: 1, 8, 288>}, {transform_indices = @transform_10, window_bounds = array<i64: 1, 8, 4>}]} {
    %c0 = arith.constant 0 : index
    %c0_0 = arith.constant 0 : index
    %c0_1 = arith.constant 0 : index
    %c0_2 = arith.constant 0 : index
    %0 = vector.load %arg1[%c0, %c0_0, %c0_1, %c0_2] : memref<1x4x16x16xf32, #tpu.memory_space<vmem>>, vector<1x4x16x16xf32>
    %1 = vector.shape_cast %0 : vector<1x4x16x16xf32> to vector<4x16x16xf32>
    %c0_3 = arith.constant 0 : index
    %c0_4 = arith.constant 0 : index
    %2 = vector.load %arg4[%c0_3, %c0_4] : memref<4x1xf32, #tpu.memory_space<vmem>>, vector<4x1xf32>
    %c0_5 = arith.constant 0 : index
    %c0_6 = arith.constant 0 : index
    %3 = vector.load %arg5[%c0_5, %c0_6] : memref<4x1xf32, #tpu.memory_space<vmem>>, vector<4x1xf32>
    %cst = arith.constant 0.000000e+00 : bf16
    %4 = vector.broadcast %cst : bf16 to vector<4x342xbf16>
    %c0_7 = arith.constant 0 : index
    %c0_8 = arith.constant 0 : index
    %5 = vector.load %arg12[%c0_7, %c0_8] : memref<4x342xbf16, #tpu.memory_space<vmem>>, vector<4x342xbf16>
    tpu.vector_store %arg12[%c0_7, %c0_8], %4 {strides = array<i32>} : memref<4x342xbf16, #tpu.memory_space<vmem>>, vector<4x342xbf16>,
    %cst_9 = arith.constant 0.000000e+00 : bf16
    %6 = vector.broadcast %cst_9 : bf16 to vector<4x342xbf16>
    %c0_10 = arith.constant 0 : index
    %c0_11 = arith.constant 0 : index
    %7 = vector.load %arg13[%c0_10, %c0_11] : memref<4x342xbf16, #tpu.memory_space<vmem>>, vector<4x342xbf16>
    tpu.vector_store %arg13[%c0_10, %c0_11], %6 {strides = array<i32>} : memref<4x342xbf16, #tpu.memory_space<vmem>>, vector<4x342xbf16>,
    %8 = vector.extract_strided_slice %1 {offsets = [0, 0, 0], sizes = [4, 1, 16], strides = [1, 1, 1]} : vector<4x16x16xf32> to vector<4x1x16xf32>
    %9 = vector.shape_cast %8 : vector<4x1x16xf32> to vector<4x16xf32>
    %10 = vector.broadcast %2 : vector<4x1xf32> to vector<4x16xf32>
    %11 = arith.mulf %9, %10 : vector<4x16xf32>
    %12 = vector.broadcast %3 : vector<4x1xf32> to vector<4x16xf32>
    %13 = arith.addf %11, %12 : vector<4x16xf32>
    %cst_12 = arith.constant 0.000000e+00 : f32
    %14 = vector.broadcast %cst_12 : f32 to vector<4x16xf32>
    %15 = arith.maximumf %13, %14 : vector<4x16xf32>
    %16 = arith.truncf %15 : vector<4x16xf32> to vector<4x16xbf16>
    %c0_13 = arith.constant 0 : index
    %c19 = arith.constant 19 : index
    %17 = vector.load %arg12[%c0_13, %c19] : memref<4x342xbf16, #tpu.memory_space<vmem>>, vector<4x16xbf16>
    tpu.vector_store %arg12[%c0_13, %c19], %16 {strides = array<i32>} : memref<4x342xbf16, #tpu.memory_space<vmem>>, vector<4x16xbf16>,
    %18 = arith.truncf %9 : vector<4x16xf32> to vector<4x16xbf16>
    %c0_14 = arith.constant 0 : index
    %c19_15 = arith.constant 19 : index
    %19 = vector.load %arg13[%c0_14, %c19_15] : memref<4x342xbf16, #tpu.memory_space<vmem>>, vector<4x16xbf16>
    tpu.vector_store %arg13[%c0_14, %c19_15], %18 {strides = array<i32>} : memref<4x342xbf16, #tpu.memory_space<vmem>>, vector<4x16xbf16>,
    %20 = vector.extract_strided_slice %1 {offsets = [0, 1, 0], sizes = [4, 1, 16], strides = [1, 1, 1]} : vector<4x16x16xf32> to vector<4x1x16xf32>
    %21 = vector.shape_cast %20 : vector<4x1x16xf32> to vector<4x16xf32>
    %22 = vector.broadcast %2 : vector<4x1xf32> to vector<4x16xf32>
    %23 = arith.mulf %21, %22 : vector<4x16xf32>
    %24 = vector.broadcast %3 : vector<4x1xf32> to vector<4x16xf32>
    %25 = arith.addf %23, %24 : vector<4x16xf32>
    %cst_16 = arith.constant 0.000000e+00 : f32
    %26 = vector.broadcast %cst_16 : f32 to vector<4x16xf32>
    %27 = arith.maximumf %25, %26 : vector<4x16xf32>
    %28 = arith.truncf %27 : vector<4x16xf32> to vector<4x16xbf16>
    %c0_17 = arith.constant 0 : index
    %c37 = arith.constant 37 : index
    %29 = vector.load %arg12[%c0_17, %c37] : memref<4x342xbf16, #tpu.memory_space<vmem>>, vector<4x16xbf16>
    tpu.vector_store %arg12[%c0_17, %c37], %28 {strides = array<i32>} : memref<4x342xbf16, #tpu.memory_space<vmem>>, vector<4x16xbf16>,
    %30 = arith.truncf %21 : vector<4x16xf32> to vector<4x16xbf16>
    %c0_18 = arith.constant 0 : index
    %c37_19 = arith.constant 37 : index
    %31 = vector.load %arg13[%c0_18, %c37_19] : memref<4x342xbf16, #tpu.memory_space<vmem>>, vector<4x16xbf16>
    tpu.vector_store %arg13[%c0_18, %c37_19], %30 {strides = array<i32>} : memref<4x342xbf16, #tpu.memory_space<vmem>>, vector<4x16xbf16>,
    %32 = vector.extract_strided_slice %1 {offsets = [0, 2, 0], sizes = [4, 1, 16], strides = [1, 1, 1]} : vector<4x16x16xf32> to vector<4x1x16xf32>
    %33 = vector.shape_cast %32 : vector<4x1x16xf32> to vector<4x16xf32>
    %34 = vector.broadcast %2 : vector<4x1xf32> to vector<4x16xf32>
    %35 = arith.mulf %33, %34 : vector<4x16xf32>
    %36 = vector.broadcast %3 : vector<4x1xf32> to vector<4x16xf32>
    %37 = arith.addf %35, %36 : vector<4x16xf32>
    %cst_20 = arith.constant 0.000000e+00 : f32
    %38 = vector.broadcast %cst_20 : f32 to vector<4x16xf32>
    %39 = arith.maximumf %37, %38 : vector<4x16xf32>
    %40 = arith.truncf %39 : vector<4x16xf32> to vector<4x16xbf16>
    %c0_21 = arith.constant 0 : index
    %c55 = arith.constant 55 : index
    %41 = vector.load %arg12[%c0_21, %c55] : memref<4x342xbf16, #tpu.memory_space<vmem>>, vector<4x16xbf16>
    tpu.vector_store %arg12[%c0_21, %c55], %40 {strides = array<i32>} : memref<4x342xbf16, #tpu.memory_space<vmem>>, vector<4x16xbf16>,
    %42 = arith.truncf %33 : vector<4x16xf32> to vector<4x16xbf16>
    %c0_22 = arith.constant 0 : index
    %c55_23 = arith.constant 55 : index
    %43 = vector.load %arg13[%c0_22, %c55_23] : memref<4x342xbf16, #tpu.memory_space<vmem>>, vector<4x16xbf16>
    tpu.vector_store %arg13[%c0_22, %c55_23], %42 {strides = array<i32>} : memref<4x342xbf16, #tpu.memory_space<vmem>>, vector<4x16xbf16>,
    %44 = vector.extract_strided_slice %1 {offsets = [0, 3, 0], sizes = [4, 1, 16], strides = [1, 1, 1]} : vector<4x16x16xf32> to vector<4x1x16xf32>
    %45 = vector.shape_cast %44 : vector<4x1x16xf32> to vector<4x16xf32>
    %46 = vector.broadcast %2 : vector<4x1xf32> to vector<4x16xf32>
    %47 = arith.mulf %45, %46 : vector<4x16xf32>
    %48 = vector.broadcast %3 : vector<4x1xf32> to vector<4x16xf32>
    %49 = arith.addf %47, %48 : vector<4x16xf32>
    %cst_24 = arith.constant 0.000000e+00 : f32
    %50 = vector.broadcast %cst_24 : f32 to vector<4x16xf32>
    %51 = arith.maximumf %49, %50 : vector<4x16xf32>
    %52 = arith.truncf %51 : vector<4x16xf32> to vector<4x16xbf16>
    %c0_25 = arith.constant 0 : index
    %c73 = arith.constant 73 : index
    %53 = vector.load %arg12[%c0_25, %c73] : memref<4x342xbf16, #tpu.memory_space<vmem>>, vector<4x16xbf16>
    tpu.vector_store %arg12[%c0_25, %c73], %52 {strides = array<i32>} : memref<4x342xbf16, #tpu.memory_space<vmem>>, vector<4x16xbf16>,
    %54 = arith.truncf %45 : vector<4x16xf32> to vector<4x16xbf16>
    %c0_26 = arith.constant 0 : index
    %c73_27 = arith.constant 73 : index
    %55 = vector.load %arg13[%c0_26, %c73_27] : memref<4x342xbf16, #tpu.memory_space<vmem>>, vector<4x16xbf16>
    tpu.vector_store %arg13[%c0_26, %c73_27], %54 {strides = array<i32>} : memref<4x342xbf16, #tpu.memory_space<vmem>>, vector<4x16xbf16>,
    %56 = vector.extract_strided_slice %1 {offsets = [0, 4, 0], sizes = [4, 1, 16], strides = [1, 1, 1]} : vector<4x16x16xf32> to vector<4x1x16xf32>
    %57 = vector.shape_cast %56 : vector<4x1x16xf32> to vector<4x16xf32>
    %58 = vector.broadcast %2 : vector<4x1xf32> to vector<4x16xf32>
    %59 = arith.mulf %57, %58 : vector<4x16xf32>
    %60 = vector.broadcast %3 : vector<4x1xf32> to vector<4x16xf32>
    %61 = arith.addf %59, %60 : vector<4x16xf32>
    %cst_28 = arith.constant 0.000000e+00 : f32
    %62 = vector.broadcast %cst_28 : f32 to vector<4x16xf32>
    %63 = arith.maximumf %61, %62 : vector<4x16xf32>
    %64 = arith.truncf %63 : vector<4x16xf32> to vector<4x16xbf16>
    %c0_29 = arith.constant 0 : index
    %c91 = arith.constant 91 : index
    %65 = vector.load %arg12[%c0_29, %c91] : memref<4x342xbf16, #tpu.memory_space<vmem>>, vector<4x16xbf16>
    tpu.vector_store %arg12[%c0_29, %c91], %64 {strides = array<i32>} : memref<4x342xbf16, #tpu.memory_space<vmem>>, vector<4x16xbf16>,
    %66 = arith.truncf %57 : vector<4x16xf32> to vector<4x16xbf16>
    %c0_30 = arith.constant 0 : index
    %c91_31 = arith.constant 91 : index
    %67 = vector.load %arg13[%c0_30, %c91_31] : memref<4x342xbf16, #tpu.memory_space<vmem>>, vector<4x16xbf16>
    tpu.vector_store %arg13[%c0_30, %c91_31], %66 {strides = array<i32>} : memref<4x342xbf16, #tpu.memory_space<vmem>>, vector<4x16xbf16>,
    %68 = vector.extract_strided_slice %1 {offsets = [0, 5, 0], sizes = [4, 1, 16], strides = [1, 1, 1]} : vector<4x16x16xf32> to vector<4x1x16xf32>
    %69 = vector.shape_cast %68 : vector<4x1x16xf32> to vector<4x16xf32>
    %70 = vector.broadcast %2 : vector<4x1xf32> to vector<4x16xf32>
    %71 = arith.mulf %69, %70 : vector<4x16xf32>
    %72 = vector.broadcast %3 : vector<4x1xf32> to vector<4x16xf32>
    %73 = arith.addf %71, %72 : vector<4x16xf32>
    %cst_32 = arith.constant 0.000000e+00 : f32
    %74 = vector.broadcast %cst_32 : f32 to vector<4x16xf32>
    %75 = arith.maximumf %73, %74 : vector<4x16xf32>
    %76 = arith.truncf %75 : vector<4x16xf32> to vector<4x16xbf16>
    %c0_33 = arith.constant 0 : index
    %c109 = arith.constant 109 : index
    %77 = vector.load %arg12[%c0_33, %c109] : memref<4x342xbf16, #tpu.memory_space<vmem>>, vector<4x16xbf16>
    tpu.vector_store %arg12[%c0_33, %c109], %76 {strides = array<i32>} : memref<4x342xbf16, #tpu.memory_space<vmem>>, vector<4x16xbf16>,
    %78 = arith.truncf %69 : vector<4x16xf32> to vector<4x16xbf16>
    %c0_34 = arith.constant 0 : index
    %c109_35 = arith.constant 109 : index
    %79 = vector.load %arg13[%c0_34, %c109_35] : memref<4x342xbf16, #tpu.memory_space<vmem>>, vector<4x16xbf16>
    tpu.vector_store %arg13[%c0_34, %c109_35], %78 {strides = array<i32>} : memref<4x342xbf16, #tpu.memory_space<vmem>>, vector<4x16xbf16>,
    %80 = vector.extract_strided_slice %1 {offsets = [0, 6, 0], sizes = [4, 1, 16], strides = [1, 1, 1]} : vector<4x16x16xf32> to vector<4x1x16xf32>
    %81 = vector.shape_cast %80 : vector<4x1x16xf32> to vector<4x16xf32>
    %82 = vector.broadcast %2 : vector<4x1xf32> to vector<4x16xf32>
    %83 = arith.mulf %81, %82 : vector<4x16xf32>
    %84 = vector.broadcast %3 : vector<4x1xf32> to vector<4x16xf32>
    %85 = arith.addf %83, %84 : vector<4x16xf32>
    %cst_36 = arith.constant 0.000000e+00 : f32
    %86 = vector.broadcast %cst_36 : f32 to vector<4x16xf32>
    %87 = arith.maximumf %85, %86 : vector<4x16xf32>
    %88 = arith.truncf %87 : vector<4x16xf32> to vector<4x16xbf16>
    %c0_37 = arith.constant 0 : index
    %c127 = arith.constant 127 : index
    %89 = vector.load %arg12[%c0_37, %c127] : memref<4x342xbf16, #tpu.memory_space<vmem>>, vector<4x16xbf16>
    tpu.vector_store %arg12[%c0_37, %c127], %88 {strides = array<i32>} : memref<4x342xbf16, #tpu.memory_space<vmem>>, vector<4x16xbf16>,
    %90 = arith.truncf %81 : vector<4x16xf32> to vector<4x16xbf16>
    %c0_38 = arith.constant 0 : index
    %c127_39 = arith.constant 127 : index
    %91 = vector.load %arg13[%c0_38, %c127_39] : memref<4x342xbf16, #tpu.memory_space<vmem>>, vector<4x16xbf16>
    tpu.vector_store %arg13[%c0_38, %c127_39], %90 {strides = array<i32>} : memref<4x342xbf16, #tpu.memory_space<vmem>>, vector<4x16xbf16>,
    %92 = vector.extract_strided_slice %1 {offsets = [0, 7, 0], sizes = [4, 1, 16], strides = [1, 1, 1]} : vector<4x16x16xf32> to vector<4x1x16xf32>
    %93 = vector.shape_cast %92 : vector<4x1x16xf32> to vector<4x16xf32>
    %94 = vector.broadcast %2 : vector<4x1xf32> to vector<4x16xf32>
    %95 = arith.mulf %93, %94 : vector<4x16xf32>
    %96 = vector.broadcast %3 : vector<4x1xf32> to vector<4x16xf32>
    %97 = arith.addf %95, %96 : vector<4x16xf32>
    %cst_40 = arith.constant 0.000000e+00 : f32
    %98 = vector.broadcast %cst_40 : f32 to vector<4x16xf32>
    %99 = arith.maximumf %97, %98 : vector<4x16xf32>
    %100 = arith.truncf %99 : vector<4x16xf32> to vector<4x16xbf16>
    %c0_41 = arith.constant 0 : index
    %c145 = arith.constant 145 : index
    %101 = vector.load %arg12[%c0_41, %c145] : memref<4x342xbf16, #tpu.memory_space<vmem>>, vector<4x16xbf16>
    tpu.vector_store %arg12[%c0_41, %c145], %100 {strides = array<i32>} : memref<4x342xbf16, #tpu.memory_space<vmem>>, vector<4x16xbf16>,
    %102 = arith.truncf %93 : vector<4x16xf32> to vector<4x16xbf16>
    %c0_42 = arith.constant 0 : index
    %c145_43 = arith.constant 145 : index
    %103 = vector.load %arg13[%c0_42, %c145_43] : memref<4x342xbf16, #tpu.memory_space<vmem>>, vector<4x16xbf16>
    tpu.vector_store %arg13[%c0_42, %c145_43], %102 {strides = array<i32>} : memref<4x342xbf16, #tpu.memory_space<vmem>>, vector<4x16xbf16>,
    %104 = vector.extract_strided_slice %1 {offsets = [0, 8, 0], sizes = [4, 1, 16], strides = [1, 1, 1]} : vector<4x16x16xf32> to vector<4x1x16xf32>
    %105 = vector.shape_cast %104 : vector<4x1x16xf32> to vector<4x16xf32>
    %106 = vector.broadcast %2 : vector<4x1xf32> to vector<4x16xf32>
    %107 = arith.mulf %105, %106 : vector<4x16xf32>
    %108 = vector.broadcast %3 : vector<4x1xf32> to vector<4x16xf32>
    %109 = arith.addf %107, %108 : vector<4x16xf32>
    %cst_44 = arith.constant 0.000000e+00 : f32
    %110 = vector.broadcast %cst_44 : f32 to vector<4x16xf32>
    %111 = arith.maximumf %109, %110 : vector<4x16xf32>
    %112 = arith.truncf %111 : vector<4x16xf32> to vector<4x16xbf16>
    %c0_45 = arith.constant 0 : index
    %c163 = arith.constant 163 : index
    %113 = vector.load %arg12[%c0_45, %c163] : memref<4x342xbf16, #tpu.memory_space<vmem>>, vector<4x16xbf16>
    tpu.vector_store %arg12[%c0_45, %c163], %112 {strides = array<i32>} : memref<4x342xbf16, #tpu.memory_space<vmem>>, vector<4x16xbf16>,
    %114 = arith.truncf %105 : vector<4x16xf32> to vector<4x16xbf16>
    %c0_46 = arith.constant 0 : index
    %c163_47 = arith.constant 163 : index
    %115 = vector.load %arg13[%c0_46, %c163_47] : memref<4x342xbf16, #tpu.memory_space<vmem>>, vector<4x16xbf16>
    tpu.vector_store %arg13[%c0_46, %c163_47], %114 {strides = array<i32>} : memref<4x342xbf16, #tpu.memory_space<vmem>>, vector<4x16xbf16>,
    %116 = vector.extract_strided_slice %1 {offsets = [0, 9, 0], sizes = [4, 1, 16], strides = [1, 1, 1]} : vector<4x16x16xf32> to vector<4x1x16xf32>
    %117 = vector.shape_cast %116 : vector<4x1x16xf32> to vector<4x16xf32>
    %118 = vector.broadcast %2 : vector<4x1xf32> to vector<4x16xf32>
    %119 = arith.mulf %117, %118 : vector<4x16xf32>
    %120 = vector.broadcast %3 : vector<4x1xf32> to vector<4x16xf32>
    %121 = arith.addf %119, %120 : vector<4x16xf32>
    %cst_48 = arith.constant 0.000000e+00 : f32
    %122 = vector.broadcast %cst_48 : f32 to vector<4x16xf32>
    %123 = arith.maximumf %121, %122 : vector<4x16xf32>
    %124 = arith.truncf %123 : vector<4x16xf32> to vector<4x16xbf16>
    %c0_49 = arith.constant 0 : index
    %c181 = arith.constant 181 : index
    %125 = vector.load %arg12[%c0_49, %c181] : memref<4x342xbf16, #tpu.memory_space<vmem>>, vector<4x16xbf16>
    tpu.vector_store %arg12[%c0_49, %c181], %124 {strides = array<i32>} : memref<4x342xbf16, #tpu.memory_space<vmem>>, vector<4x16xbf16>,
    %126 = arith.truncf %117 : vector<4x16xf32> to vector<4x16xbf16>
    %c0_50 = arith.constant 0 : index
    %c181_51 = arith.constant 181 : index
    %127 = vector.load %arg13[%c0_50, %c181_51] : memref<4x342xbf16, #tpu.memory_space<vmem>>, vector<4x16xbf16>
    tpu.vector_store %arg13[%c0_50, %c181_51], %126 {strides = array<i32>} : memref<4x342xbf16, #tpu.memory_space<vmem>>, vector<4x16xbf16>,
    %128 = vector.extract_strided_slice %1 {offsets = [0, 10, 0], sizes = [4, 1, 16], strides = [1, 1, 1]} : vector<4x16x16xf32> to vector<4x1x16xf32>
    %129 = vector.shape_cast %128 : vector<4x1x16xf32> to vector<4x16xf32>
    %130 = vector.broadcast %2 : vector<4x1xf32> to vector<4x16xf32>
    %131 = arith.mulf %129, %130 : vector<4x16xf32>
    %132 = vector.broadcast %3 : vector<4x1xf32> to vector<4x16xf32>
    %133 = arith.addf %131, %132 : vector<4x16xf32>
    %cst_52 = arith.constant 0.000000e+00 : f32
    %134 = vector.broadcast %cst_52 : f32 to vector<4x16xf32>
    %135 = arith.maximumf %133, %134 : vector<4x16xf32>
    %136 = arith.truncf %135 : vector<4x16xf32> to vector<4x16xbf16>
    %c0_53 = arith.constant 0 : index
    %c199 = arith.constant 199 : index
    %137 = vector.load %arg12[%c0_53, %c199] : memref<4x342xbf16, #tpu.memory_space<vmem>>, vector<4x16xbf16>
    tpu.vector_store %arg12[%c0_53, %c199], %136 {strides = array<i32>} : memref<4x342xbf16, #tpu.memory_space<vmem>>, vector<4x16xbf16>,
    %138 = arith.truncf %129 : vector<4x16xf32> to vector<4x16xbf16>
    %c0_54 = arith.constant 0 : index
    %c199_55 = arith.constant 199 : index
    %139 = vector.load %arg13[%c0_54, %c199_55] : memref<4x342xbf16, #tpu.memory_space<vmem>>, vector<4x16xbf16>
    tpu.vector_store %arg13[%c0_54, %c199_55], %138 {strides = array<i32>} : memref<4x342xbf16, #tpu.memory_space<vmem>>, vector<4x16xbf16>,
    %140 = vector.extract_strided_slice %1 {offsets = [0, 11, 0], sizes = [4, 1, 16], strides = [1, 1, 1]} : vector<4x16x16xf32> to vector<4x1x16xf32>
    %141 = vector.shape_cast %140 : vector<4x1x16xf32> to vector<4x16xf32>
    %142 = vector.broadcast %2 : vector<4x1xf32> to vector<4x16xf32>
    %143 = arith.mulf %141, %142 : vector<4x16xf32>
    %144 = vector.broadcast %3 : vector<4x1xf32> to vector<4x16xf32>
    %145 = arith.addf %143, %144 : vector<4x16xf32>
    %cst_56 = arith.constant 0.000000e+00 : f32
    %146 = vector.broadcast %cst_56 : f32 to vector<4x16xf32>
    %147 = arith.maximumf %145, %146 : vector<4x16xf32>
    %148 = arith.truncf %147 : vector<4x16xf32> to vector<4x16xbf16>
    %c0_57 = arith.constant 0 : index
    %c217 = arith.constant 217 : index
    %149 = vector.load %arg12[%c0_57, %c217] : memref<4x342xbf16, #tpu.memory_space<vmem>>, vector<4x16xbf16>
    tpu.vector_store %arg12[%c0_57, %c217], %148 {strides = array<i32>} : memref<4x342xbf16, #tpu.memory_space<vmem>>, vector<4x16xbf16>,
    %150 = arith.truncf %141 : vector<4x16xf32> to vector<4x16xbf16>
    %c0_58 = arith.constant 0 : index
    %c217_59 = arith.constant 217 : index
    %151 = vector.load %arg13[%c0_58, %c217_59] : memref<4x342xbf16, #tpu.memory_space<vmem>>, vector<4x16xbf16>
    tpu.vector_store %arg13[%c0_58, %c217_59], %150 {strides = array<i32>} : memref<4x342xbf16, #tpu.memory_space<vmem>>, vector<4x16xbf16>,
    %152 = vector.extract_strided_slice %1 {offsets = [0, 12, 0], sizes = [4, 1, 16], strides = [1, 1, 1]} : vector<4x16x16xf32> to vector<4x1x16xf32>
    %153 = vector.shape_cast %152 : vector<4x1x16xf32> to vector<4x16xf32>
    %154 = vector.broadcast %2 : vector<4x1xf32> to vector<4x16xf32>
    %155 = arith.mulf %153, %154 : vector<4x16xf32>
    %156 = vector.broadcast %3 : vector<4x1xf32> to vector<4x16xf32>
    %157 = arith.addf %155, %156 : vector<4x16xf32>
    %cst_60 = arith.constant 0.000000e+00 : f32
    %158 = vector.broadcast %cst_60 : f32 to vector<4x16xf32>
    %159 = arith.maximumf %157, %158 : vector<4x16xf32>
    %160 = arith.truncf %159 : vector<4x16xf32> to vector<4x16xbf16>
    %c0_61 = arith.constant 0 : index
    %c235 = arith.constant 235 : index
    %161 = vector.load %arg12[%c0_61, %c235] : memref<4x342xbf16, #tpu.memory_space<vmem>>, vector<4x16xbf16>
    tpu.vector_store %arg12[%c0_61, %c235], %160 {strides = array<i32>} : memref<4x342xbf16, #tpu.memory_space<vmem>>, vector<4x16xbf16>,
    %162 = arith.truncf %153 : vector<4x16xf32> to vector<4x16xbf16>
    %c0_62 = arith.constant 0 : index
    %c235_63 = arith.constant 235 : index
    %163 = vector.load %arg13[%c0_62, %c235_63] : memref<4x342xbf16, #tpu.memory_space<vmem>>, vector<4x16xbf16>
    tpu.vector_store %arg13[%c0_62, %c235_63], %162 {strides = array<i32>} : memref<4x342xbf16, #tpu.memory_space<vmem>>, vector<4x16xbf16>,
    %164 = vector.extract_strided_slice %1 {offsets = [0, 13, 0], sizes = [4, 1, 16], strides = [1, 1, 1]} : vector<4x16x16xf32> to vector<4x1x16xf32>
    %165 = vector.shape_cast %164 : vector<4x1x16xf32> to vector<4x16xf32>
    %166 = vector.broadcast %2 : vector<4x1xf32> to vector<4x16xf32>
    %167 = arith.mulf %165, %166 : vector<4x16xf32>
    %168 = vector.broadcast %3 : vector<4x1xf32> to vector<4x16xf32>
    %169 = arith.addf %167, %168 : vector<4x16xf32>
    %cst_64 = arith.constant 0.000000e+00 : f32
    %170 = vector.broadcast %cst_64 : f32 to vector<4x16xf32>
    %171 = arith.maximumf %169, %170 : vector<4x16xf32>
    %172 = arith.truncf %171 : vector<4x16xf32> to vector<4x16xbf16>
    %c0_65 = arith.constant 0 : index
    %c253 = arith.constant 253 : index
    %173 = vector.load %arg12[%c0_65, %c253] : memref<4x342xbf16, #tpu.memory_space<vmem>>, vector<4x16xbf16>
    tpu.vector_store %arg12[%c0_65, %c253], %172 {strides = array<i32>} : memref<4x342xbf16, #tpu.memory_space<vmem>>, vector<4x16xbf16>,
    %174 = arith.truncf %165 : vector<4x16xf32> to vector<4x16xbf16>
    %c0_66 = arith.constant 0 : index
    %c253_67 = arith.constant 253 : index
    %175 = vector.load %arg13[%c0_66, %c253_67] : memref<4x342xbf16, #tpu.memory_space<vmem>>, vector<4x16xbf16>
    tpu.vector_store %arg13[%c0_66, %c253_67], %174 {strides = array<i32>} : memref<4x342xbf16, #tpu.memory_space<vmem>>, vector<4x16xbf16>,
    %176 = vector.extract_strided_slice %1 {offsets = [0, 14, 0], sizes = [4, 1, 16], strides = [1, 1, 1]} : vector<4x16x16xf32> to vector<4x1x16xf32>
    %177 = vector.shape_cast %176 : vector<4x1x16xf32> to vector<4x16xf32>
    %178 = vector.broadcast %2 : vector<4x1xf32> to vector<4x16xf32>
    %179 = arith.mulf %177, %178 : vector<4x16xf32>
    %180 = vector.broadcast %3 : vector<4x1xf32> to vector<4x16xf32>
    %181 = arith.addf %179, %180 : vector<4x16xf32>
    %cst_68 = arith.constant 0.000000e+00 : f32
    %182 = vector.broadcast %cst_68 : f32 to vector<4x16xf32>
    %183 = arith.maximumf %181, %182 : vector<4x16xf32>
    %184 = arith.truncf %183 : vector<4x16xf32> to vector<4x16xbf16>
    %c0_69 = arith.constant 0 : index
    %c271 = arith.constant 271 : index
    %185 = vector.load %arg12[%c0_69, %c271] : memref<4x342xbf16, #tpu.memory_space<vmem>>, vector<4x16xbf16>
    tpu.vector_store %arg12[%c0_69, %c271], %184 {strides = array<i32>} : memref<4x342xbf16, #tpu.memory_space<vmem>>, vector<4x16xbf16>,
    %186 = arith.truncf %177 : vector<4x16xf32> to vector<4x16xbf16>
    %c0_70 = arith.constant 0 : index
    %c271_71 = arith.constant 271 : index
    %187 = vector.load %arg13[%c0_70, %c271_71] : memref<4x342xbf16, #tpu.memory_space<vmem>>, vector<4x16xbf16>
    tpu.vector_store %arg13[%c0_70, %c271_71], %186 {strides = array<i32>} : memref<4x342xbf16, #tpu.memory_space<vmem>>, vector<4x16xbf16>,
    %188 = vector.extract_strided_slice %1 {offsets = [0, 15, 0], sizes = [4, 1, 16], strides = [1, 1, 1]} : vector<4x16x16xf32> to vector<4x1x16xf32>
    %189 = vector.shape_cast %188 : vector<4x1x16xf32> to vector<4x16xf32>
    %190 = vector.broadcast %2 : vector<4x1xf32> to vector<4x16xf32>
    %191 = arith.mulf %189, %190 : vector<4x16xf32>
    %192 = vector.broadcast %3 : vector<4x1xf32> to vector<4x16xf32>
    %193 = arith.addf %191, %192 : vector<4x16xf32>
    %cst_72 = arith.constant 0.000000e+00 : f32
    %194 = vector.broadcast %cst_72 : f32 to vector<4x16xf32>
    %195 = arith.maximumf %193, %194 : vector<4x16xf32>
    %196 = arith.truncf %195 : vector<4x16xf32> to vector<4x16xbf16>
    %c0_73 = arith.constant 0 : index
    %c289 = arith.constant 289 : index
    %197 = vector.load %arg12[%c0_73, %c289] : memref<4x342xbf16, #tpu.memory_space<vmem>>, vector<4x16xbf16>
    tpu.vector_store %arg12[%c0_73, %c289], %196 {strides = array<i32>} : memref<4x342xbf16, #tpu.memory_space<vmem>>, vector<4x16xbf16>,
    %198 = arith.truncf %189 : vector<4x16xf32> to vector<4x16xbf16>
    %c0_74 = arith.constant 0 : index
    %c289_75 = arith.constant 289 : index
    %199 = vector.load %arg13[%c0_74, %c289_75] : memref<4x342xbf16, #tpu.memory_space<vmem>>, vector<4x16xbf16>
    tpu.vector_store %arg13[%c0_74, %c289_75], %198 {strides = array<i32>} : memref<4x342xbf16, #tpu.memory_space<vmem>>, vector<4x16xbf16>,
    %cst_76 = arith.constant 0.000000e+00 : f32
    %200 = vector.broadcast %cst_76 : f32 to vector<8x288xf32>
    %cst_77 = arith.constant 0.000000e+00 : f32
    %201 = vector.broadcast %cst_77 : f32 to vector<8x288xf32>
    %c0_78 = arith.constant 0 : index
    %c0_79 = arith.constant 0 : index
    %202 = vector.load %arg12[%c0_78, %c0_79] : memref<4x342xbf16, #tpu.memory_space<vmem>>, vector<4x288xbf16>
    %c0_80 = arith.constant 0 : index
    %c0_81 = arith.constant 0 : index
    %203 = vector.load %arg13[%c0_80, %c0_81] : memref<4x342xbf16, #tpu.memory_space<vmem>>, vector<4x288xbf16>
    %c0_82 = arith.constant 0 : index
    %c0_83 = arith.constant 0 : index
    %c0_84 = arith.constant 0 : index
    %204 = vector.load %arg2[%c0_82, %c0_83, %c0_84] : memref<9x8x4xbf16, #tpu.memory_space<vmem>>, vector<1x8x4xbf16>
    %205 = vector.shape_cast %204 : vector<1x8x4xbf16> to vector<8x4xbf16>
    %cst_85 = arith.constant dense<0.000000e+00> : vector<8x288xf32>
    %206 = tpu.matmul %205, %202, %cst_85 {dimension_numbers = #tpu.dot_dimension_numbers<[1], [0], [0], [1], [0, 0, 1, 1], [], []>} : vector<8x4xbf16>, vector<4x288xbf16>, vector<8x288xf32> -> vector<8x288xf32>
    %207 = arith.addf %200, %206 : vector<8x288xf32>
    %c0_86 = arith.constant 0 : index
    %c0_87 = arith.constant 0 : index
    %c0_88 = arith.constant 0 : index
    %208 = vector.load %arg6[%c0_86, %c0_87, %c0_88] : memref<9x8x4xbf16, #tpu.memory_space<vmem>>, vector<1x8x4xbf16>
    %209 = vector.shape_cast %208 : vector<1x8x4xbf16> to vector<8x4xbf16>
    %cst_89 = arith.constant dense<0.000000e+00> : vector<8x288xf32>
    %210 = tpu.matmul %209, %203, %cst_89 {dimension_numbers = #tpu.dot_dimension_numbers<[1], [0], [0], [1], [0, 0, 1, 1], [], []>} : vector<8x4xbf16>, vector<4x288xbf16>, vector<8x288xf32> -> vector<8x288xf32>
    %211 = arith.addf %201, %210 : vector<8x288xf32>
    %c0_90 = arith.constant 0 : index
    %c1 = arith.constant 1 : index
    %212 = vector.load %arg12[%c0_90, %c1] : memref<4x342xbf16, #tpu.memory_space<vmem>>, vector<4x288xbf16>
    %c0_91 = arith.constant 0 : index
    %c1_92 = arith.constant 1 : index
    %213 = vector.load %arg13[%c0_91, %c1_92] : memref<4x342xbf16, #tpu.memory_space<vmem>>, vector<4x288xbf16>
    %c1_93 = arith.constant 1 : index
    %c0_94 = arith.constant 0 : index
    %c0_95 = arith.constant 0 : index
    %214 = vector.load %arg2[%c1_93, %c0_94, %c0_95] : memref<9x8x4xbf16, #tpu.memory_space<vmem>>, vector<1x8x4xbf16>
    %215 = vector.shape_cast %214 : vector<1x8x4xbf16> to vector<8x4xbf16>
    %cst_96 = arith.constant dense<0.000000e+00> : vector<8x288xf32>
    %216 = tpu.matmul %215, %212, %cst_96 {dimension_numbers = #tpu.dot_dimension_numbers<[1], [0], [0], [1], [0, 0, 1, 1], [], []>} : vector<8x4xbf16>, vector<4x288xbf16>, vector<8x288xf32> -> vector<8x288xf32>
    %217 = arith.addf %207, %216 : vector<8x288xf32>
    %c1_97 = arith.constant 1 : index
    %c0_98 = arith.constant 0 : index
    %c0_99 = arith.constant 0 : index
    %218 = vector.load %arg6[%c1_97, %c0_98, %c0_99] : memref<9x8x4xbf16, #tpu.memory_space<vmem>>, vector<1x8x4xbf16>
    %219 = vector.shape_cast %218 : vector<1x8x4xbf16> to vector<8x4xbf16>
    %cst_100 = arith.constant dense<0.000000e+00> : vector<8x288xf32>
    %220 = tpu.matmul %219, %213, %cst_100 {dimension_numbers = #tpu.dot_dimension_numbers<[1], [0], [0], [1], [0, 0, 1, 1], [], []>} : vector<8x4xbf16>, vector<4x288xbf16>, vector<8x288xf32> -> vector<8x288xf32>
    %221 = arith.addf %211, %220 : vector<8x288xf32>
    %c0_101 = arith.constant 0 : index
    %c2 = arith.constant 2 : index
    %222 = vector.load %arg12[%c0_101, %c2] : memref<4x342xbf16, #tpu.memory_space<vmem>>, vector<4x288xbf16>
    %c0_102 = arith.constant 0 : index
    %c2_103 = arith.constant 2 : index
    %223 = vector.load %arg13[%c0_102, %c2_103] : memref<4x342xbf16, #tpu.memory_space<vmem>>, vector<4x288xbf16>
    %c2_104 = arith.constant 2 : index
    %c0_105 = arith.constant 0 : index
    %c0_106 = arith.constant 0 : index
    %224 = vector.load %arg2[%c2_104, %c0_105, %c0_106] : memref<9x8x4xbf16, #tpu.memory_space<vmem>>, vector<1x8x4xbf16>
    %225 = vector.shape_cast %224 : vector<1x8x4xbf16> to vector<8x4xbf16>
    %cst_107 = arith.constant dense<0.000000e+00> : vector<8x288xf32>
    %226 = tpu.matmul %225, %222, %cst_107 {dimension_numbers = #tpu.dot_dimension_numbers<[1], [0], [0], [1], [0, 0, 1, 1], [], []>} : vector<8x4xbf16>, vector<4x288xbf16>, vector<8x288xf32> -> vector<8x288xf32>
    %227 = arith.addf %217, %226 : vector<8x288xf32>
    %c2_108 = arith.constant 2 : index
    %c0_109 = arith.constant 0 : index
    %c0_110 = arith.constant 0 : index
    %228 = vector.load %arg6[%c2_108, %c0_109, %c0_110] : memref<9x8x4xbf16, #tpu.memory_space<vmem>>, vector<1x8x4xbf16>
    %229 = vector.shape_cast %228 : vector<1x8x4xbf16> to vector<8x4xbf16>
    %cst_111 = arith.constant dense<0.000000e+00> : vector<8x288xf32>
    %230 = tpu.matmul %229, %223, %cst_111 {dimension_numbers = #tpu.dot_dimension_numbers<[1], [0], [0], [1], [0, 0, 1, 1], [], []>} : vector<8x4xbf16>, vector<4x288xbf16>, vector<8x288xf32> -> vector<8x288xf32>
    %231 = arith.addf %221, %230 : vector<8x288xf32>
    %c0_112 = arith.constant 0 : index
    %c18 = arith.constant 18 : index
    %232 = vector.load %arg12[%c0_112, %c18] : memref<4x342xbf16, #tpu.memory_space<vmem>>, vector<4x288xbf16>
    %c0_113 = arith.constant 0 : index
    %c18_114 = arith.constant 18 : index
    %233 = vector.load %arg13[%c0_113, %c18_114] : memref<4x342xbf16, #tpu.memory_space<vmem>>, vector<4x288xbf16>
    %c3 = arith.constant 3 : index
    %c0_115 = arith.constant 0 : index
    %c0_116 = arith.constant 0 : index
    %234 = vector.load %arg2[%c3, %c0_115, %c0_116] : memref<9x8x4xbf16, #tpu.memory_space<vmem>>, vector<1x8x4xbf16>
    %235 = vector.shape_cast %234 : vector<1x8x4xbf16> to vector<8x4xbf16>
    %cst_117 = arith.constant dense<0.000000e+00> : vector<8x288xf32>
    %236 = tpu.matmul %235, %232, %cst_117 {dimension_numbers = #tpu.dot_dimension_numbers<[1], [0], [0], [1], [0, 0, 1, 1], [], []>} : vector<8x4xbf16>, vector<4x288xbf16>, vector<8x288xf32> -> vector<8x288xf32>
    %237 = arith.addf %227, %236 : vector<8x288xf32>
    %c3_118 = arith.constant 3 : index
    %c0_119 = arith.constant 0 : index
    %c0_120 = arith.constant 0 : index
    %238 = vector.load %arg6[%c3_118, %c0_119, %c0_120] : memref<9x8x4xbf16, #tpu.memory_space<vmem>>, vector<1x8x4xbf16>
    %239 = vector.shape_cast %238 : vector<1x8x4xbf16> to vector<8x4xbf16>
    %cst_121 = arith.constant dense<0.000000e+00> : vector<8x288xf32>
    %240 = tpu.matmul %239, %233, %cst_121 {dimension_numbers = #tpu.dot_dimension_numbers<[1], [0], [0], [1], [0, 0, 1, 1], [], []>} : vector<8x4xbf16>, vector<4x288xbf16>, vector<8x288xf32> -> vector<8x288xf32>
    %241 = arith.addf %231, %240 : vector<8x288xf32>
    %c0_122 = arith.constant 0 : index
    %c19_123 = arith.constant 19 : index
    %242 = vector.load %arg12[%c0_122, %c19_123] : memref<4x342xbf16, #tpu.memory_space<vmem>>, vector<4x288xbf16>
    %c0_124 = arith.constant 0 : index
    %c19_125 = arith.constant 19 : index
    %243 = vector.load %arg13[%c0_124, %c19_125] : memref<4x342xbf16, #tpu.memory_space<vmem>>, vector<4x288xbf16>
    %c4 = arith.constant 4 : index
    %c0_126 = arith.constant 0 : index
    %c0_127 = arith.constant 0 : index
    %244 = vector.load %arg2[%c4, %c0_126, %c0_127] : memref<9x8x4xbf16, #tpu.memory_space<vmem>>, vector<1x8x4xbf16>
    %245 = vector.shape_cast %244 : vector<1x8x4xbf16> to vector<8x4xbf16>
    %cst_128 = arith.constant dense<0.000000e+00> : vector<8x288xf32>
    %246 = tpu.matmul %245, %242, %cst_128 {dimension_numbers = #tpu.dot_dimension_numbers<[1], [0], [0], [1], [0, 0, 1, 1], [], []>} : vector<8x4xbf16>, vector<4x288xbf16>, vector<8x288xf32> -> vector<8x288xf32>
    %247 = arith.addf %237, %246 : vector<8x288xf32>
    %c4_129 = arith.constant 4 : index
    %c0_130 = arith.constant 0 : index
    %c0_131 = arith.constant 0 : index
    %248 = vector.load %arg6[%c4_129, %c0_130, %c0_131] : memref<9x8x4xbf16, #tpu.memory_space<vmem>>, vector<1x8x4xbf16>
    %249 = vector.shape_cast %248 : vector<1x8x4xbf16> to vector<8x4xbf16>
    %cst_132 = arith.constant dense<0.000000e+00> : vector<8x288xf32>
    %250 = tpu.matmul %249, %243, %cst_132 {dimension_numbers = #tpu.dot_dimension_numbers<[1], [0], [0], [1], [0, 0, 1, 1], [], []>} : vector<8x4xbf16>, vector<4x288xbf16>, vector<8x288xf32> -> vector<8x288xf32>
    %251 = arith.addf %241, %250 : vector<8x288xf32>
    %c0_133 = arith.constant 0 : index
    %c20 = arith.constant 20 : index
    %252 = vector.load %arg12[%c0_133, %c20] : memref<4x342xbf16, #tpu.memory_space<vmem>>, vector<4x288xbf16>
    %c0_134 = arith.constant 0 : index
    %c20_135 = arith.constant 20 : index
    %253 = vector.load %arg13[%c0_134, %c20_135] : memref<4x342xbf16, #tpu.memory_space<vmem>>, vector<4x288xbf16>
    %c5 = arith.constant 5 : index
    %c0_136 = arith.constant 0 : index
    %c0_137 = arith.constant 0 : index
    %254 = vector.load %arg2[%c5, %c0_136, %c0_137] : memref<9x8x4xbf16, #tpu.memory_space<vmem>>, vector<1x8x4xbf16>
    %255 = vector.shape_cast %254 : vector<1x8x4xbf16> to vector<8x4xbf16>
    %cst_138 = arith.constant dense<0.000000e+00> : vector<8x288xf32>
    %256 = tpu.matmul %255, %252, %cst_138 {dimension_numbers = #tpu.dot_dimension_numbers<[1], [0], [0], [1], [0, 0, 1, 1], [], []>} : vector<8x4xbf16>, vector<4x288xbf16>, vector<8x288xf32> -> vector<8x288xf32>
    %257 = arith.addf %247, %256 : vector<8x288xf32>
    %c5_139 = arith.constant 5 : index
    %c0_140 = arith.constant 0 : index
    %c0_141 = arith.constant 0 : index
    %258 = vector.load %arg6[%c5_139, %c0_140, %c0_141] : memref<9x8x4xbf16, #tpu.memory_space<vmem>>, vector<1x8x4xbf16>
    %259 = vector.shape_cast %258 : vector<1x8x4xbf16> to vector<8x4xbf16>
    %cst_142 = arith.constant dense<0.000000e+00> : vector<8x288xf32>
    %260 = tpu.matmul %259, %253, %cst_142 {dimension_numbers = #tpu.dot_dimension_numbers<[1], [0], [0], [1], [0, 0, 1, 1], [], []>} : vector<8x4xbf16>, vector<4x288xbf16>, vector<8x288xf32> -> vector<8x288xf32>
    %261 = arith.addf %251, %260 : vector<8x288xf32>
    %c0_143 = arith.constant 0 : index
    %c36 = arith.constant 36 : index
    %262 = vector.load %arg12[%c0_143, %c36] : memref<4x342xbf16, #tpu.memory_space<vmem>>, vector<4x288xbf16>
    %c0_144 = arith.constant 0 : index
    %c36_145 = arith.constant 36 : index
    %263 = vector.load %arg13[%c0_144, %c36_145] : memref<4x342xbf16, #tpu.memory_space<vmem>>, vector<4x288xbf16>
    %c6 = arith.constant 6 : index
    %c0_146 = arith.constant 0 : index
    %c0_147 = arith.constant 0 : index
    %264 = vector.load %arg2[%c6, %c0_146, %c0_147] : memref<9x8x4xbf16, #tpu.memory_space<vmem>>, vector<1x8x4xbf16>
    %265 = vector.shape_cast %264 : vector<1x8x4xbf16> to vector<8x4xbf16>
    %cst_148 = arith.constant dense<0.000000e+00> : vector<8x288xf32>
    %266 = tpu.matmul %265, %262, %cst_148 {dimension_numbers = #tpu.dot_dimension_numbers<[1], [0], [0], [1], [0, 0, 1, 1], [], []>} : vector<8x4xbf16>, vector<4x288xbf16>, vector<8x288xf32> -> vector<8x288xf32>
    %267 = arith.addf %257, %266 : vector<8x288xf32>
    %c6_149 = arith.constant 6 : index
    %c0_150 = arith.constant 0 : index
    %c0_151 = arith.constant 0 : index
    %268 = vector.load %arg6[%c6_149, %c0_150, %c0_151] : memref<9x8x4xbf16, #tpu.memory_space<vmem>>, vector<1x8x4xbf16>
    %269 = vector.shape_cast %268 : vector<1x8x4xbf16> to vector<8x4xbf16>
    %cst_152 = arith.constant dense<0.000000e+00> : vector<8x288xf32>
    %270 = tpu.matmul %269, %263, %cst_152 {dimension_numbers = #tpu.dot_dimension_numbers<[1], [0], [0], [1], [0, 0, 1, 1], [], []>} : vector<8x4xbf16>, vector<4x288xbf16>, vector<8x288xf32> -> vector<8x288xf32>
    %271 = arith.addf %261, %270 : vector<8x288xf32>
    %c0_153 = arith.constant 0 : index
    %c37_154 = arith.constant 37 : index
    %272 = vector.load %arg12[%c0_153, %c37_154] : memref<4x342xbf16, #tpu.memory_space<vmem>>, vector<4x288xbf16>
    %c0_155 = arith.constant 0 : index
    %c37_156 = arith.constant 37 : index
    %273 = vector.load %arg13[%c0_155, %c37_156] : memref<4x342xbf16, #tpu.memory_space<vmem>>, vector<4x288xbf16>
    %c7 = arith.constant 7 : index
    %c0_157 = arith.constant 0 : index
    %c0_158 = arith.constant 0 : index
    %274 = vector.load %arg2[%c7, %c0_157, %c0_158] : memref<9x8x4xbf16, #tpu.memory_space<vmem>>, vector<1x8x4xbf16>
    %275 = vector.shape_cast %274 : vector<1x8x4xbf16> to vector<8x4xbf16>
    %cst_159 = arith.constant dense<0.000000e+00> : vector<8x288xf32>
    %276 = tpu.matmul %275, %272, %cst_159 {dimension_numbers = #tpu.dot_dimension_numbers<[1], [0], [0], [1], [0, 0, 1, 1], [], []>} : vector<8x4xbf16>, vector<4x288xbf16>, vector<8x288xf32> -> vector<8x288xf32>
    %277 = arith.addf %267, %276 : vector<8x288xf32>
    %c7_160 = arith.constant 7 : index
    %c0_161 = arith.constant 0 : index
    %c0_162 = arith.constant 0 : index
    %278 = vector.load %arg6[%c7_160, %c0_161, %c0_162] : memref<9x8x4xbf16, #tpu.memory_space<vmem>>, vector<1x8x4xbf16>
    %279 = vector.shape_cast %278 : vector<1x8x4xbf16> to vector<8x4xbf16>
    %cst_163 = arith.constant dense<0.000000e+00> : vector<8x288xf32>
    %280 = tpu.matmul %279, %273, %cst_163 {dimension_numbers = #tpu.dot_dimension_numbers<[1], [0], [0], [1], [0, 0, 1, 1], [], []>} : vector<8x4xbf16>, vector<4x288xbf16>, vector<8x288xf32> -> vector<8x288xf32>
    %281 = arith.addf %271, %280 : vector<8x288xf32>
    %c0_164 = arith.constant 0 : index
    %c38 = arith.constant 38 : index
    %282 = vector.load %arg12[%c0_164, %c38] : memref<4x342xbf16, #tpu.memory_space<vmem>>, vector<4x288xbf16>
    %c0_165 = arith.constant 0 : index
    %c38_166 = arith.constant 38 : index
    %283 = vector.load %arg13[%c0_165, %c38_166] : memref<4x342xbf16, #tpu.memory_space<vmem>>, vector<4x288xbf16>
    %c8 = arith.constant 8 : index
    %c0_167 = arith.constant 0 : index
    %c0_168 = arith.constant 0 : index
    %284 = vector.load %arg2[%c8, %c0_167, %c0_168] : memref<9x8x4xbf16, #tpu.memory_space<vmem>>, vector<1x8x4xbf16>
    %285 = vector.shape_cast %284 : vector<1x8x4xbf16> to vector<8x4xbf16>
    %cst_169 = arith.constant dense<0.000000e+00> : vector<8x288xf32>
    %286 = tpu.matmul %285, %282, %cst_169 {dimension_numbers = #tpu.dot_dimension_numbers<[1], [0], [0], [1], [0, 0, 1, 1], [], []>} : vector<8x4xbf16>, vector<4x288xbf16>, vector<8x288xf32> -> vector<8x288xf32>
    %287 = arith.addf %277, %286 : vector<8x288xf32>
    %c8_170 = arith.constant 8 : index
    %c0_171 = arith.constant 0 : index
    %c0_172 = arith.constant 0 : index
    %288 = vector.load %arg6[%c8_170, %c0_171, %c0_172] : memref<9x8x4xbf16, #tpu.memory_space<vmem>>, vector<1x8x4xbf16>
    %289 = vector.shape_cast %288 : vector<1x8x4xbf16> to vector<8x4xbf16>
    %cst_173 = arith.constant dense<0.000000e+00> : vector<8x288xf32>
    %290 = tpu.matmul %289, %283, %cst_173 {dimension_numbers = #tpu.dot_dimension_numbers<[1], [0], [0], [1], [0, 0, 1, 1], [], []>} : vector<8x4xbf16>, vector<4x288xbf16>, vector<8x288xf32> -> vector<8x288xf32>
    %291 = arith.addf %281, %290 : vector<8x288xf32>
    %c0_174 = arith.constant 0 : index
    %c0_175 = arith.constant 0 : index
    %292 = vector.load %arg3[%c0_174, %c0_175] : memref<8x1xf32, #tpu.memory_space<vmem>>, vector<8x1xf32>
    %293 = vector.broadcast %292 : vector<8x1xf32> to vector<8x288xf32>
    %294 = arith.addf %287, %293 : vector<8x288xf32>
    %c0_176 = arith.constant 0 : index
    %c0_177 = arith.constant 0 : index
    %295 = vector.load %arg8[%c0_176, %c0_177] : memref<1x288xf32, #tpu.memory_space<vmem>>, vector<1x288xf32>
    %296 = vector.broadcast %295 : vector<1x288xf32> to vector<8x288xf32>
    %297 = arith.mulf %294, %296 : vector<8x288xf32>
    %c0_178 = arith.constant 0 : index
    %c0_179 = arith.constant 0 : index
    %298 = vector.load %arg7[%c0_178, %c0_179] : memref<8x1xf32, #tpu.memory_space<vmem>>, vector<8x1xf32>
    %299 = vector.broadcast %298 : vector<8x1xf32> to vector<8x288xf32>
    %300 = arith.addf %291, %299 : vector<8x288xf32>
    %c0_180 = arith.constant 0 : index
    %c0_181 = arith.constant 0 : index
    %301 = vector.load %arg8[%c0_180, %c0_181] : memref<1x288xf32, #tpu.memory_space<vmem>>, vector<1x288xf32>
    %302 = vector.broadcast %301 : vector<1x288xf32> to vector<8x288xf32>
    %303 = arith.mulf %300, %302 : vector<8x288xf32>
    %cst_182 = arith.constant dense<0.000000e+00> : vector<8xf32>
    %304 = vector.multi_reduction <add>, %297, %cst_182 [1] : vector<8x288xf32> to vector<8xf32>
    %305 = vector.shape_cast %304 : vector<8xf32> to vector<8x1xf32>
    %306 = arith.mulf %297, %297 : vector<8x288xf32>
    %cst_183 = arith.constant dense<0.000000e+00> : vector<8xf32>
    %307 = vector.multi_reduction <add>, %306, %cst_183 [1] : vector<8x288xf32> to vector<8xf32>
    %308 = vector.shape_cast %307 : vector<8xf32> to vector<8x1xf32>
    %cst_184 = arith.constant dense<0.000000e+00> : vector<8xf32>
    %309 = vector.multi_reduction <add>, %303, %cst_184 [1] : vector<8x288xf32> to vector<8xf32>
    %310 = vector.shape_cast %309 : vector<8xf32> to vector<8x1xf32>
    %311 = arith.mulf %303, %303 : vector<8x288xf32>
    %cst_185 = arith.constant dense<0.000000e+00> : vector<8xf32>
    %312 = vector.multi_reduction <add>, %311, %cst_185 [1] : vector<8x288xf32> to vector<8xf32>
    %313 = vector.shape_cast %312 : vector<8xf32> to vector<8x1xf32>
    %314 = tpu.concatenate %305, %308, %310, %313 in 1 : vector<8x1xf32>, vector<8x1xf32>, vector<8x1xf32>, vector<8x1xf32> -> vector<8x4xf32>
    %315 = arith.truncf %297 : vector<8x288xf32> to vector<8x288xbf16>
    %316 = vector.shape_cast %315 : vector<8x288xbf16> to vector<1x8x288xbf16>
    %c0_186 = arith.constant 0 : index
    %c0_187 = arith.constant 0 : index
    %c0_188 = arith.constant 0 : index
    %317 = vector.load %arg9[%c0_186, %c0_187, %c0_188] : memref<1x8x288xbf16, #tpu.memory_space<vmem>>, vector<1x8x288xbf16>
    tpu.vector_store %arg9[%c0_186, %c0_187, %c0_188], %316 {strides = array<i32>} : memref<1x8x288xbf16, #tpu.memory_space<vmem>>, vector<1x8x288xbf16>,
    %318 = arith.truncf %303 : vector<8x288xf32> to vector<8x288xbf16>
    %319 = vector.shape_cast %318 : vector<8x288xbf16> to vector<1x8x288xbf16>
    %c0_189 = arith.constant 0 : index
    %c0_190 = arith.constant 0 : index
    %c0_191 = arith.constant 0 : index
    %320 = vector.load %arg10[%c0_189, %c0_190, %c0_191] : memref<1x8x288xbf16, #tpu.memory_space<vmem>>, vector<1x8x288xbf16>
    tpu.vector_store %arg10[%c0_189, %c0_190, %c0_191], %319 {strides = array<i32>} : memref<1x8x288xbf16, #tpu.memory_space<vmem>>, vector<1x8x288xbf16>,
    %321 = vector.shape_cast %314 : vector<8x4xf32> to vector<1x8x4xf32>
    %c0_192 = arith.constant 0 : index
    %c0_193 = arith.constant 0 : index
    %c0_194 = arith.constant 0 : index
    %322 = vector.load %arg11[%c0_192, %c0_193, %c0_194] : memref<1x8x4xf32, #tpu.memory_space<vmem>>, vector<1x8x4xf32>
    tpu.vector_store %arg11[%c0_192, %c0_193, %c0_194], %321 {strides = array<i32>} : memref<1x8x4xf32, #tpu.memory_space<vmem>>, vector<1x8x4xf32>,
    return
  }
  func.func @transform_0(%arg0: i32) -> (i32, i32, i32, i32) {
    %c0_i32 = arith.constant 0 : i32
    %c0_i32_0 = arith.constant 0 : i32
    %c0_i32_1 = arith.constant 0 : i32
    %c0_i32_2 = arith.constant 0 : i32
    return %arg0, %c0_i32, %c0_i32_0, %c0_i32_1 : i32, i32, i32, i32
  }
  func.func @transform_1(%arg0: i32) -> (i32, i32, i32) {
    %c0_i32 = arith.constant 0 : i32
    %c0_i32_0 = arith.constant 0 : i32
    %c0_i32_1 = arith.constant 0 : i32
    %c0_i32_2 = arith.constant 0 : i32
    return %c0_i32, %c0_i32_0, %c0_i32_1 : i32, i32, i32
  }
  func.func @transform_2(%arg0: i32) -> (i32, i32) {
    %c0_i32 = arith.constant 0 : i32
    %c0_i32_0 = arith.constant 0 : i32
    %c0_i32_1 = arith.constant 0 : i32
    return %c0_i32, %c0_i32_0 : i32, i32
  }
  func.func @transform_3(%arg0: i32) -> (i32, i32) {
    %c0_i32 = arith.constant 0 : i32
    %c0_i32_0 = arith.constant 0 : i32
    %c0_i32_1 = arith.constant 0 : i32
    return %c0_i32, %c0_i32_0 : i32, i32
  }
  func.func @transform_4(%arg0: i32) -> (i32, i32) {
    %c0_i32 = arith.constant 0 : i32
    %c0_i32_0 = arith.constant 0 : i32
    %c0_i32_1 = arith.constant 0 : i32
    return %c0_i32, %c0_i32_0 : i32, i32
  }
  func.func @transform_5(%arg0: i32) -> (i32, i32, i32) {
    %c0_i32 = arith.constant 0 : i32
    %c0_i32_0 = arith.constant 0 : i32
    %c0_i32_1 = arith.constant 0 : i32
    %c0_i32_2 = arith.constant 0 : i32
    return %c0_i32, %c0_i32_0, %c0_i32_1 : i32, i32, i32
  }
  func.func @transform_6(%arg0: i32) -> (i32, i32) {
    %c0_i32 = arith.constant 0 : i32
    %c0_i32_0 = arith.constant 0 : i32
    %c0_i32_1 = arith.constant 0 : i32
    return %c0_i32, %c0_i32_0 : i32, i32
  }
  func.func @transform_7(%arg0: i32) -> (i32, i32) {
    %c0_i32 = arith.constant 0 : i32
    %c0_i32_0 = arith.constant 0 : i32
    %c0_i32_1 = arith.constant 0 : i32
    return %c0_i32, %c0_i32_0 : i32, i32
  }
  func.func @transform_8(%arg0: i32) -> (i32, i32, i32) {
    %c0_i32 = arith.constant 0 : i32
    %c0_i32_0 = arith.constant 0 : i32
    %c0_i32_1 = arith.constant 0 : i32
    return %arg0, %c0_i32, %c0_i32_0 : i32, i32, i32
  }
  func.func @transform_9(%arg0: i32) -> (i32, i32, i32) {
    %c0_i32 = arith.constant 0 : i32
    %c0_i32_0 = arith.constant 0 : i32
    %c0_i32_1 = arith.constant 0 : i32
    return %arg0, %c0_i32, %c0_i32_0 : i32, i32, i32
  }
  func.func @transform_10(%arg0: i32) -> (i32, i32, i32) {
    %c0_i32 = arith.constant 0 : i32
    %c0_i32_0 = arith.constant 0 : i32
    %c0_i32_1 = arith.constant 0 : i32
    return %arg0, %c0_i32, %c0_i32_0 : i32, i32, i32
  }
}

</mosaic_0001>

<llo_original>
// kernel: tpu_custom_call.1
$region0: #{tpu_custom_call.1}
  #allocation0 [shape = 'u32[]', space=smem, size = 0x4, offset = 0x4, fixed_abs, tag = 'smem constant byte address 0x4 - core index']
  #allocation1 [shape = 'u32[144,128]{1,0:T(1,128)}', space=vmem, size = 0x12000, scoped, tag = 'internal scratch']
  #allocation2 [shape = 'bf16[4,342]{1,0:T(4,128)(2,1)}', space=vmem, size = 0xc00, scoped, tag = 'scratch operand']
  #allocation3 [shape = 'bf16[4,342]{1,0:T(4,128)(2,1)}', space=vmem, size = 0xc00, scoped, tag = 'scratch operand']
  %s0 = inlined_call_operand.vmem [shape: f32[2,4,16,16], index: 0, kind: input, shape index: {}]
  %s1 = inlined_call_operand.vmem [shape: bf16[9,8,4], index: 1, kind: input, shape index: {}]
  %s2 = inlined_call_operand.vmem [shape: f32[8,1], index: 2, kind: input, shape index: {}]
  %s3 = inlined_call_operand.vmem [shape: f32[4,1], index: 3, kind: input, shape index: {}]
  %s4 = inlined_call_operand.vmem [shape: f32[4,1], index: 4, kind: input, shape index: {}]
  %s5 = inlined_call_operand.vmem [shape: bf16[9,8,4], index: 5, kind: input, shape index: {}]
  %s6 = inlined_call_operand.vmem [shape: f32[8,1], index: 6, kind: input, shape index: {}]
  %s7 = inlined_call_operand.vmem [shape: f32[1,288], index: 7, kind: input, shape index: {}]
  %s8 = inlined_call_operand.hbm [shape: bf16[2,8,288], index: 8, kind: output, shape index: {0}]
  %s9 = inlined_call_operand.hbm [shape: bf16[2,8,288], index: 9, kind: output, shape index: {1}]
  %s10 = inlined_call_operand.vmem [shape: f32[2,8,4], index: 10, kind: output, shape index: {2}]
  %11 = xla_tuple %s8, %s9, %s10
  %s12 = sld [smem:[#allocation0]]
  $region81: #{tpu_custom_call.1} parent=0
    _
  %s14 = ssub.s32 1, %s12
  %s15 = scalar_select 0, %s14, %s12
  $region1: #{tpu_custom_call.1} parent=0
    #allocation4 [shape = 'u8[12288]{0}', space=vmem, size = 0x3000, scoped, tag = 'output window, operand 0']
    #allocation5 [shape = 's32[2]{0}', space=sflag, size = 0x8, scoped, tag = 'scoped memory for tpu_custom_call.1']
    #allocation6 [shape = 'u8[12288]{0}', space=vmem, size = 0x3000, scoped, tag = 'output window, operand 1']
    #allocation7 [shape = 's32[2]{0}', space=sflag, size = 0x8, scoped, tag = 'scoped memory for tpu_custom_call.1']
    %16 = vsyncpa [#allocation5], 0
    %s17 = scalar_lea.sflag [#allocation5], 1
    %18 = vsyncpa %s17, 0
    %19 = vsyncpa [#allocation7], 0
    %s20 = scalar_lea.sflag [#allocation7], 1
    %21 = vsyncpa %s20, 0
    loop: start=0, step=1, limit=4
    $region2: #{tpu_custom_call.1} parent=1 // loop_pre_header
      _
    $region3: #{tpu_custom_call.1} parent=1 // loop_header
      %s23 = sphi 0, %s27
      %p24 = scmp.ge.s32.totalorder %s23, 4
      %s33 = sphi 0, %s35
      %s36 = sphi 0, %s33
      %s37 = sphi 0, %s36
      %s53 = sphi 0, %s37
      %s57 = sphi 0, %s57
      %s59 = sphi 0, %s57
      %s60 = sphi 0, %s59
      %s74 = sphi 0, %s60
      %s78 = sphi 0, %s78
      %s80 = sphi 0, %s78
      %s81 = sphi 0, %s80
      %s95 = sphi 0, %s81
      %s99 = sphi 0, %s99
      %s101 = sphi 0, %s99
      %s102 = sphi 0, %s101
      %s116 = sphi 0, %s102
      %s120 = sphi 0, %s120
      %s122 = sphi 0, %s120
      %s123 = sphi 0, %s122
      %s137 = sphi 0, %s123
      %s141 = sphi 0, %s141
      %s143 = sphi 0, %s141
      %s144 = sphi 0, %s143
      %s158 = sphi 0, %s144
      %s162 = sphi 0, %s162
      %s164 = sphi 0, %s162
      %s165 = sphi 0, %s164
      %s179 = sphi 0, %s165
      %s183 = sphi 0, %s183
      %s185 = sphi 0, %s183
      %s186 = sphi 0, %s185
      %s200 = sphi 0, %s186
      %s206 = sphi 0, %s208
      %s209 = sphi 0, %s206
      %s210 = sphi 0, %s209
      %s226 = sphi 0, %s210
      %s232 = sphi 0, %s234
      %s235 = sphi 0, %s232
      %s236 = sphi 0, %s235
      %s252 = sphi 0, %s236
      %s258 = sphi 0, %s260
      %s261 = sphi 0, %s258
      %s262 = sphi 0, %s261
      %s278 = sphi 0, %s262
    $region4: #{tpu_custom_call.1} parent=1 // loop_header_branch
      %26 = sbr.rel (%p24) target = $region8
    $region5: #{tpu_custom_call.1} parent=1 // loop_body
      %s28 = ssub.s32 %s23, 1
      %s29 = ssub.s32 %s23, 2
      %s30 = sadd.s32 %s23, 1
      %s31 = ssub.s32 %s23, %s30
      %p32 = scmp.eq.s32.totalorder %s31, 0
      %s34 = sadd.s32 %s33, 1
      %s35 = scalar_select %p32, %s33, %s34
      %p38 = pneg %p32
      %p39 = scmp.eq.s32.totalorder %s23, 1
      %p40 = por %p38, %p39
      %p41 = scmp.ne.s32.totalorder %s33, %s36
      %p42 = scmp.eq.s32.totalorder %s23, 0
      %p43 = por %p41, %p42
      %p44 = scmp.ne.s32.totalorder %s33, %s36
      %p45 = scmp.eq.s32.totalorder %s28, 1
      %p46 = por %p44, %p45
      %p47 = scmp.ne.s32.totalorder %s36, %s37
      %p48 = scmp.eq.s32.totalorder %s28, 0
      %p49 = por %p47, %p48
      %p50 = scmp.ne.s32.totalorder %s36, %s37
      %p51 = scmp.eq.s32.totalorder %s29, 1
      %p52 = por %p50, %p51
      %p54 = scmp.ne.s32.totalorder %s37, %s53
      %p55 = scmp.eq.s32.totalorder %s29, 0
      %p56 = por %p54, %p55
      %s58 = sadd.s32 %s57, 1
      %p61 = scmp.eq.s32.totalorder %s23, 1
      %p62 = scmp.ne.s32.totalorder %s57, %s59
      %p63 = scmp.eq.s32.totalorder %s23, 0
      %p64 = por %p62, %p63
      %p65 = scmp.ne.s32.totalorder %s57, %s59
      %p66 = scmp.eq.s32.totalorder %s28, 1
      %p67 = por %p65, %p66
      %p68 = scmp.ne.s32.totalorder %s59, %s60
      %p69 = scmp.eq.s32.totalorder %s28, 0
      %p70 = por %p68, %p69
      %p71 = scmp.ne.s32.totalorder %s59, %s60
      %p72 = scmp.eq.s32.totalorder %s29, 1
      %p73 = por %p71, %p72
      %p75 = scmp.ne.s32.totalorder %s60, %s74
      %p76 = scmp.eq.s32.totalorder %s29, 0
      %p77 = por %p75, %p76
      %s79 = sadd.s32 %s78, 1
      %p82 = scmp.eq.s32.totalorder %s23, 1
      %p83 = scmp.ne.s32.totalorder %s78, %s80
      %p84 = scmp.eq.s32.totalorder %s23, 0
      %p85 = por %p83, %p84
      %p86 = scmp.ne.s32.totalorder %s78, %s80
      %p87 = scmp.eq.s32.totalorder %s28, 1
      %p88 = por %p86, %p87
      %p89 = scmp.ne.s32.totalorder %s80, %s81
      %p90 = scmp.eq.s32.totalorder %s28, 0
      %p91 = por %p89, %p90
      %p92 = scmp.ne.s32.totalorder %s80, %s81
      %p93 = scmp.eq.s32.totalorder %s29, 1
      %p94 = por %p92, %p93
      %p96 = scmp.ne.s32.totalorder %s81, %s95
      %p97 = scmp.eq.s32.totalorder %s29, 0
      %p98 = por %p96, %p97
      %s100 = sadd.s32 %s99, 1
      %p103 = scmp.eq.s32.totalorder %s23, 1
      %p104 = scmp.ne.s32.totalorder %s99, %s101
      %p105 = scmp.eq.s32.totalorder %s23, 0
      %p106 = por %p104, %p105
      %p107 = scmp.ne.s32.totalorder %s99, %s101
      %p108 = scmp.eq.s32.totalorder %s28, 1
      %p109 = por %p107, %p108
      %p110 = scmp.ne.s32.totalorder %s101, %s102
      %p111 = scmp.eq.s32.totalorder %s28, 0
      %p112 = por %p110, %p111
      %p113 = scmp.ne.s32.totalorder %s101, %s102
      %p114 = scmp.eq.s32.totalorder %s29, 1
      %p115 = por %p113, %p114
      %p117 = scmp.ne.s32.totalorder %s102, %s116
      %p118 = scmp.eq.s32.totalorder %s29, 0
      %p119 = por %p117, %p118
      %s121 = sadd.s32 %s120, 1
      %p124 = scmp.eq.s32.totalorder %s23, 1
      %p125 = scmp.ne.s32.totalorder %s120, %s122
      %p126 = scmp.eq.s32.totalorder %s23, 0
      %p127 = por %p125, %p126
      %p128 = scmp.ne.s32.totalorder %s120, %s122
      %p129 = scmp.eq.s32.totalorder %s28, 1
      %p130 = por %p128, %p129
      %p131 = scmp.ne.s32.totalorder %s122, %s123
      %p132 = scmp.eq.s32.totalorder %s28, 0
      %p133 = por %p131, %p132
      %p134 = scmp.ne.s32.totalorder %s122, %s123
      %p135 = scmp.eq.s32.totalorder %s29, 1
      %p136 = por %p134, %p135
      %p138 = scmp.ne.s32.totalorder %s123, %s137
      %p139 = scmp.eq.s32.totalorder %s29, 0
      %p140 = por %p138, %p139
      %s142 = sadd.s32 %s141, 1
      %p145 = scmp.eq.s32.totalorder %s23, 1
      %p146 = scmp.ne.s32.totalorder %s141, %s143
      %p147 = scmp.eq.s32.totalorder %s23, 0
      %p148 = por %p146, %p147
      %p149 = scmp.ne.s32.totalorder %s141, %s143
      %p150 = scmp.eq.s32.totalorder %s28, 1
      %p151 = por %p149, %p150
      %p152 = scmp.ne.s32.totalorder %s143, %s144
      %p153 = scmp.eq.s32.totalorder %s28, 0
      %p154 = por %p152, %p153
      %p155 = scmp.ne.s32.totalorder %s143, %s144
      %p156 = scmp.eq.s32.totalorder %s29, 1
      %p157 = por %p155, %p156
      %p159 = scmp.ne.s32.totalorder %s144, %s158
      %p160 = scmp.eq.s32.totalorder %s29, 0
      %p161 = por %p159, %p160
      %s163 = sadd.s32 %s162, 1
      %p166 = scmp.eq.s32.totalorder %s23, 1
      %p167 = scmp.ne.s32.totalorder %s162, %s164
      %p168 = scmp.eq.s32.totalorder %s23, 0
      %p169 = por %p167, %p168
      %p170 = scmp.ne.s32.totalorder %s162, %s164
      %p171 = scmp.eq.s32.totalorder %s28, 1
      %p172 = por %p170, %p171
      %p173 = scmp.ne.s32.totalorder %s164, %s165
      %p174 = scmp.eq.s32.totalorder %s28, 0
      %p175 = por %p173, %p174
      %p176 = scmp.ne.s32.totalorder %s164, %s165
      %p177 = scmp.eq.s32.totalorder %s29, 1
      %p178 = por %p176, %p177
      %p180 = scmp.ne.s32.totalorder %s165, %s179
      %p181 = scmp.eq.s32.totalorder %s29, 0
      %p182 = por %p180, %p181
      %s184 = sadd.s32 %s183, 1
      %p187 = scmp.eq.s32.totalorder %s23, 1
      %p188 = scmp.ne.s32.totalorder %s183, %s185
      %p189 = scmp.eq.s32.totalorder %s23, 0
      %p190 = por %p188, %p189
      %p191 = scmp.ne.s32.totalorder %s183, %s185
      %p192 = scmp.eq.s32.totalorder %s28, 1
      %p193 = por %p191, %p192
      %p194 = scmp.ne.s32.totalorder %s185, %s186
      %p195 = scmp.eq.s32.totalorder %s28, 0
      %p196 = por %p194, %p195
      %p197 = scmp.ne.s32.totalorder %s185, %s186
      %p198 = scmp.eq.s32.totalorder %s29, 1
      %p199 = por %p197, %p198
      %p201 = scmp.ne.s32.totalorder %s186, %s200
      %p202 = scmp.eq.s32.totalorder %s29, 0
      %p203 = por %p201, %p202
      %s204 = ssub.s32 %s23, %s30
      %p205 = scmp.eq.s32.totalorder %s204, 0
      %s207 = sadd.s32 %s206, 1
      %s208 = scalar_select %p205, %s206, %s207
      %p211 = pneg %p205
      %p212 = scmp.eq.s32.totalorder %s23, 1
      %p213 = por %p211, %p212
      %p214 = scmp.ne.s32.totalorder %s206, %s209
      %p215 = scmp.eq.s32.totalorder %s23, 0
      %p216 = por %p214, %p215
      %p217 = scmp.ne.s32.totalorder %s206, %s209
      %p218 = scmp.eq.s32.totalorder %s28, 1
      %p219 = por %p217, %p218
      %p220 = scmp.ne.s32.totalorder %s209, %s210
      %p221 = scmp.eq.s32.totalorder %s28, 0
      %p222 = por %p220, %p221
      %p223 = scmp.ne.s32.totalorder %s209, %s210
      %p224 = scmp.eq.s32.totalorder %s29, 1
      %p225 = por %p223, %p224
      %p227 = scmp.ne.s32.totalorder %s210, %s226
      %p228 = scmp.eq.s32.totalorder %s29, 0
      %p229 = por %p227, %p228
      %s230 = ssub.s32 %s23, %s30
      %p231 = scmp.eq.s32.totalorder %s230, 0
      %s233 = sadd.s32 %s232, 1
      %s234 = scalar_select %p231, %s232, %s233
      %p237 = pneg %p231
      %p238 = scmp.eq.s32.totalorder %s23, 1
      %p239 = por %p237, %p238
      %p240 = scmp.ne.s32.totalorder %s232, %s235
      %p241 = scmp.eq.s32.totalorder %s23, 0
      %p242 = por %p240, %p241
      %p243 = scmp.ne.s32.totalorder %s232, %s235
      %p244 = scmp.eq.s32.totalorder %s28, 1
      %p245 = por %p243, %p244
      %p246 = scmp.ne.s32.totalorder %s235, %s236
      %p247 = scmp.eq.s32.totalorder %s28, 0
      %p248 = por %p246, %p247
      %p249 = scmp.ne.s32.totalorder %s235, %s236
      %p250 = scmp.eq.s32.totalorder %s29, 1
      %p251 = por %p249, %p250
      %p253 = scmp.ne.s32.totalorder %s236, %s252
      %p254 = scmp.eq.s32.totalorder %s29, 0
      %p255 = por %p253, %p254
      %s256 = ssub.s32 %s23, %s30
      %p257 = scmp.eq.s32.totalorder %s256, 0
      %s259 = sadd.s32 %s258, 1
      %s260 = scalar_select %p257, %s258, %s259
      %p263 = pneg %p257
      %p264 = scmp.eq.s32.totalorder %s23, 1
      %p265 = por %p263, %p264
      %p266 = scmp.ne.s32.totalorder %s258, %s261
      %p267 = scmp.eq.s32.totalorder %s23, 0
      %p268 = por %p266, %p267
      %p269 = scmp.ne.s32.totalorder %s258, %s261
      %p270 = scmp.eq.s32.totalorder %s28, 1
      %p271 = por %p269, %p270
      %p272 = scmp.ne.s32.totalorder %s261, %s262
      %p273 = scmp.eq.s32.totalorder %s28, 0
      %p274 = por %p272, %p273
      %p275 = scmp.ne.s32.totalorder %s261, %s262
      %p276 = scmp.eq.s32.totalorder %s29, 1
      %p277 = por %p275, %p276
      %p279 = scmp.ne.s32.totalorder %s262, %s278
      %p280 = scmp.eq.s32.totalorder %s29, 0
      %p281 = por %p279, %p280
      %p282 = scmp.le.s32.totalorder 1, %s23
      %p283 = scmp.lt.s32.totalorder %s23, 3
      %p284 = pnand %p282, %p283
      %p285 = pneg %p284
      // Predicated region
      $region9: #{tpu_custom_call.1} parent=5 // pred_check
        _
      $region10: #{tpu_custom_call.1} parent=5 // pred_check_branch
        %287 = sbr.rel (%p284) target = $region12
      $region11: #{tpu_custom_call.1} parent=5 // pred_region
        %s288 = ssub.s32 %s23, 1
        // Predicated region
        $region13: #{tpu_custom_call.1} parent=11 // pred_check
          %p289 = pneg %p70
        $region14: #{tpu_custom_call.1} parent=11 // pred_check_branch
          %291 = sbr.rel (%p289) target = $region16
        $region15: #{tpu_custom_call.1} parent=11 // pred_region
          _
        $region16: #{tpu_custom_call.1} parent=11 // pred_fallthru
          _
        // Predicated region
        $region17: #{tpu_custom_call.1} parent=11 // pred_check
          %p292 = pneg %p91
        $region18: #{tpu_custom_call.1} parent=11 // pred_check_branch
          %294 = sbr.rel (%p292) target = $region20
        $region19: #{tpu_custom_call.1} parent=11 // pred_region
          _
        $region20: #{tpu_custom_call.1} parent=11 // pred_fallthru
          _
        // Predicated region
        $region21: #{tpu_custom_call.1} parent=11 // pred_check
          %p295 = pneg %p112
        $region22: #{tpu_custom_call.1} parent=11 // pred_check_branch
          %297 = sbr.rel (%p295) target = $region24
        $region23: #{tpu_custom_call.1} parent=11 // pred_region
          _
        $region24: #{tpu_custom_call.1} parent=11 // pred_fallthru
          _
        // Predicated region
        $region25: #{tpu_custom_call.1} parent=11 // pred_check
          %p298 = pneg %p133
        $region26: #{tpu_custom_call.1} parent=11 // pred_check_branch
          %300 = sbr.rel (%p298) target = $region28
        $region27: #{tpu_custom_call.1} parent=11 // pred_region
          _
        $region28: #{tpu_custom_call.1} parent=11 // pred_fallthru
          _
        // Predicated region
        $region29: #{tpu_custom_call.1} parent=11 // pred_check
          %p301 = pneg %p154
        $region30: #{tpu_custom_call.1} parent=11 // pred_check_branch
          %303 = sbr.rel (%p301) target = $region32
        $region31: #{tpu_custom_call.1} parent=11 // pred_region
          _
        $region32: #{tpu_custom_call.1} parent=11 // pred_fallthru
          _
        // Predicated region
        $region33: #{tpu_custom_call.1} parent=11 // pred_check
          %p304 = pneg %p175
        $region34: #{tpu_custom_call.1} parent=11 // pred_check_branch
          %306 = sbr.rel (%p304) target = $region36
        $region35: #{tpu_custom_call.1} parent=11 // pred_region
          _
        $region36: #{tpu_custom_call.1} parent=11 // pred_fallthru
          _
        // Predicated region
        $region37: #{tpu_custom_call.1} parent=11 // pred_check
          %p307 = pneg %p196
        $region38: #{tpu_custom_call.1} parent=11 // pred_check_branch
          %309 = sbr.rel (%p307) target = $region40
        $region39: #{tpu_custom_call.1} parent=11 // pred_region
          _
        $region40: #{tpu_custom_call.1} parent=11 // pred_fallthru
          _
      $region12: #{tpu_custom_call.1} parent=5 // pred_fallthru
        _
      %p310 = scmp.lt.s32.totalorder %s23, 2
      // Predicated region
      $region41: #{tpu_custom_call.1} parent=5 // pred_check
        %p311 = pneg %p310
      $region42: #{tpu_custom_call.1} parent=5 // pred_check_branch
        %313 = sbr.rel (%p311) target = $region44
      $region43: #{tpu_custom_call.1} parent=5 // pred_region
        // Predicated region
        $region45: #{tpu_custom_call.1} parent=43 // pred_check
          %p314 = pneg %p43
        $region46: #{tpu_custom_call.1} parent=43 // pred_check_branch
          %316 = sbr.rel (%p314) target = $region48
        $region47: #{tpu_custom_call.1} parent=43 // pred_region
          %p317 = scmp.lt.s32.totalorder %s23, 1
          %s318 = scalar_select %p317, %s23, 1
          %s319 = smul.addr %s318, 8
          %s320 = smul.addr %s319, 8
          %s321 = scalar_lea.vmem %s0, %s320
        $region48: #{tpu_custom_call.1} parent=43 // pred_fallthru
          _
      $region44: #{tpu_custom_call.1} parent=5 // pred_fallthru
        _
      %p322 = scmp.le.s32.totalorder 1, %s23
      %p323 = scmp.lt.s32.totalorder %s23, 3
      %p324 = pnand %p322, %p323
      %p325 = pneg %p324
      // Predicated region
      $region49: #{tpu_custom_call.1} parent=5 // pred_check
        _
      $region50: #{tpu_custom_call.1} parent=5 // pred_check_branch
        %327 = sbr.rel (%p324) target = $region52
      $region51: #{tpu_custom_call.1} parent=5 // pred_region
        %s328 = ssub.s32 %s23, 1
        %p329 = scmp.lt.s32.totalorder %s28, 1
        %s330 = scalar_select %p329, %s28, 1
        %s331 = smul.addr %s330, 8
        %s332 = smul.addr %s331, 8
        %s333 = scalar_lea.vmem %s0, %s332
        %p334 = pneg %p49
        %p335 = pneg %p46
        %p336 = pneg %p70
        %p337 = pneg %p67
        %p338 = pneg %p91
        %p339 = pneg %p88
        %p340 = pneg %p112
        %p341 = pneg %p109
        %p342 = pneg %p133
        %p343 = pneg %p130
        %p344 = pneg %p154
        %p345 = pneg %p151
        %p346 = pneg %p175
        %p347 = pneg %p172
        %p348 = pneg %p196
        %p349 = pneg %p193
        %p350 = pneg %p222
        %p351 = pneg %p219
        %s352 = sand.u32 %s209, 1
        %s353 = scalar_lea.sflag [#allocation5], %s352
        %s354 = sand.u32 %s209, 1
        %s355 = smul.addr %s354, 12
        %s356 = scalar_lea.vmem [#allocation4], %s355
        %p357 = pneg %p248
        %p358 = pneg %p245
        %s359 = sand.u32 %s235, 1
        %s360 = scalar_lea.sflag [#allocation7], %s359
        %s361 = sand.u32 %s235, 1
        %s362 = smul.addr %s361, 12
        %s363 = scalar_lea.vmem [#allocation6], %s362
        %p364 = pneg %p274
        %p365 = pneg %p271
        %p366 = scmp.lt.s32.totalorder %s28, 1
        %s367 = scalar_select %p366, %s28, 1
        %s368 = smul.addr %s367, 8
        %s369 = scalar_lea.vmem %s10, %s368
        %p370 = scmp.lt.s32.totalorder %s28, 1
        %s371 = scalar_select %p370, %s28, 1
        %s372 = smul.addr %s371, 8
        %s373 = smul.addr %s372, 8
        %s374 = scalar_lea.vmem %s0, %s373
        %p375 = scmp.lt.s32.totalorder %s28, 1
        %s376 = scalar_select %p375, %s28, 1
        %s377 = smul.addr %s376, 8
        %s378 = scalar_lea.vmem %s10, %s377
        %v380 = vld [vmem:[%s374] sm:$0xff]
        %v381 = vld [vmem:[%s374 + $0x8] sm:$0xff]
        %v382 = vld [vmem:[%s374 + $0x10] sm:$0xff]
        %v383 = vld [vmem:[%s374 + $0x18] sm:$0xff]
        %v384 = vld [vmem:[%s374 + $0x20] sm:$0xff]
        %v385 = vld [vmem:[%s374 + $0x28] sm:$0xff]
        %v386 = vld [vmem:[%s374 + $0x30] sm:$0xff]
        %v387 = vld [vmem:[%s374 + $0x38] sm:$0xff]
        %v388 = vld [vmem:[%s3] sm:$0xf]
        %v389 = vld [vmem:[%s4] sm:$0xf]
        %vm390 = vcmask 1041408
        %vm391 = vcmask 1043458
        %vm392 = vmor %vm391, %vm390
        %vm393 = vcmask 701444
        %vm394 = vmor %vm393, %vm392
        %395 = vst.msk [vmem:[#allocation2] sm:$0x3f] %vm394, 0
        %396 = vst.msk [vmem:[#allocation3] sm:$0x3f] %vm394, 0
        %398 = vset.pattern.permute.xlu0 0
        %399 = vperm.xlu0 %398, %v388
        %v400 = vpop.permute.xlu0 %399
        %v401 = vrot.slane %v400, 1
        %v402 = vrot.slane %v400, 2
        %v403 = vrot.slane %v400, 3
        %v408 = vmul.f32 %v380, %v400
        %v409 = vmul.f32 %v382, %v401
        %v410 = vmul.f32 %v384, %v402
        %v411 = vmul.f32 %v386, %v403
        %413 = vset.pattern.permute.xlu0 0
        %414 = vperm.xlu0 %413, %v389
        %v415 = vpop.permute.xlu0 %414
        %v416 = vrot.slane %v415, 1
        %v417 = vrot.slane %v415, 2
        %v418 = vrot.slane %v415, 3
        %v423 = vadd.f32 %v408, %v415
        %v424 = vadd.f32 %v409, %v416
        %v425 = vadd.f32 %v410, %v417
        %v426 = vadd.f32 %v411, %v418
        %v427 = vmax.f32 %v423, 0.0
        %v428 = vmax.f32 %v424, 0.0
        %v429 = vmax.f32 %v425, 0.0
        %v430 = vmax.f32 %v426, 0.0
        %v431 = vpack.c.bf16 %v427, %v427
        %v432 = vpack.c.bf16 %v428, %v428
        %v433 = vpack.c.bf16 %v429, %v429
        %v434 = vpack.c.bf16 %v430, %v430
        %v440 = vunpack.c.l.s4 1983009808
        %v441 = vunpack.c.0.s8 %v440
        %v442 = vlaneseq
        %v443 = vshrl.u32 %v442, 7
        %v444 = vsub.s32 %v441, %v443
        %v445 = vrot.slane %v431, %v444
        %v447 = vunpack.c.l.s4 1983009808
        %v448 = vunpack.c.0.s8 %v447
        %v449 = vlaneseq
        %v450 = vshrl.u32 %v449, 7
        %v451 = vsub.s32 %v448, %v450
        %v452 = vrot.slane %v432, %v451
        %v454 = vunpack.c.l.s4 1983009808
        %v455 = vunpack.c.0.s8 %v454
        %v456 = vlaneseq
        %v457 = vshrl.u32 %v456, 7
        %v458 = vsub.s32 %v455, %v457
        %v459 = vrot.slane %v433, %v458
        %v461 = vunpack.c.l.s4 1983009808
        %v462 = vunpack.c.0.s8 %v461
        %v463 = vlaneseq
        %v464 = vshrl.u32 %v463, 7
        %v465 = vsub.s32 %v462, %v464
        %v466 = vrot.slane %v434, %v465
        %v468 = vunpack.c.l.s4 1983009808
        %v469 = vunpack.c.0.s8 %v468
        %v470 = vlaneseq
        %v471 = vshrl.u32 %v470, 7
        %v472 = vsub.s32 %v469, %v471
        %v473 = vrot.slane %v445, %v472
        %v475 = vunpack.c.l.s4 1983009808
        %v476 = vunpack.c.0.s8 %v475
        %v477 = vlaneseq
        %v478 = vshrl.u32 %v477, 7
        %v479 = vsub.s32 %v476, %v478
        %v480 = vrot.slane %v452, %v479
        %v482 = vunpack.c.l.s4 1983009808
        %v483 = vunpack.c.0.s8 %v482
        %v484 = vlaneseq
        %v485 = vshrl.u32 %v484, 7
        %v486 = vsub.s32 %v483, %v485
        %v487 = vrot.slane %v459, %v486
        %v489 = vunpack.c.l.s4 1983009808
        %v490 = vunpack.c.0.s8 %v489
        %v491 = vlaneseq
        %v492 = vshrl.u32 %v491, 7
        %v493 = vsub.s32 %v490, %v492
        %v494 = vrot.slane %v466, %v493
        %v495 = vunpack.c.l.b16 %v473
        %v496 = vunpack.c.l.b16 %v480
        %v497 = vunpack.c.l.b16 %v487
        %v498 = vunpack.c.l.b16 %v494
        %v499 = vrot.slane %v496, 7
        %vm500 = vcmask 1041409
        %v501 = vsel %vm500, %v499, %v495
        %v502 = vrot.slane %v497, 6
        %vm503 = vcmask 1042434
        %v504 = vsel %vm503, %v502, %v501
        %v505 = vrot.slane %v498, 5
        %vm506 = vcmask 1043459
        %v507 = vsel %vm506, %v505, %v504
        %v508 = vpack.c.b16 %v507, %v507
        %v510 = vunpack.c.l.s4 1983009808
        %v511 = vunpack.c.0.s8 %v510
        %v512 = vlaneseq
        %v513 = vshrl.u32 %v512, 7
        %v514 = vsub.s32 %v511, %v513
        %v515 = vrot.slane %v508, %v514
        %516 = vrot.lane.b32.xlu0 %v515, 19
        %v517 = vpop.permute.xlu0 %516
        %vm519 = vcmask 279704
        %520 = vst.msk [vmem:[#allocation2] sm:$0x3] %vm519, %v517
        %v521 = vpack.c.bf16 %v380, %v380
        %v522 = vpack.c.bf16 %v382, %v382
        %v523 = vpack.c.bf16 %v384, %v384
        %v524 = vpack.c.bf16 %v386, %v386
        %v530 = vunpack.c.l.s4 1983009808
        %v531 = vunpack.c.0.s8 %v530
        %v532 = vlaneseq
        %v533 = vshrl.u32 %v532, 7
        %v534 = vsub.s32 %v531, %v533
        %v535 = vrot.slane %v521, %v534
        %v537 = vunpack.c.l.s4 1983009808
        %v538 = vunpack.c.0.s8 %v537
        %v539 = vlaneseq
        %v540 = vshrl.u32 %v539, 7
        %v541 = vsub.s32 %v538, %v540
        %v542 = vrot.slane %v522, %v541
        %v544 = vunpack.c.l.s4 1983009808
        %v545 = vunpack.c.0.s8 %v544
        %v546 = vlaneseq
        %v547 = vshrl.u32 %v546, 7
        %v548 = vsub.s32 %v545, %v547
        %v549 = vrot.slane %v523, %v548
        %v551 = vunpack.c.l.s4 1983009808
        %v552 = vunpack.c.0.s8 %v551
        %v553 = vlaneseq
        %v554 = vshrl.u32 %v553, 7
        %v555 = vsub.s32 %v552, %v554
        %v556 = vrot.slane %v524, %v555
        %v558 = vunpack.c.l.s4 1983009808
        %v559 = vunpack.c.0.s8 %v558
        %v560 = vlaneseq
        %v561 = vshrl.u32 %v560, 7
        %v562 = vsub.s32 %v559, %v561
        %v563 = vrot.slane %v535, %v562
        %v565 = vunpack.c.l.s4 1983009808
        %v566 = vunpack.c.0.s8 %v565
        %v567 = vlaneseq
        %v568 = vshrl.u32 %v567, 7
        %v569 = vsub.s32 %v566, %v568
        %v570 = vrot.slane %v542, %v569
        %v572 = vunpack.c.l.s4 1983009808
        %v573 = vunpack.c.0.s8 %v572
        %v574 = vlaneseq
        %v575 = vshrl.u32 %v574, 7
        %v576 = vsub.s32 %v573, %v575
        %v577 = vrot.slane %v549, %v576
        %v579 = vunpack.c.l.s4 1983009808
        %v580 = vunpack.c.0.s8 %v579
        %v581 = vlaneseq
        %v582 = vshrl.u32 %v581, 7
        %v583 = vsub.s32 %v580, %v582
        %v584 = vrot.slane %v556, %v583
        %v585 = vunpack.c.l.b16 %v563
        %v586 = vunpack.c.l.b16 %v570
        %v587 = vunpack.c.l.b16 %v577
        %v588 = vunpack.c.l.b16 %v584
        %v589 = vrot.slane %v586, 7
        %v590 = vsel %vm500, %v589, %v585
        %v591 = vrot.slane %v587, 6
        %v592 = vsel %vm503, %v591, %v590
        %v593 = vrot.slane %v588, 5
        %v594 = vsel %vm506, %v593, %v592
        %v595 = vpack.c.b16 %v594, %v594
        %v597 = vunpack.c.l.s4 1983009808
        %v598 = vunpack.c.0.s8 %v597
        %v599 = vlaneseq
        %v600 = vshrl.u32 %v599, 7
        %v601 = vsub.s32 %v598, %v600
        %v602 = vrot.slane %v595, %v601
        %603 = vrot.lane.b32.xlu0 %v602, 19
        %v604 = vpop.permute.xlu0 %603
        %606 = vst.msk [vmem:[#allocation3] sm:$0x3] %vm519, %v604
        %v607 = vrot.slane %v400, 7
        %v609 = vmul.f32 %v380, %v607
        %v610 = vmul.f32 %v382, %v400
        %v611 = vmul.f32 %v384, %v401
        %v612 = vmul.f32 %v386, %v402
        %v613 = vrot.slane %v415, 7
        %v615 = vadd.f32 %v609, %v613
        %v616 = vadd.f32 %v610, %v415
        %v617 = vadd.f32 %v611, %v416
        %v618 = vadd.f32 %v612, %v417
        %v619 = vmax.f32 %v615, 0.0
        %v620 = vmax.f32 %v616, 0.0
        %v621 = vmax.f32 %v617, 0.0
        %v622 = vmax.f32 %v618, 0.0
        %v623 = vpack.c.bf16 %v619, %v619
        %v624 = vpack.c.bf16 %v620, %v620
        %v625 = vpack.c.bf16 %v621, %v621
        %v626 = vpack.c.bf16 %v622, %v622
        %v632 = vunpack.c.l.s4 1983009808
        %v633 = vunpack.c.0.s8 %v632
        %v634 = vlaneseq
        %v635 = vshrl.u32 %v634, 7
        %v636 = vsub.s32 %v633, %v635
        %v637 = vrot.slane %v623, %v636
        %v639 = vunpack.c.l.s4 1983009808
        %v640 = vunpack.c.0.s8 %v639
        %v641 = vlaneseq
        %v642 = vshrl.u32 %v641, 7
        %v643 = vsub.s32 %v640, %v642
        %v644 = vrot.slane %v624, %v643
        %v646 = vunpack.c.l.s4 1983009808
        %v647 = vunpack.c.0.s8 %v646
        %v648 = vlaneseq
        %v649 = vshrl.u32 %v648, 7
        %v650 = vsub.s32 %v647, %v649
        %v651 = vrot.slane %v625, %v650
        %v653 = vunpack.c.l.s4 1983009808
        %v654 = vunpack.c.0.s8 %v653
        %v655 = vlaneseq
        %v656 = vshrl.u32 %v655, 7
        %v657 = vsub.s32 %v654, %v656
        %v658 = vrot.slane %v626, %v657
        %v660 = vunpack.c.l.s4 1983009808
        %v661 = vunpack.c.0.s8 %v660
        %v662 = vlaneseq
        %v663 = vshrl.u32 %v662, 7
        %v664 = vsub.s32 %v661, %v663
        %v665 = vrot.slane %v637, %v664
        %v667 = vunpack.c.l.s4 1983009808
        %v668 = vunpack.c.0.s8 %v667
        %v669 = vlaneseq
        %v670 = vshrl.u32 %v669, 7
        %v671 = vsub.s32 %v668, %v670
        %v672 = vrot.slane %v644, %v671
        %v674 = vunpack.c.l.s4 1983009808
        %v675 = vunpack.c.0.s8 %v674
        %v676 = vlaneseq
        %v677 = vshrl.u32 %v676, 7
        %v678 = vsub.s32 %v675, %v677
        %v679 = vrot.slane %v651, %v678
        %v681 = vunpack.c.l.s4 1983009808
        %v682 = vunpack.c.0.s8 %v681
        %v683 = vlaneseq
        %v684 = vshrl.u32 %v683, 7
        %v685 = vsub.s32 %v682, %v684
        %v686 = vrot.slane %v658, %v685
        %v687 = vunpack.c.l.b16 %v665
        %v688 = vunpack.c.l.b16 %v672
        %v689 = vunpack.c.l.b16 %v679
        %v690 = vunpack.c.l.b16 %v686
        %v691 = vrot.slane %v687, 1
        %v692 = vsel %vm500, %v688, %v691
        %v693 = vrot.slane %v689, 7
        %v694 = vsel %vm503, %v693, %v692
        %v695 = vrot.slane %v690, 6
        %v696 = vsel %vm506, %v695, %v694
        %v697 = vpack.c.b16 %v696, %v696
        %v699 = vunpack.c.l.s4 1983009808
        %v700 = vunpack.c.0.s8 %v699
        %v701 = vlaneseq
        %v702 = vshrl.u32 %v701, 7
        %v703 = vsub.s32 %v700, %v702
        %v704 = vrot.slane %v697, %v703
        %705 = vrot.lane.b32.xlu0 %v704, 37
        %v706 = vpop.permute.xlu0 %705
        %vm708 = vcmask 427304
        %709 = vst.msk [vmem:[#allocation2] sm:$0x3] %vm708, %v706
        %v710 = vrot.slane %v585, 1
        %v711 = vsel %vm500, %v586, %v710
        %v712 = vrot.slane %v587, 7
        %v713 = vsel %vm503, %v712, %v711
        %v714 = vrot.slane %v588, 6
        %v715 = vsel %vm506, %v714, %v713
        %v716 = vpack.c.b16 %v715, %v715
        %v718 = vunpack.c.l.s4 1983009808
        %v719 = vunpack.c.0.s8 %v718
        %v720 = vlaneseq
        %v721 = vshrl.u32 %v720, 7
        %v722 = vsub.s32 %v719, %v721
        %v723 = vrot.slane %v716, %v722
        %724 = vrot.lane.b32.xlu0 %v723, 37
        %v725 = vpop.permute.xlu0 %724
        %727 = vst.msk [vmem:[#allocation3] sm:$0x3] %vm708, %v725
        %v728 = vrot.slane %v400, 6
        %v730 = vmul.f32 %v380, %v728
        %v731 = vmul.f32 %v382, %v607
        %v732 = vmul.f32 %v384, %v400
        %v733 = vmul.f32 %v386, %v401
        %v734 = vrot.slane %v415, 6
        %v736 = vadd.f32 %v730, %v734
        %v737 = vadd.f32 %v731, %v613
        %v738 = vadd.f32 %v732, %v415
        %v739 = vadd.f32 %v733, %v416
        %v740 = vmax.f32 %v736, 0.0
        %v741 = vmax.f32 %v737, 0.0
        %v742 = vmax.f32 %v738, 0.0
        %v743 = vmax.f32 %v739, 0.0
        %v744 = vpack.c.bf16 %v740, %v740
        %v745 = vpack.c.bf16 %v741, %v741
        %v746 = vpack.c.bf16 %v742, %v742
        %v747 = vpack.c.bf16 %v743, %v743
        %v753 = vunpack.c.l.s4 1983009808
        %v754 = vunpack.c.0.s8 %v753
        %v755 = vlaneseq
        %v756 = vshrl.u32 %v755, 7
        %v757 = vsub.s32 %v754, %v756
        %v758 = vrot.slane %v744, %v757
        %v760 = vunpack.c.l.s4 1983009808
        %v761 = vunpack.c.0.s8 %v760
        %v762 = vlaneseq
        %v763 = vshrl.u32 %v762, 7
        %v764 = vsub.s32 %v761, %v763
        %v765 = vrot.slane %v745, %v764
        %v767 = vunpack.c.l.s4 1983009808
        %v768 = vunpack.c.0.s8 %v767
        %v769 = vlaneseq
        %v770 = vshrl.u32 %v769, 7
        %v771 = vsub.s32 %v768, %v770
        %v772 = vrot.slane %v746, %v771
        %v774 = vunpack.c.l.s4 1983009808
        %v775 = vunpack.c.0.s8 %v774
        %v776 = vlaneseq
        %v777 = vshrl.u32 %v776, 7
        %v778 = vsub.s32 %v775, %v777
        %v779 = vrot.slane %v747, %v778
        %v781 = vunpack.c.l.s4 1983009808
        %v782 = vunpack.c.0.s8 %v781
        %v783 = vlaneseq
        %v784 = vshrl.u32 %v783, 7
        %v785 = vsub.s32 %v782, %v784
        %v786 = vrot.slane %v758, %v785
        %v788 = vunpack.c.l.s4 1983009808
        %v789 = vunpack.c.0.s8 %v788
        %v790 = vlaneseq
        %v791 = vshrl.u32 %v790, 7
        %v792 = vsub.s32 %v789, %v791
        %v793 = vrot.slane %v765, %v792
        %v795 = vunpack.c.l.s4 1983009808
        %v796 = vunpack.c.0.s8 %v795
        %v797 = vlaneseq
        %v798 = vshrl.u32 %v797, 7
        %v799 = vsub.s32 %v796, %v798
        %v800 = vrot.slane %v772, %v799
        %v802 = vunpack.c.l.s4 1983009808
        %v803 = vunpack.c.0.s8 %v802
        %v804 = vlaneseq
        %v805 = vshrl.u32 %v804, 7
        %v806 = vsub.s32 %v803, %v805
        %v807 = vrot.slane %v779, %v806
        %v808 = vunpack.c.l.b16 %v786
        %v809 = vunpack.c.l.b16 %v793
        %v810 = vunpack.c.l.b16 %v800
        %v811 = vunpack.c.l.b16 %v807
        %v812 = vrot.slane %v808, 2
        %v813 = vrot.slane %v809, 1
        %v814 = vsel %vm500, %v813, %v812
        %v815 = vsel %vm503, %v810, %v814
        %v816 = vrot.slane %v811, 7
        %v817 = vsel %vm506, %v816, %v815
        %v818 = vpack.c.b16 %v817, %v817
        %v820 = vunpack.c.l.s4 1983009808
        %v821 = vunpack.c.0.s8 %v820
        %v822 = vlaneseq
        %v823 = vshrl.u32 %v822, 7
        %v824 = vsub.s32 %v821, %v823
        %v825 = vrot.slane %v818, %v824
        %826 = vrot.lane.b32.xlu0 %v825, 55
        %v827 = vpop.permute.xlu0 %826
        %vm829 = vcmask 574904
        %830 = vst.msk [vmem:[#allocation2] sm:$0x3] %vm829, %v827
        %v831 = vrot.slane %v585, 2
        %v832 = vrot.slane %v586, 1
        %v833 = vsel %vm500, %v832, %v831
        %v834 = vsel %vm503, %v587, %v833
        %v835 = vrot.slane %v588, 7
        %v836 = vsel %vm506, %v835, %v834
        %v837 = vpack.c.b16 %v836, %v836
        %v839 = vunpack.c.l.s4 1983009808
        %v840 = vunpack.c.0.s8 %v839
        %v841 = vlaneseq
        %v842 = vshrl.u32 %v841, 7
        %v843 = vsub.s32 %v840, %v842
        %v844 = vrot.slane %v837, %v843
        %845 = vrot.lane.b32.xlu0 %v844, 55
        %v846 = vpop.permute.xlu0 %845
        %848 = vst.msk [vmem:[#allocation3] sm:$0x3] %vm829, %v846
        %v849 = vrot.slane %v400, 5
        %v851 = vmul.f32 %v380, %v849
        %v852 = vmul.f32 %v382, %v728
        %v853 = vmul.f32 %v384, %v607
        %v854 = vmul.f32 %v386, %v400
        %v855 = vrot.slane %v415, 5
        %v857 = vadd.f32 %v851, %v855
        %v858 = vadd.f32 %v852, %v734
        %v859 = vadd.f32 %v853, %v613
        %v860 = vadd.f32 %v854, %v415
        %v861 = vmax.f32 %v857, 0.0
        %v862 = vmax.f32 %v858, 0.0
        %v863 = vmax.f32 %v859, 0.0
        %v864 = vmax.f32 %v860, 0.0
        %v865 = vpack.c.bf16 %v861, %v861
        %v866 = vpack.c.bf16 %v862, %v862
        %v867 = vpack.c.bf16 %v863, %v863
        %v868 = vpack.c.bf16 %v864, %v864
        %v874 = vunpack.c.l.s4 1983009808
        %v875 = vunpack.c.0.s8 %v874
        %v876 = vlaneseq
        %v877 = vshrl.u32 %v876, 7
        %v878 = vsub.s32 %v875, %v877
        %v879 = vrot.slane %v865, %v878
        %v881 = vunpack.c.l.s4 1983009808
        %v882 = vunpack.c.0.s8 %v881
        %v883 = vlaneseq
        %v884 = vshrl.u32 %v883, 7
        %v885 = vsub.s32 %v882, %v884
        %v886 = vrot.slane %v866, %v885
        %v888 = vunpack.c.l.s4 1983009808
        %v889 = vunpack.c.0.s8 %v888
        %v890 = vlaneseq
        %v891 = vshrl.u32 %v890, 7
        %v892 = vsub.s32 %v889, %v891
        %v893 = vrot.slane %v867, %v892
        %v895 = vunpack.c.l.s4 1983009808
        %v896 = vunpack.c.0.s8 %v895
        %v897 = vlaneseq
        %v898 = vshrl.u32 %v897, 7
        %v899 = vsub.s32 %v896, %v898
        %v900 = vrot.slane %v868, %v899
        %v902 = vunpack.c.l.s4 1983009808
        %v903 = vunpack.c.0.s8 %v902
        %v904 = vlaneseq
        %v905 = vshrl.u32 %v904, 7
        %v906 = vsub.s32 %v903, %v905
        %v907 = vrot.slane %v879, %v906
        %v909 = vunpack.c.l.s4 1983009808
        %v910 = vunpack.c.0.s8 %v909
        %v911 = vlaneseq
        %v912 = vshrl.u32 %v911, 7
        %v913 = vsub.s32 %v910, %v912
        %v914 = vrot.slane %v886, %v913
        %v916 = vunpack.c.l.s4 1983009808
        %v917 = vunpack.c.0.s8 %v916
        %v918 = vlaneseq
        %v919 = vshrl.u32 %v918, 7
        %v920 = vsub.s32 %v917, %v919
        %v921 = vrot.slane %v893, %v920
        %v923 = vunpack.c.l.s4 1983009808
        %v924 = vunpack.c.0.s8 %v923
        %v925 = vlaneseq
        %v926 = vshrl.u32 %v925, 7
        %v927 = vsub.s32 %v924, %v926
        %v928 = vrot.slane %v900, %v927
        %v929 = vunpack.c.l.b16 %v907
        %v930 = vunpack.c.l.b16 %v914
        %v931 = vunpack.c.l.b16 %v921
        %v932 = vunpack.c.l.b16 %v928
        %v933 = vrot.slane %v929, 3
        %v934 = vrot.slane %v930, 2
        %v935 = vsel %vm500, %v934, %v933
        %v936 = vrot.slane %v931, 1
        %v937 = vsel %vm503, %v936, %v935
        %v938 = vsel %vm506, %v932, %v937
        %v939 = vpack.c.b16 %v938, %v938
        %v941 = vunpack.c.l.s4 1983009808
        %v942 = vunpack.c.0.s8 %v941
        %v943 = vlaneseq
        %v944 = vshrl.u32 %v943, 7
        %v945 = vsub.s32 %v942, %v944
        %v946 = vrot.slane %v939, %v945
        %947 = vrot.lane.b32.xlu0 %v946, 73
        %v948 = vpop.permute.xlu0 %947
        %vm950 = vcmask 722504
        %951 = vst.msk [vmem:[#allocation2] sm:$0x3] %vm950, %v948
        %v952 = vrot.slane %v585, 3
        %v953 = vrot.slane %v586, 2
        %v954 = vsel %vm500, %v953, %v952
        %v955 = vrot.slane %v587, 1
        %v956 = vsel %vm503, %v955, %v954
        %v957 = vsel %vm506, %v588, %v956
        %v958 = vpack.c.b16 %v957, %v957
        %v960 = vunpack.c.l.s4 1983009808
        %v961 = vunpack.c.0.s8 %v960
        %v962 = vlaneseq
        %v963 = vshrl.u32 %v962, 7
        %v964 = vsub.s32 %v961, %v963
        %v965 = vrot.slane %v958, %v964
        %966 = vrot.lane.b32.xlu0 %v965, 73
        %v967 = vpop.permute.xlu0 %966
        %969 = vst.msk [vmem:[#allocation3] sm:$0x3] %vm950, %v967
        %v970 = vrot.slane %v400, 4
        %v972 = vmul.f32 %v380, %v970
        %v973 = vmul.f32 %v382, %v849
        %v974 = vmul.f32 %v384, %v728
        %v975 = vmul.f32 %v386, %v607
        %v976 = vrot.slane %v415, 4
        %v978 = vadd.f32 %v972, %v976
        %v979 = vadd.f32 %v973, %v855
        %v980 = vadd.f32 %v974, %v734
        %v981 = vadd.f32 %v975, %v613
        %v982 = vmax.f32 %v978, 0.0
        %v983 = vmax.f32 %v979, 0.0
        %v984 = vmax.f32 %v980, 0.0
        %v985 = vmax.f32 %v981, 0.0
        %v986 = vpack.c.bf16 %v982, %v982
        %v987 = vpack.c.bf16 %v983, %v983
        %v988 = vpack.c.bf16 %v984, %v984
        %v989 = vpack.c.bf16 %v985, %v985
        %v995 = vunpack.c.l.s4 1983009808
        %v996 = vunpack.c.0.s8 %v995
        %v997 = vlaneseq
        %v998 = vshrl.u32 %v997, 7
        %v999 = vsub.s32 %v996, %v998
        %v1000 = vrot.slane %v986, %v999
        %v1001 = vcombine.high %v1000, %v1000
        %v1003 = vunpack.c.l.s4 1983009808
        %v1004 = vunpack.c.0.s8 %v1003
        %v1005 = vlaneseq
        %v1006 = vshrl.u32 %v1005, 7
        %v1007 = vsub.s32 %v1004, %v1006
        %v1008 = vrot.slane %v987, %v1007
        %v1009 = vcombine.high %v1008, %v1008
        %v1011 = vunpack.c.l.s4 1983009808
        %v1012 = vunpack.c.0.s8 %v1011
        %v1013 = vlaneseq
        %v1014 = vshrl.u32 %v1013, 7
        %v1015 = vsub.s32 %v1012, %v1014
        %v1016 = vrot.slane %v988, %v1015
        %v1017 = vcombine.high %v1016, %v1016
        %v1019 = vunpack.c.l.s4 1983009808
        %v1020 = vunpack.c.0.s8 %v1019
        %v1021 = vlaneseq
        %v1022 = vshrl.u32 %v1021, 7
        %v1023 = vsub.s32 %v1020, %v1022
        %v1024 = vrot.slane %v989, %v1023
        %v1025 = vcombine.high %v1024, %v1024
        %v1027 = vunpack.c.l.s4 1983009808
        %v1028 = vunpack.c.0.s8 %v1027
        %v1029 = vlaneseq
        %v1030 = vshrl.u32 %v1029, 7
        %v1031 = vsub.s32 %v1028, %v1030
        %v1032 = vrot.slane %v1001, %v1031
        %v1034 = vunpack.c.l.s4 1983009808
        %v1035 = vunpack.c.0.s8 %v1034
        %v1036 = vlaneseq
        %v1037 = vshrl.u32 %v1036, 7
        %v1038 = vsub.s32 %v1035, %v1037
        %v1039 = vrot.slane %v1009, %v1038
        %v1041 = vunpack.c.l.s4 1983009808
        %v1042 = vunpack.c.0.s8 %v1041
        %v1043 = vlaneseq
        %v1044 = vshrl.u32 %v1043, 7
        %v1045 = vsub.s32 %v1042, %v1044
        %v1046 = vrot.slane %v1017, %v1045
        %v1048 = vunpack.c.l.s4 1983009808
        %v1049 = vunpack.c.0.s8 %v1048
        %v1050 = vlaneseq
        %v1051 = vshrl.u32 %v1050, 7
        %v1052 = vsub.s32 %v1049, %v1051
        %v1053 = vrot.slane %v1025, %v1052
        %v1054 = vunpack.c.l.b16 %v1032
        %v1055 = vunpack.c.l.b16 %v1039
        %v1056 = vunpack.c.l.b16 %v1046
        %v1057 = vunpack.c.l.b16 %v1053
        %v1058 = vrot.slane %v1055, 7
        %v1059 = vsel %vm500, %v1058, %v1054
        %v1060 = vrot.slane %v1056, 6
        %v1061 = vsel %vm503, %v1060, %v1059
        %v1062 = vrot.slane %v1057, 5
        %v1063 = vsel %vm506, %v1062, %v1061
        %v1064 = vpack.c.b16 %v1063, %v1063
        %v1066 = vunpack.c.l.s4 1983009808
        %v1067 = vunpack.c.0.s8 %v1066
        %v1068 = vlaneseq
        %v1069 = vshrl.u32 %v1068, 7
        %v1070 = vsub.s32 %v1067, %v1069
        %v1071 = vrot.slane %v1064, %v1070
        %1072 = vrot.lane.b32.xlu0 %v1071, 91
        %v1073 = vpop.permute.xlu0 %1072
        %vm1075 = vcmask 870104
        %1076 = vst.msk [vmem:[#allocation2] sm:$0x3] %vm1075, %v1073
        %v1077 = vcombine.high %v535, %v535
        %v1078 = vcombine.high %v542, %v542
        %v1079 = vcombine.high %v549, %v549
        %v1080 = vcombine.high %v556, %v556
        %v1082 = vunpack.c.l.s4 1983009808
        %v1083 = vunpack.c.0.s8 %v1082
        %v1084 = vlaneseq
        %v1085 = vshrl.u32 %v1084, 7
        %v1086 = vsub.s32 %v1083, %v1085
        %v1087 = vrot.slane %v1077, %v1086
        %v1089 = vunpack.c.l.s4 1983009808
        %v1090 = vunpack.c.0.s8 %v1089
        %v1091 = vlaneseq
        %v1092 = vshrl.u32 %v1091, 7
        %v1093 = vsub.s32 %v1090, %v1092
        %v1094 = vrot.slane %v1078, %v1093
        %v1096 = vunpack.c.l.s4 1983009808
        %v1097 = vunpack.c.0.s8 %v1096
        %v1098 = vlaneseq
        %v1099 = vshrl.u32 %v1098, 7
        %v1100 = vsub.s32 %v1097, %v1099
        %v1101 = vrot.slane %v1079, %v1100
        %v1103 = vunpack.c.l.s4 1983009808
        %v1104 = vunpack.c.0.s8 %v1103
        %v1105 = vlaneseq
        %v1106 = vshrl.u32 %v1105, 7
        %v1107 = vsub.s32 %v1104, %v1106
        %v1108 = vrot.slane %v1080, %v1107
        %v1109 = vunpack.c.l.b16 %v1087
        %v1110 = vunpack.c.l.b16 %v1094
        %v1111 = vunpack.c.l.b16 %v1101
        %v1112 = vunpack.c.l.b16 %v1108
        %v1113 = vrot.slane %v1110, 7
        %v1114 = vsel %vm500, %v1113, %v1109
        %v1115 = vrot.slane %v1111, 6
        %v1116 = vsel %vm503, %v1115, %v1114
        %v1117 = vrot.slane %v1112, 5
        %v1118 = vsel %vm506, %v1117, %v1116
        %v1119 = vpack.c.b16 %v1118, %v1118
        %v1121 = vunpack.c.l.s4 1983009808
        %v1122 = vunpack.c.0.s8 %v1121
        %v1123 = vlaneseq
        %v1124 = vshrl.u32 %v1123, 7
        %v1125 = vsub.s32 %v1122, %v1124
        %v1126 = vrot.slane %v1119, %v1125
        %1127 = vrot.lane.b32.xlu0 %v1126, 91
        %v1128 = vpop.permute.xlu0 %1127
        %1130 = vst.msk [vmem:[#allocation3] sm:$0x3] %vm1075, %v1128
        %v1131 = vmul.f32 %v380, %v403
        %v1132 = vmul.f32 %v382, %v970
        %v1133 = vmul.f32 %v384, %v849
        %v1134 = vmul.f32 %v386, %v728
        %v1135 = vadd.f32 %v1131, %v418
        %v1136 = vadd.f32 %v1132, %v976
        %v1137 = vadd.f32 %v1133, %v855
        %v1138 = vadd.f32 %v1134, %v734
        %v1139 = vmax.f32 %v1135, 0.0
        %v1140 = vmax.f32 %v1136, 0.0
        %v1141 = vmax.f32 %v1137, 0.0
        %v1142 = vmax.f32 %v1138, 0.0
        %v1143 = vpack.c.bf16 %v1139, %v1139
        %v1144 = vpack.c.bf16 %v1140, %v1140
        %v1145 = vpack.c.bf16 %v1141, %v1141
        %v1146 = vpack.c.bf16 %v1142, %v1142
        %v1152 = vunpack.c.l.s4 1983009808
        %v1153 = vunpack.c.0.s8 %v1152
        %v1154 = vlaneseq
        %v1155 = vshrl.u32 %v1154, 7
        %v1156 = vsub.s32 %v1153, %v1155
        %v1157 = vrot.slane %v1143, %v1156
        %v1158 = vcombine.high %v1157, %v1157
        %v1160 = vunpack.c.l.s4 1983009808
        %v1161 = vunpack.c.0.s8 %v1160
        %v1162 = vlaneseq
        %v1163 = vshrl.u32 %v1162, 7
        %v1164 = vsub.s32 %v1161, %v1163
        %v1165 = vrot.slane %v1144, %v1164
        %v1166 = vcombine.high %v1165, %v1165
        %v1168 = vunpack.c.l.s4 1983009808
        %v1169 = vunpack.c.0.s8 %v1168
        %v1170 = vlaneseq
        %v1171 = vshrl.u32 %v1170, 7
        %v1172 = vsub.s32 %v1169, %v1171
        %v1173 = vrot.slane %v1145, %v1172
        %v1174 = vcombine.high %v1173, %v1173
        %v1176 = vunpack.c.l.s4 1983009808
        %v1177 = vunpack.c.0.s8 %v1176
        %v1178 = vlaneseq
        %v1179 = vshrl.u32 %v1178, 7
        %v1180 = vsub.s32 %v1177, %v1179
        %v1181 = vrot.slane %v1146, %v1180
        %v1182 = vcombine.high %v1181, %v1181
        %v1184 = vunpack.c.l.s4 1983009808
        %v1185 = vunpack.c.0.s8 %v1184
        %v1186 = vlaneseq
        %v1187 = vshrl.u32 %v1186, 7
        %v1188 = vsub.s32 %v1185, %v1187
        %v1189 = vrot.slane %v1158, %v1188
        %v1191 = vunpack.c.l.s4 1983009808
        %v1192 = vunpack.c.0.s8 %v1191
        %v1193 = vlaneseq
        %v1194 = vshrl.u32 %v1193, 7
        %v1195 = vsub.s32 %v1192, %v1194
        %v1196 = vrot.slane %v1166, %v1195
        %v1198 = vunpack.c.l.s4 1983009808
        %v1199 = vunpack.c.0.s8 %v1198
        %v1200 = vlaneseq
        %v1201 = vshrl.u32 %v1200, 7
        %v1202 = vsub.s32 %v1199, %v1201
        %v1203 = vrot.slane %v1174, %v1202
        %v1205 = vunpack.c.l.s4 1983009808
        %v1206 = vunpack.c.0.s8 %v1205
        %v1207 = vlaneseq
        %v1208 = vshrl.u32 %v1207, 7
        %v1209 = vsub.s32 %v1206, %v1208
        %v1210 = vrot.slane %v1182, %v1209
        %v1211 = vunpack.c.l.b16 %v1189
        %v1212 = vunpack.c.l.b16 %v1196
        %v1213 = vunpack.c.l.b16 %v1203
        %v1214 = vunpack.c.l.b16 %v1210
        %v1215 = vrot.slane %v1211, 1
        %v1216 = vsel %vm500, %v1212, %v1215
        %v1217 = vrot.slane %v1213, 7
        %v1218 = vsel %vm503, %v1217, %v1216
        %v1219 = vrot.slane %v1214, 6
        %v1220 = vsel %vm506, %v1219, %v1218
        %v1221 = vpack.c.b16 %v1220, %v1220
        %v1223 = vunpack.c.l.s4 1983009808
        %v1224 = vunpack.c.0.s8 %v1223
        %v1225 = vlaneseq
        %v1226 = vshrl.u32 %v1225, 7
        %v1227 = vsub.s32 %v1224, %v1226
        %v1228 = vrot.slane %v1221, %v1227
        %1229 = vrot.lane.b32.xlu0 %v1228, 109
        %v1230 = vpop.permute.xlu0 %1229
        %vm1232 = vcmask 1017704
        %1233 = vst.msk [vmem:[#allocation2] sm:$0x3] %vm1232, %v1230
        %v1234 = vrot.slane %v1109, 1
        %v1235 = vsel %vm500, %v1110, %v1234
        %v1236 = vrot.slane %v1111, 7
        %v1237 = vsel %vm503, %v1236, %v1235
        %v1238 = vrot.slane %v1112, 6
        %v1239 = vsel %vm506, %v1238, %v1237
        %v1240 = vpack.c.b16 %v1239, %v1239
        %v1242 = vunpack.c.l.s4 1983009808
        %v1243 = vunpack.c.0.s8 %v1242
        %v1244 = vlaneseq
        %v1245 = vshrl.u32 %v1244, 7
        %v1246 = vsub.s32 %v1243, %v1245
        %v1247 = vrot.slane %v1240, %v1246
        %1248 = vrot.lane.b32.xlu0 %v1247, 109
        %v1249 = vpop.permute.xlu0 %1248
        %1251 = vst.msk [vmem:[#allocation3] sm:$0x3] %vm1232, %v1249
        %v1252 = vmul.f32 %v380, %v402
        %v1253 = vmul.f32 %v382, %v403
        %v1254 = vmul.f32 %v384, %v970
        %v1255 = vmul.f32 %v386, %v849
        %v1256 = vadd.f32 %v1252, %v417
        %v1257 = vadd.f32 %v1253, %v418
        %v1258 = vadd.f32 %v1254, %v976
        %v1259 = vadd.f32 %v1255, %v855
        %v1260 = vmax.f32 %v1256, 0.0
        %v1261 = vmax.f32 %v1257, 0.0
        %v1262 = vmax.f32 %v1258, 0.0
        %v1263 = vmax.f32 %v1259, 0.0
        %v1264 = vpack.c.bf16 %v1260, %v1260
        %v1265 = vpack.c.bf16 %v1261, %v1261
        %v1266 = vpack.c.bf16 %v1262, %v1262
        %v1267 = vpack.c.bf16 %v1263, %v1263
        %v1273 = vunpack.c.l.s4 1983009808
        %v1274 = vunpack.c.0.s8 %v1273
        %v1275 = vlaneseq
        %v1276 = vshrl.u32 %v1275, 7
        %v1277 = vsub.s32 %v1274, %v1276
        %v1278 = vrot.slane %v1264, %v1277
        %v1279 = vcombine.high %v1278, %v1278
        %v1281 = vunpack.c.l.s4 1983009808
        %v1282 = vunpack.c.0.s8 %v1281
        %v1283 = vlaneseq
        %v1284 = vshrl.u32 %v1283, 7
        %v1285 = vsub.s32 %v1282, %v1284
        %v1286 = vrot.slane %v1265, %v1285
        %v1287 = vcombine.high %v1286, %v1286
        %v1289 = vunpack.c.l.s4 1983009808
        %v1290 = vunpack.c.0.s8 %v1289
        %v1291 = vlaneseq
        %v1292 = vshrl.u32 %v1291, 7
        %v1293 = vsub.s32 %v1290, %v1292
        %v1294 = vrot.slane %v1266, %v1293
        %v1295 = vcombine.high %v1294, %v1294
        %v1297 = vunpack.c.l.s4 1983009808
        %v1298 = vunpack.c.0.s8 %v1297
        %v1299 = vlaneseq
        %v1300 = vshrl.u32 %v1299, 7
        %v1301 = vsub.s32 %v1298, %v1300
        %v1302 = vrot.slane %v1267, %v1301
        %v1303 = vcombine.high %v1302, %v1302
        %v1305 = vunpack.c.l.s4 1983009808
        %v1306 = vunpack.c.0.s8 %v1305
        %v1307 = vlaneseq
        %v1308 = vshrl.u32 %v1307, 7
        %v1309 = vsub.s32 %v1306, %v1308
        %v1310 = vrot.slane %v1279, %v1309
        %v1312 = vunpack.c.l.s4 1983009808
        %v1313 = vunpack.c.0.s8 %v1312
        %v1314 = vlaneseq
        %v1315 = vshrl.u32 %v1314, 7
        %v1316 = vsub.s32 %v1313, %v1315
        %v1317 = vrot.slane %v1287, %v1316
        %v1319 = vunpack.c.l.s4 1983009808
        %v1320 = vunpack.c.0.s8 %v1319
        %v1321 = vlaneseq
        %v1322 = vshrl.u32 %v1321, 7
        %v1323 = vsub.s32 %v1320, %v1322
        %v1324 = vrot.slane %v1295, %v1323
        %v1326 = vunpack.c.l.s4 1983009808
        %v1327 = vunpack.c.0.s8 %v1326
        %v1328 = vlaneseq
        %v1329 = vshrl.u32 %v1328, 7
        %v1330 = vsub.s32 %v1327, %v1329
        %v1331 = vrot.slane %v1303, %v1330
        %v1332 = vunpack.c.l.b16 %v1310
        %v1333 = vunpack.c.l.b16 %v1317
        %v1334 = vunpack.c.l.b16 %v1324
        %v1335 = vunpack.c.l.b16 %v1331
        %v1336 = vrot.slane %v1332, 2
        %v1337 = vrot.slane %v1333, 1
        %v1338 = vsel %vm500, %v1337, %v1336
        %v1339 = vsel %vm503, %v1334, %v1338
        %v1340 = vrot.slane %v1335, 7
        %v1341 = vsel %vm506, %v1340, %v1339
        %v1342 = vpack.c.b16 %v1341, %v1341
        %v1344 = vunpack.c.l.s4 1983009808
        %v1345 = vunpack.c.0.s8 %v1344
        %v1346 = vlaneseq
        %v1347 = vshrl.u32 %v1346, 7
        %v1348 = vsub.s32 %v1345, %v1347
        %v1349 = vrot.slane %v1342, %v1348
        %1350 = vrot.lane.b32.xlu0 %v1349, 127
        %v1351 = vpop.permute.xlu0 %1350
        %v1352 = vrot.slane %v1351, 6
        %vm1353 = vcmask 1039360
        %v1354 = vsel %vm1353, %v1352, %v1351
        %vm1356 = vcmask 1042424
        %vm1357 = vcmask 117762
        %vm1358 = vmor %vm1357, %vm1356
        %1359 = vst.msk [vmem:[#allocation2] sm:$0xf] %vm1358, %v1354
        %v1360 = vrot.slane %v1109, 2
        %v1361 = vrot.slane %v1110, 1
        %v1362 = vsel %vm500, %v1361, %v1360
        %v1363 = vsel %vm503, %v1111, %v1362
        %v1364 = vrot.slane %v1112, 7
        %v1365 = vsel %vm506, %v1364, %v1363
        %v1366 = vpack.c.b16 %v1365, %v1365
        %v1368 = vunpack.c.l.s4 1983009808
        %v1369 = vunpack.c.0.s8 %v1368
        %v1370 = vlaneseq
        %v1371 = vshrl.u32 %v1370, 7
        %v1372 = vsub.s32 %v1369, %v1371
        %v1373 = vrot.slane %v1366, %v1372
        %1374 = vrot.lane.b32.xlu0 %v1373, 127
        %v1375 = vpop.permute.xlu0 %1374
        %v1376 = vrot.slane %v1375, 6
        %v1377 = vsel %vm1353, %v1376, %v1375
        %1379 = vst.msk [vmem:[#allocation3] sm:$0xf] %vm1358, %v1377
        %v1380 = vmul.f32 %v380, %v401
        %v1381 = vmul.f32 %v382, %v402
        %v1382 = vmul.f32 %v384, %v403
        %v1383 = vmul.f32 %v386, %v970
        %v1384 = vadd.f32 %v1380, %v416
        %v1385 = vadd.f32 %v1381, %v417
        %v1386 = vadd.f32 %v1382, %v418
        %v1387 = vadd.f32 %v1383, %v976
        %v1388 = vmax.f32 %v1384, 0.0
        %v1389 = vmax.f32 %v1385, 0.0
        %v1390 = vmax.f32 %v1386, 0.0
        %v1391 = vmax.f32 %v1387, 0.0
        %v1392 = vpack.c.bf16 %v1388, %v1388
        %v1393 = vpack.c.bf16 %v1389, %v1389
        %v1394 = vpack.c.bf16 %v1390, %v1390
        %v1395 = vpack.c.bf16 %v1391, %v1391
        %v1401 = vunpack.c.l.s4 1983009808
        %v1402 = vunpack.c.0.s8 %v1401
        %v1403 = vlaneseq
        %v1404 = vshrl.u32 %v1403, 7
        %v1405 = vsub.s32 %v1402, %v1404
        %v1406 = vrot.slane %v1392, %v1405
        %v1407 = vcombine.high %v1406, %v1406
        %v1409 = vunpack.c.l.s4 1983009808
        %v1410 = vunpack.c.0.s8 %v1409
        %v1411 = vlaneseq
        %v1412 = vshrl.u32 %v1411, 7
        %v1413 = vsub.s32 %v1410, %v1412
        %v1414 = vrot.slane %v1393, %v1413
        %v1415 = vcombine.high %v1414, %v1414
        %v1417 = vunpack.c.l.s4 1983009808
        %v1418 = vunpack.c.0.s8 %v1417
        %v1419 = vlaneseq
        %v1420 = vshrl.u32 %v1419, 7
        %v1421 = vsub.s32 %v1418, %v1420
        %v1422 = vrot.slane %v1394, %v1421
        %v1423 = vcombine.high %v1422, %v1422
        %v1425 = vunpack.c.l.s4 1983009808
        %v1426 = vunpack.c.0.s8 %v1425
        %v1427 = vlaneseq
        %v1428 = vshrl.u32 %v1427, 7
        %v1429 = vsub.s32 %v1426, %v1428
        %v1430 = vrot.slane %v1395, %v1429
        %v1431 = vcombine.high %v1430, %v1430
        %v1433 = vunpack.c.l.s4 1983009808
        %v1434 = vunpack.c.0.s8 %v1433
        %v1435 = vlaneseq
        %v1436 = vshrl.u32 %v1435, 7
        %v1437 = vsub.s32 %v1434, %v1436
        %v1438 = vrot.slane %v1407, %v1437
        %v1440 = vunpack.c.l.s4 1983009808
        %v1441 = vunpack.c.0.s8 %v1440
        %v1442 = vlaneseq
        %v1443 = vshrl.u32 %v1442, 7
        %v1444 = vsub.s32 %v1441, %v1443
        %v1445 = vrot.slane %v1415, %v1444
        %v1447 = vunpack.c.l.s4 1983009808
        %v1448 = vunpack.c.0.s8 %v1447
        %v1449 = vlaneseq
        %v1450 = vshrl.u32 %v1449, 7
        %v1451 = vsub.s32 %v1448, %v1450
        %v1452 = vrot.slane %v1423, %v1451
        %v1454 = vunpack.c.l.s4 1983009808
        %v1455 = vunpack.c.0.s8 %v1454
        %v1456 = vlaneseq
        %v1457 = vshrl.u32 %v1456, 7
        %v1458 = vsub.s32 %v1455, %v1457
        %v1459 = vrot.slane %v1431, %v1458
        %v1460 = vunpack.c.l.b16 %v1438
        %v1461 = vunpack.c.l.b16 %v1445
        %v1462 = vunpack.c.l.b16 %v1452
        %v1463 = vunpack.c.l.b16 %v1459
        %v1464 = vrot.slane %v1460, 3
        %v1465 = vrot.slane %v1461, 2
        %v1466 = vsel %vm500, %v1465, %v1464
        %v1467 = vrot.slane %v1462, 1
        %v1468 = vsel %vm503, %v1467, %v1466
        %v1469 = vsel %vm506, %v1463, %v1468
        %v1470 = vpack.c.b16 %v1469, %v1469
        %v1472 = vunpack.c.l.s4 1983009808
        %v1473 = vunpack.c.0.s8 %v1472
        %v1474 = vlaneseq
        %v1475 = vshrl.u32 %v1474, 7
        %v1476 = vsub.s32 %v1473, %v1475
        %v1477 = vrot.slane %v1470, %v1476
        %1478 = vrot.lane.b32.xlu0 %v1477, 17
        %v1479 = vpop.permute.xlu0 %1478
        %vm1481 = vcmask 263304
        %1482 = vst.msk [vmem:[#allocation2 + $0x2] sm:$0x3] %vm1481, %v1479
        %v1483 = vrot.slane %v1109, 3
        %v1484 = vrot.slane %v1110, 2
        %v1485 = vsel %vm500, %v1484, %v1483
        %v1486 = vrot.slane %v1111, 1
        %v1487 = vsel %vm503, %v1486, %v1485
        %v1488 = vsel %vm506, %v1112, %v1487
        %v1489 = vpack.c.b16 %v1488, %v1488
        %v1491 = vunpack.c.l.s4 1983009808
        %v1492 = vunpack.c.0.s8 %v1491
        %v1493 = vlaneseq
        %v1494 = vshrl.u32 %v1493, 7
        %v1495 = vsub.s32 %v1492, %v1494
        %v1496 = vrot.slane %v1489, %v1495
        %1497 = vrot.lane.b32.xlu0 %v1496, 17
        %v1498 = vpop.permute.xlu0 %1497
        %1500 = vst.msk [vmem:[#allocation3 + $0x2] sm:$0x3] %vm1481, %v1498
        %v1501 = vmul.f32 %v381, %v400
        %v1502 = vmul.f32 %v383, %v401
        %v1503 = vmul.f32 %v385, %v402
        %v1504 = vmul.f32 %v387, %v403
        %v1505 = vadd.f32 %v1501, %v415
        %v1506 = vadd.f32 %v1502, %v416
        %v1507 = vadd.f32 %v1503, %v417
        %v1508 = vadd.f32 %v1504, %v418
        %v1509 = vmax.f32 %v1505, 0.0
        %v1510 = vmax.f32 %v1506, 0.0
        %v1511 = vmax.f32 %v1507, 0.0
        %v1512 = vmax.f32 %v1508, 0.0
        %v1513 = vpack.c.bf16 %v1509, %v1509
        %v1514 = vpack.c.bf16 %v1510, %v1510
        %v1515 = vpack.c.bf16 %v1511, %v1511
        %v1516 = vpack.c.bf16 %v1512, %v1512
        %v1522 = vunpack.c.l.s4 1983009808
        %v1523 = vunpack.c.0.s8 %v1522
        %v1524 = vlaneseq
        %v1525 = vshrl.u32 %v1524, 7
        %v1526 = vsub.s32 %v1523, %v1525
        %v1527 = vrot.slane %v1513, %v1526
        %v1529 = vunpack.c.l.s4 1983009808
        %v1530 = vunpack.c.0.s8 %v1529
        %v1531 = vlaneseq
        %v1532 = vshrl.u32 %v1531, 7
        %v1533 = vsub.s32 %v1530, %v1532
        %v1534 = vrot.slane %v1514, %v1533
        %v1536 = vunpack.c.l.s4 1983009808
        %v1537 = vunpack.c.0.s8 %v1536
        %v1538 = vlaneseq
        %v1539 = vshrl.u32 %v1538, 7
        %v1540 = vsub.s32 %v1537, %v1539
        %v1541 = vrot.slane %v1515, %v1540
        %v1543 = vunpack.c.l.s4 1983009808
        %v1544 = vunpack.c.0.s8 %v1543
        %v1545 = vlaneseq
        %v1546 = vshrl.u32 %v1545, 7
        %v1547 = vsub.s32 %v1544, %v1546
        %v1548 = vrot.slane %v1516, %v1547
        %v1550 = vunpack.c.l.s4 1983009808
        %v1551 = vunpack.c.0.s8 %v1550
        %v1552 = vlaneseq
        %v1553 = vshrl.u32 %v1552, 7
        %v1554 = vsub.s32 %v1551, %v1553
        %v1555 = vrot.slane %v1527, %v1554
        %v1557 = vunpack.c.l.s4 1983009808
        %v1558 = vunpack.c.0.s8 %v1557
        %v1559 = vlaneseq
        %v1560 = vshrl.u32 %v1559, 7
        %v1561 = vsub.s32 %v1558, %v1560
        %v1562 = vrot.slane %v1534, %v1561
        %v1564 = vunpack.c.l.s4 1983009808
        %v1565 = vunpack.c.0.s8 %v1564
        %v1566 = vlaneseq
        %v1567 = vshrl.u32 %v1566, 7
        %v1568 = vsub.s32 %v1565, %v1567
        %v1569 = vrot.slane %v1541, %v1568
        %v1571 = vunpack.c.l.s4 1983009808
        %v1572 = vunpack.c.0.s8 %v1571
        %v1573 = vlaneseq
        %v1574 = vshrl.u32 %v1573, 7
        %v1575 = vsub.s32 %v1572, %v1574
        %v1576 = vrot.slane %v1548, %v1575
        %v1577 = vunpack.c.l.b16 %v1555
        %v1578 = vunpack.c.l.b16 %v1562
        %v1579 = vunpack.c.l.b16 %v1569
        %v1580 = vunpack.c.l.b16 %v1576
        %v1581 = vrot.slane %v1578, 7
        %v1582 = vsel %vm500, %v1581, %v1577
        %v1583 = vrot.slane %v1579, 6
        %v1584 = vsel %vm503, %v1583, %v1582
        %v1585 = vrot.slane %v1580, 5
        %v1586 = vsel %vm506, %v1585, %v1584
        %v1587 = vpack.c.b16 %v1586, %v1586
        %v1589 = vunpack.c.l.s4 1983009808
        %v1590 = vunpack.c.0.s8 %v1589
        %v1591 = vlaneseq
        %v1592 = vshrl.u32 %v1591, 7
        %v1593 = vsub.s32 %v1590, %v1592
        %v1594 = vrot.slane %v1587, %v1593
        %1595 = vrot.lane.b32.xlu0 %v1594, 35
        %v1596 = vpop.permute.xlu0 %1595
        %vm1598 = vcmask 410904
        %1599 = vst.msk [vmem:[#allocation2 + $0x2] sm:$0x3] %vm1598, %v1596
        %v1600 = vpack.c.bf16 %v381, %v381
        %v1601 = vpack.c.bf16 %v383, %v383
        %v1602 = vpack.c.bf16 %v385, %v385
        %v1603 = vpack.c.bf16 %v387, %v387
        %v1609 = vunpack.c.l.s4 1983009808
        %v1610 = vunpack.c.0.s8 %v1609
        %v1611 = vlaneseq
        %v1612 = vshrl.u32 %v1611, 7
        %v1613 = vsub.s32 %v1610, %v1612
        %v1614 = vrot.slane %v1600, %v1613
        %v1616 = vunpack.c.l.s4 1983009808
        %v1617 = vunpack.c.0.s8 %v1616
        %v1618 = vlaneseq
        %v1619 = vshrl.u32 %v1618, 7
        %v1620 = vsub.s32 %v1617, %v1619
        %v1621 = vrot.slane %v1601, %v1620
        %v1623 = vunpack.c.l.s4 1983009808
        %v1624 = vunpack.c.0.s8 %v1623
        %v1625 = vlaneseq
        %v1626 = vshrl.u32 %v1625, 7
        %v1627 = vsub.s32 %v1624, %v1626
        %v1628 = vrot.slane %v1602, %v1627
        %v1630 = vunpack.c.l.s4 1983009808
        %v1631 = vunpack.c.0.s8 %v1630
        %v1632 = vlaneseq
        %v1633 = vshrl.u32 %v1632, 7
        %v1634 = vsub.s32 %v1631, %v1633
        %v1635 = vrot.slane %v1603, %v1634
        %v1637 = vunpack.c.l.s4 1983009808
        %v1638 = vunpack.c.0.s8 %v1637
        %v1639 = vlaneseq
        %v1640 = vshrl.u32 %v1639, 7
        %v1641 = vsub.s32 %v1638, %v1640
        %v1642 = vrot.slane %v1614, %v1641
        %v1644 = vunpack.c.l.s4 1983009808
        %v1645 = vunpack.c.0.s8 %v1644
        %v1646 = vlaneseq
        %v1647 = vshrl.u32 %v1646, 7
        %v1648 = vsub.s32 %v1645, %v1647
        %v1649 = vrot.slane %v1621, %v1648
        %v1651 = vunpack.c.l.s4 1983009808
        %v1652 = vunpack.c.0.s8 %v1651
        %v1653 = vlaneseq
        %v1654 = vshrl.u32 %v1653, 7
        %v1655 = vsub.s32 %v1652, %v1654
        %v1656 = vrot.slane %v1628, %v1655
        %v1658 = vunpack.c.l.s4 1983009808
        %v1659 = vunpack.c.0.s8 %v1658
        %v1660 = vlaneseq
        %v1661 = vshrl.u32 %v1660, 7
        %v1662 = vsub.s32 %v1659, %v1661
        %v1663 = vrot.slane %v1635, %v1662
        %v1664 = vunpack.c.l.b16 %v1642
        %v1665 = vunpack.c.l.b16 %v1649
        %v1666 = vunpack.c.l.b16 %v1656
        %v1667 = vunpack.c.l.b16 %v1663
        %v1668 = vrot.slane %v1665, 7
        %v1669 = vsel %vm500, %v1668, %v1664
        %v1670 = vrot.slane %v1666, 6
        %v1671 = vsel %vm503, %v1670, %v1669
        %v1672 = vrot.slane %v1667, 5
        %v1673 = vsel %vm506, %v1672, %v1671
        %v1674 = vpack.c.b16 %v1673, %v1673
        %v1676 = vunpack.c.l.s4 1983009808
        %v1677 = vunpack.c.0.s8 %v1676
        %v1678 = vlaneseq
        %v1679 = vshrl.u32 %v1678, 7
        %v1680 = vsub.s32 %v1677, %v1679
        %v1681 = vrot.slane %v1674, %v1680
        %1682 = vrot.lane.b32.xlu0 %v1681, 35
        %v1683 = vpop.permute.xlu0 %1682
        %1685 = vst.msk [vmem:[#allocation3 + $0x2] sm:$0x3] %vm1598, %v1683
        %v1686 = vmul.f32 %v381, %v607
        %v1687 = vmul.f32 %v383, %v400
        %v1688 = vmul.f32 %v385, %v401
        %v1689 = vmul.f32 %v387, %v402
        %v1690 = vadd.f32 %v1686, %v613
        %v1691 = vadd.f32 %v1687, %v415
        %v1692 = vadd.f32 %v1688, %v416
        %v1693 = vadd.f32 %v1689, %v417
        %v1694 = vmax.f32 %v1690, 0.0
        %v1695 = vmax.f32 %v1691, 0.0
        %v1696 = vmax.f32 %v1692, 0.0
        %v1697 = vmax.f32 %v1693, 0.0
        %v1698 = vpack.c.bf16 %v1694, %v1694
        %v1699 = vpack.c.bf16 %v1695, %v1695
        %v1700 = vpack.c.bf16 %v1696, %v1696
        %v1701 = vpack.c.bf16 %v1697, %v1697
        %v1707 = vunpack.c.l.s4 1983009808
        %v1708 = vunpack.c.0.s8 %v1707
        %v1709 = vlaneseq
        %v1710 = vshrl.u32 %v1709, 7
        %v1711 = vsub.s32 %v1708, %v1710
        %v1712 = vrot.slane %v1698, %v1711
        %v1714 = vunpack.c.l.s4 1983009808
        %v1715 = vunpack.c.0.s8 %v1714
        %v1716 = vlaneseq
        %v1717 = vshrl.u32 %v1716, 7
        %v1718 = vsub.s32 %v1715, %v1717
        %v1719 = vrot.slane %v1699, %v1718
        %v1721 = vunpack.c.l.s4 1983009808
        %v1722 = vunpack.c.0.s8 %v1721
        %v1723 = vlaneseq
        %v1724 = vshrl.u32 %v1723, 7
        %v1725 = vsub.s32 %v1722, %v1724
        %v1726 = vrot.slane %v1700, %v1725
        %v1728 = vunpack.c.l.s4 1983009808
        %v1729 = vunpack.c.0.s8 %v1728
        %v1730 = vlaneseq
        %v1731 = vshrl.u32 %v1730, 7
        %v1732 = vsub.s32 %v1729, %v1731
        %v1733 = vrot.slane %v1701, %v1732
        %v1735 = vunpack.c.l.s4 1983009808
        %v1736 = vunpack.c.0.s8 %v1735
        %v1737 = vlaneseq
        %v1738 = vshrl.u32 %v1737, 7
        %v1739 = vsub.s32 %v1736, %v1738
        %v1740 = vrot.slane %v1712, %v1739
        %v1742 = vunpack.c.l.s4 1983009808
        %v1743 = vunpack.c.0.s8 %v1742
        %v1744 = vlaneseq
        %v1745 = vshrl.u32 %v1744, 7
        %v1746 = vsub.s32 %v1743, %v1745
        %v1747 = vrot.slane %v1719, %v1746
        %v1749 = vunpack.c.l.s4 1983009808
        %v1750 = vunpack.c.0.s8 %v1749
        %v1751 = vlaneseq
        %v1752 = vshrl.u32 %v1751, 7
        %v1753 = vsub.s32 %v1750, %v1752
        %v1754 = vrot.slane %v1726, %v1753
        %v1756 = vunpack.c.l.s4 1983009808
        %v1757 = vunpack.c.0.s8 %v1756
        %v1758 = vlaneseq
        %v1759 = vshrl.u32 %v1758, 7
        %v1760 = vsub.s32 %v1757, %v1759
        %v1761 = vrot.slane %v1733, %v1760
        %v1762 = vunpack.c.l.b16 %v1740
        %v1763 = vunpack.c.l.b16 %v1747
        %v1764 = vunpack.c.l.b16 %v1754
        %v1765 = vunpack.c.l.b16 %v1761
        %v1766 = vrot.slane %v1762, 1
        %v1767 = vsel %vm500, %v1763, %v1766
        %v1768 = vrot.slane %v1764, 7
        %v1769 = vsel %vm503, %v1768, %v1767
        %v1770 = vrot.slane %v1765, 6
        %v1771 = vsel %vm506, %v1770, %v1769
        %v1772 = vpack.c.b16 %v1771, %v1771
        %v1774 = vunpack.c.l.s4 1983009808
        %v1775 = vunpack.c.0.s8 %v1774
        %v1776 = vlaneseq
        %v1777 = vshrl.u32 %v1776, 7
        %v1778 = vsub.s32 %v1775, %v1777
        %v1779 = vrot.slane %v1772, %v1778
        %1780 = vrot.lane.b32.xlu0 %v1779, 53
        %v1781 = vpop.permute.xlu0 %1780
        %vm1783 = vcmask 558504
        %1784 = vst.msk [vmem:[#allocation2 + $0x2] sm:$0x3] %vm1783, %v1781
        %v1785 = vrot.slane %v1664, 1
        %v1786 = vsel %vm500, %v1665, %v1785
        %v1787 = vrot.slane %v1666, 7
        %v1788 = vsel %vm503, %v1787, %v1786
        %v1789 = vrot.slane %v1667, 6
        %v1790 = vsel %vm506, %v1789, %v1788
        %v1791 = vpack.c.b16 %v1790, %v1790
        %v1793 = vunpack.c.l.s4 1983009808
        %v1794 = vunpack.c.0.s8 %v1793
        %v1795 = vlaneseq
        %v1796 = vshrl.u32 %v1795, 7
        %v1797 = vsub.s32 %v1794, %v1796
        %v1798 = vrot.slane %v1791, %v1797
        %1799 = vrot.lane.b32.xlu0 %v1798, 53
        %v1800 = vpop.permute.xlu0 %1799
        %1802 = vst.msk [vmem:[#allocation3 + $0x2] sm:$0x3] %vm1783, %v1800
        %v1803 = vmul.f32 %v381, %v728
        %v1804 = vmul.f32 %v383, %v607
        %v1805 = vmul.f32 %v385, %v400
        %v1806 = vmul.f32 %v387, %v401
        %v1807 = vadd.f32 %v1803, %v734
        %v1808 = vadd.f32 %v1804, %v613
        %v1809 = vadd.f32 %v1805, %v415
        %v1810 = vadd.f32 %v1806, %v416
        %v1811 = vmax.f32 %v1807, 0.0
        %v1812 = vmax.f32 %v1808, 0.0
        %v1813 = vmax.f32 %v1809, 0.0
        %v1814 = vmax.f32 %v1810, 0.0
        %v1815 = vpack.c.bf16 %v1811, %v1811
        %v1816 = vpack.c.bf16 %v1812, %v1812
        %v1817 = vpack.c.bf16 %v1813, %v1813
        %v1818 = vpack.c.bf16 %v1814, %v1814
        %v1824 = vunpack.c.l.s4 1983009808
        %v1825 = vunpack.c.0.s8 %v1824
        %v1826 = vlaneseq
        %v1827 = vshrl.u32 %v1826, 7
        %v1828 = vsub.s32 %v1825, %v1827
        %v1829 = vrot.slane %v1815, %v1828
        %v1831 = vunpack.c.l.s4 1983009808
        %v1832 = vunpack.c.0.s8 %v1831
        %v1833 = vlaneseq
        %v1834 = vshrl.u32 %v1833, 7
        %v1835 = vsub.s32 %v1832, %v1834
        %v1836 = vrot.slane %v1816, %v1835
        %v1838 = vunpack.c.l.s4 1983009808
        %v1839 = vunpack.c.0.s8 %v1838
        %v1840 = vlaneseq
        %v1841 = vshrl.u32 %v1840, 7
        %v1842 = vsub.s32 %v1839, %v1841
        %v1843 = vrot.slane %v1817, %v1842
        %v1845 = vunpack.c.l.s4 1983009808
        %v1846 = vunpack.c.0.s8 %v1845
        %v1847 = vlaneseq
        %v1848 = vshrl.u32 %v1847, 7
        %v1849 = vsub.s32 %v1846, %v1848
        %v1850 = vrot.slane %v1818, %v1849
        %v1852 = vunpack.c.l.s4 1983009808
        %v1853 = vunpack.c.0.s8 %v1852
        %v1854 = vlaneseq
        %v1855 = vshrl.u32 %v1854, 7
        %v1856 = vsub.s32 %v1853, %v1855
        %v1857 = vrot.slane %v1829, %v1856
        %v1859 = vunpack.c.l.s4 1983009808
        %v1860 = vunpack.c.0.s8 %v1859
        %v1861 = vlaneseq
        %v1862 = vshrl.u32 %v1861, 7
        %v1863 = vsub.s32 %v1860, %v1862
        %v1864 = vrot.slane %v1836, %v1863
        %v1866 = vunpack.c.l.s4 1983009808
        %v1867 = vunpack.c.0.s8 %v1866
        %v1868 = vlaneseq
        %v1869 = vshrl.u32 %v1868, 7
        %v1870 = vsub.s32 %v1867, %v1869
        %v1871 = vrot.slane %v1843, %v1870
        %v1873 = vunpack.c.l.s4 1983009808
        %v1874 = vunpack.c.0.s8 %v1873
        %v1875 = vlaneseq
        %v1876 = vshrl.u32 %v1875, 7
        %v1877 = vsub.s32 %v1874, %v1876
        %v1878 = vrot.slane %v1850, %v1877
        %v1879 = vunpack.c.l.b16 %v1857
        %v1880 = vunpack.c.l.b16 %v1864
        %v1881 = vunpack.c.l.b16 %v1871
        %v1882 = vunpack.c.l.b16 %v1878
        %v1883 = vrot.slane %v1879, 2
        %v1884 = vrot.slane %v1880, 1
        %v1885 = vsel %vm500, %v1884, %v1883
        %v1886 = vsel %vm503, %v1881, %v1885
        %v1887 = vrot.slane %v1882, 7
        %v1888 = vsel %vm506, %v1887, %v1886
        %v1889 = vpack.c.b16 %v1888, %v1888
        %v1891 = vunpack.c.l.s4 1983009808
        %v1892 = vunpack.c.0.s8 %v1891
        %v1893 = vlaneseq
        %v1894 = vshrl.u32 %v1893, 7
        %v1895 = vsub.s32 %v1892, %v1894
        %v1896 = vrot.slane %v1889, %v1895
        %1897 = vrot.lane.b32.xlu0 %v1896, 71
        %v1898 = vpop.permute.xlu0 %1897
        %vm1900 = vcmask 706104
        %1901 = vst.msk [vmem:[#allocation2 + $0x2] sm:$0x3] %vm1900, %v1898
        %v1902 = vrot.slane %v1664, 2
        %v1903 = vrot.slane %v1665, 1
        %v1904 = vsel %vm500, %v1903, %v1902
        %v1905 = vsel %vm503, %v1666, %v1904
        %v1906 = vrot.slane %v1667, 7
        %v1907 = vsel %vm506, %v1906, %v1905
        %v1908 = vpack.c.b16 %v1907, %v1907
        %v1910 = vunpack.c.l.s4 1983009808
        %v1911 = vunpack.c.0.s8 %v1910
        %v1912 = vlaneseq
        %v1913 = vshrl.u32 %v1912, 7
        %v1914 = vsub.s32 %v1911, %v1913
        %v1915 = vrot.slane %v1908, %v1914
        %1916 = vrot.lane.b32.xlu0 %v1915, 71
        %v1917 = vpop.permute.xlu0 %1916
        %1919 = vst.msk [vmem:[#allocation3 + $0x2] sm:$0x3] %vm1900, %v1917
        %v1920 = vmul.f32 %v381, %v849
        %v1921 = vmul.f32 %v383, %v728
        %v1922 = vmul.f32 %v385, %v607
        %v1923 = vmul.f32 %v387, %v400
        %v1924 = vadd.f32 %v1920, %v855
        %v1925 = vadd.f32 %v1921, %v734
        %v1926 = vadd.f32 %v1922, %v613
        %v1927 = vadd.f32 %v1923, %v415
        %v1928 = vmax.f32 %v1924, 0.0
        %v1929 = vmax.f32 %v1925, 0.0
        %v1930 = vmax.f32 %v1926, 0.0
        %v1931 = vmax.f32 %v1927, 0.0
        %v1932 = vpack.c.bf16 %v1928, %v1928
        %v1933 = vpack.c.bf16 %v1929, %v1929
        %v1934 = vpack.c.bf16 %v1930, %v1930
        %v1935 = vpack.c.bf16 %v1931, %v1931
        %v1941 = vunpack.c.l.s4 1983009808
        %v1942 = vunpack.c.0.s8 %v1941
        %v1943 = vlaneseq
        %v1944 = vshrl.u32 %v1943, 7
        %v1945 = vsub.s32 %v1942, %v1944
        %v1946 = vrot.slane %v1932, %v1945
        %v1948 = vunpack.c.l.s4 1983009808
        %v1949 = vunpack.c.0.s8 %v1948
        %v1950 = vlaneseq
        %v1951 = vshrl.u32 %v1950, 7
        %v1952 = vsub.s32 %v1949, %v1951
        %v1953 = vrot.slane %v1933, %v1952
        %v1955 = vunpack.c.l.s4 1983009808
        %v1956 = vunpack.c.0.s8 %v1955
        %v1957 = vlaneseq
        %v1958 = vshrl.u32 %v1957, 7
        %v1959 = vsub.s32 %v1956, %v1958
        %v1960 = vrot.slane %v1934, %v1959
        %v1962 = vunpack.c.l.s4 1983009808
        %v1963 = vunpack.c.0.s8 %v1962
        %v1964 = vlaneseq
        %v1965 = vshrl.u32 %v1964, 7
        %v1966 = vsub.s32 %v1963, %v1965
        %v1967 = vrot.slane %v1935, %v1966
        %v1969 = vunpack.c.l.s4 1983009808
        %v1970 = vunpack.c.0.s8 %v1969
        %v1971 = vlaneseq
        %v1972 = vshrl.u32 %v1971, 7
        %v1973 = vsub.s32 %v1970, %v1972
        %v1974 = vrot.slane %v1946, %v1973
        %v1976 = vunpack.c.l.s4 1983009808
        %v1977 = vunpack.c.0.s8 %v1976
        %v1978 = vlaneseq
        %v1979 = vshrl.u32 %v1978, 7
        %v1980 = vsub.s32 %v1977, %v1979
        %v1981 = vrot.slane %v1953, %v1980
        %v1983 = vunpack.c.l.s4 1983009808
        %v1984 = vunpack.c.0.s8 %v1983
        %v1985 = vlaneseq
        %v1986 = vshrl.u32 %v1985, 7
        %v1987 = vsub.s32 %v1984, %v1986
        %v1988 = vrot.slane %v1960, %v1987
        %v1990 = vunpack.c.l.s4 1983009808
        %v1991 = vunpack.c.0.s8 %v1990
        %v1992 = vlaneseq
        %v1993 = vshrl.u32 %v1992, 7
        %v1994 = vsub.s32 %v1991, %v1993
        %v1995 = vrot.slane %v1967, %v1994
        %v1996 = vunpack.c.l.b16 %v1974
        %v1997 = vunpack.c.l.b16 %v1981
        %v1998 = vunpack.c.l.b16 %v1988
        %v1999 = vunpack.c.l.b16 %v1995
        %v2000 = vrot.slane %v1996, 3
        %v2001 = vrot.slane %v1997, 2
        %v2002 = vsel %vm500, %v2001, %v2000
        %v2003 = vrot.slane %v1998, 1
        %v2004 = vsel %vm503, %v2003, %v2002
        %v2005 = vsel %vm506, %v1999, %v2004
        %v2006 = vpack.c.b16 %v2005, %v2005
        %v2008 = vunpack.c.l.s4 1983009808
        %v2009 = vunpack.c.0.s8 %v2008
        %v2010 = vlaneseq
        %v2011 = vshrl.u32 %v2010, 7
        %v2012 = vsub.s32 %v2009, %v2011
        %v2013 = vrot.slane %v2006, %v2012
        %2014 = vrot.lane.b32.xlu0 %v2013, 89
        %v2015 = vpop.permute.xlu0 %2014
        %vm2017 = vcmask 853704
        %2018 = vst.msk [vmem:[#allocation2 + $0x2] sm:$0x3] %vm2017, %v2015
        %v2019 = vrot.slane %v1664, 3
        %v2020 = vrot.slane %v1665, 2
        %v2021 = vsel %vm500, %v2020, %v2019
        %v2022 = vrot.slane %v1666, 1
        %v2023 = vsel %vm503, %v2022, %v2021
        %v2024 = vsel %vm506, %v1667, %v2023
        %v2025 = vpack.c.b16 %v2024, %v2024
        %v2027 = vunpack.c.l.s4 1983009808
        %v2028 = vunpack.c.0.s8 %v2027
        %v2029 = vlaneseq
        %v2030 = vshrl.u32 %v2029, 7
        %v2031 = vsub.s32 %v2028, %v2030
        %v2032 = vrot.slane %v2025, %v2031
        %2033 = vrot.lane.b32.xlu0 %v2032, 89
        %v2034 = vpop.permute.xlu0 %2033
        %2036 = vst.msk [vmem:[#allocation3 + $0x2] sm:$0x3] %vm2017, %v2034
        %v2037 = vmul.f32 %v381, %v970
        %v2038 = vmul.f32 %v383, %v849
        %v2039 = vmul.f32 %v385, %v728
        %v2040 = vmul.f32 %v387, %v607
        %v2041 = vadd.f32 %v2037, %v976
        %v2042 = vadd.f32 %v2038, %v855
        %v2043 = vadd.f32 %v2039, %v734
        %v2044 = vadd.f32 %v2040, %v613
        %v2045 = vmax.f32 %v2041, 0.0
        %v2046 = vmax.f32 %v2042, 0.0
        %v2047 = vmax.f32 %v2043, 0.0
        %v2048 = vmax.f32 %v2044, 0.0
        %v2049 = vpack.c.bf16 %v2045, %v2045
        %v2050 = vpack.c.bf16 %v2046, %v2046
        %v2051 = vpack.c.bf16 %v2047, %v2047
        %v2052 = vpack.c.bf16 %v2048, %v2048
        %v2058 = vunpack.c.l.s4 1983009808
        %v2059 = vunpack.c.0.s8 %v2058
        %v2060 = vlaneseq
        %v2061 = vshrl.u32 %v2060, 7
        %v2062 = vsub.s32 %v2059, %v2061
        %v2063 = vrot.slane %v2049, %v2062
        %v2064 = vcombine.high %v2063, %v2063
        %v2066 = vunpack.c.l.s4 1983009808
        %v2067 = vunpack.c.0.s8 %v2066
        %v2068 = vlaneseq
        %v2069 = vshrl.u32 %v2068, 7
        %v2070 = vsub.s32 %v2067, %v2069
        %v2071 = vrot.slane %v2050, %v2070
        %v2072 = vcombine.high %v2071, %v2071
        %v2074 = vunpack.c.l.s4 1983009808
        %v2075 = vunpack.c.0.s8 %v2074
        %v2076 = vlaneseq
        %v2077 = vshrl.u32 %v2076, 7
        %v2078 = vsub.s32 %v2075, %v2077
        %v2079 = vrot.slane %v2051, %v2078
        %v2080 = vcombine.high %v2079, %v2079
        %v2082 = vunpack.c.l.s4 1983009808
        %v2083 = vunpack.c.0.s8 %v2082
        %v2084 = vlaneseq
        %v2085 = vshrl.u32 %v2084, 7
        %v2086 = vsub.s32 %v2083, %v2085
        %v2087 = vrot.slane %v2052, %v2086
        %v2088 = vcombine.high %v2087, %v2087
        %v2090 = vunpack.c.l.s4 1983009808
        %v2091 = vunpack.c.0.s8 %v2090
        %v2092 = vlaneseq
        %v2093 = vshrl.u32 %v2092, 7
        %v2094 = vsub.s32 %v2091, %v2093
        %v2095 = vrot.slane %v2064, %v2094
        %v2097 = vunpack.c.l.s4 1983009808
        %v2098 = vunpack.c.0.s8 %v2097
        %v2099 = vlaneseq
        %v2100 = vshrl.u32 %v2099, 7
        %v2101 = vsub.s32 %v2098, %v2100
        %v2102 = vrot.slane %v2072, %v2101
        %v2104 = vunpack.c.l.s4 1983009808
        %v2105 = vunpack.c.0.s8 %v2104
        %v2106 = vlaneseq
        %v2107 = vshrl.u32 %v2106, 7
        %v2108 = vsub.s32 %v2105, %v2107
        %v2109 = vrot.slane %v2080, %v2108
        %v2111 = vunpack.c.l.s4 1983009808
        %v2112 = vunpack.c.0.s8 %v2111
        %v2113 = vlaneseq
        %v2114 = vshrl.u32 %v2113, 7
        %v2115 = vsub.s32 %v2112, %v2114
        %v2116 = vrot.slane %v2088, %v2115
        %v2117 = vunpack.c.l.b16 %v2095
        %v2118 = vunpack.c.l.b16 %v2102
        %v2119 = vunpack.c.l.b16 %v2109
        %v2120 = vunpack.c.l.b16 %v2116
        %v2121 = vrot.slane %v2118, 7
        %v2122 = vsel %vm500, %v2121, %v2117
        %v2123 = vrot.slane %v2119, 6
        %v2124 = vsel %vm503, %v2123, %v2122
        %v2125 = vrot.slane %v2120, 5
        %v2126 = vsel %vm506, %v2125, %v2124
        %v2127 = vpack.c.b16 %v2126, %v2126
        %v2129 = vunpack.c.l.s4 1983009808
        %v2130 = vunpack.c.0.s8 %v2129
        %v2131 = vlaneseq
        %v2132 = vshrl.u32 %v2131, 7
        %v2133 = vsub.s32 %v2130, %v2132
        %v2134 = vrot.slane %v2127, %v2133
        %2135 = vrot.lane.b32.xlu0 %v2134, 107
        %v2136 = vpop.permute.xlu0 %2135
        %vm2138 = vcmask 1001304
        %2139 = vst.msk [vmem:[#allocation2 + $0x2] sm:$0x3] %vm2138, %v2136
        %v2140 = vcombine.high %v1614, %v1614
        %v2141 = vcombine.high %v1621, %v1621
        %v2142 = vcombine.high %v1628, %v1628
        %v2143 = vcombine.high %v1635, %v1635
        %v2145 = vunpack.c.l.s4 1983009808
        %v2146 = vunpack.c.0.s8 %v2145
        %v2147 = vlaneseq
        %v2148 = vshrl.u32 %v2147, 7
        %v2149 = vsub.s32 %v2146, %v2148
        %v2150 = vrot.slane %v2140, %v2149
        %v2152 = vunpack.c.l.s4 1983009808
        %v2153 = vunpack.c.0.s8 %v2152
        %v2154 = vlaneseq
        %v2155 = vshrl.u32 %v2154, 7
        %v2156 = vsub.s32 %v2153, %v2155
        %v2157 = vrot.slane %v2141, %v2156
        %v2159 = vunpack.c.l.s4 1983009808
        %v2160 = vunpack.c.0.s8 %v2159
        %v2161 = vlaneseq
        %v2162 = vshrl.u32 %v2161, 7
        %v2163 = vsub.s32 %v2160, %v2162
        %v2164 = vrot.slane %v2142, %v2163
        %v2166 = vunpack.c.l.s4 1983009808
        %v2167 = vunpack.c.0.s8 %v2166
        %v2168 = vlaneseq
        %v2169 = vshrl.u32 %v2168, 7
        %v2170 = vsub.s32 %v2167, %v2169
        %v2171 = vrot.slane %v2143, %v2170
        %v2172 = vunpack.c.l.b16 %v2150
        %v2173 = vunpack.c.l.b16 %v2157
        %v2174 = vunpack.c.l.b16 %v2164
        %v2175 = vunpack.c.l.b16 %v2171
        %v2176 = vrot.slane %v2173, 7
        %v2177 = vsel %vm500, %v2176, %v2172
        %v2178 = vrot.slane %v2174, 6
        %v2179 = vsel %vm503, %v2178, %v2177
        %v2180 = vrot.slane %v2175, 5
        %v2181 = vsel %vm506, %v2180, %v2179
        %v2182 = vpack.c.b16 %v2181, %v2181
        %v2184 = vunpack.c.l.s4 1983009808
        %v2185 = vunpack.c.0.s8 %v2184
        %v2186 = vlaneseq
        %v2187 = vshrl.u32 %v2186, 7
        %v2188 = vsub.s32 %v2185, %v2187
        %v2189 = vrot.slane %v2182, %v2188
        %2190 = vrot.lane.b32.xlu0 %v2189, 107
        %v2191 = vpop.permute.xlu0 %2190
        %2193 = vst.msk [vmem:[#allocation3 + $0x2] sm:$0x3] %vm2138, %v2191
        %v2194 = vmul.f32 %v381, %v403
        %v2195 = vmul.f32 %v383, %v970
        %v2196 = vmul.f32 %v385, %v849
        %v2197 = vmul.f32 %v387, %v728
        %v2198 = vadd.f32 %v2194, %v418
        %v2199 = vadd.f32 %v2195, %v976
        %v2200 = vadd.f32 %v2196, %v855
        %v2201 = vadd.f32 %v2197, %v734
        %v2202 = vmax.f32 %v2198, 0.0
        %v2203 = vmax.f32 %v2199, 0.0
        %v2204 = vmax.f32 %v2200, 0.0
        %v2205 = vmax.f32 %v2201, 0.0
        %v2206 = vpack.c.bf16 %v2202, %v2202
        %v2207 = vpack.c.bf16 %v2203, %v2203
        %v2208 = vpack.c.bf16 %v2204, %v2204
        %v2209 = vpack.c.bf16 %v2205, %v2205
        %v2215 = vunpack.c.l.s4 1983009808
        %v2216 = vunpack.c.0.s8 %v2215
        %v2217 = vlaneseq
        %v2218 = vshrl.u32 %v2217, 7
        %v2219 = vsub.s32 %v2216, %v2218
        %v2220 = vrot.slane %v2206, %v2219
        %v2221 = vcombine.high %v2220, %v2220
        %v2223 = vunpack.c.l.s4 1983009808
        %v2224 = vunpack.c.0.s8 %v2223
        %v2225 = vlaneseq
        %v2226 = vshrl.u32 %v2225, 7
        %v2227 = vsub.s32 %v2224, %v2226
        %v2228 = vrot.slane %v2207, %v2227
        %v2229 = vcombine.high %v2228, %v2228
        %v2231 = vunpack.c.l.s4 1983009808
        %v2232 = vunpack.c.0.s8 %v2231
        %v2233 = vlaneseq
        %v2234 = vshrl.u32 %v2233, 7
        %v2235 = vsub.s32 %v2232, %v2234
        %v2236 = vrot.slane %v2208, %v2235
        %v2237 = vcombine.high %v2236, %v2236
        %v2239 = vunpack.c.l.s4 1983009808
        %v2240 = vunpack.c.0.s8 %v2239
        %v2241 = vlaneseq
        %v2242 = vshrl.u32 %v2241, 7
        %v2243 = vsub.s32 %v2240, %v2242
        %v2244 = vrot.slane %v2209, %v2243
        %v2245 = vcombine.high %v2244, %v2244
        %v2247 = vunpack.c.l.s4 1983009808
        %v2248 = vunpack.c.0.s8 %v2247
        %v2249 = vlaneseq
        %v2250 = vshrl.u32 %v2249, 7
        %v2251 = vsub.s32 %v2248, %v2250
        %v2252 = vrot.slane %v2221, %v2251
        %v2254 = vunpack.c.l.s4 1983009808
        %v2255 = vunpack.c.0.s8 %v2254
        %v2256 = vlaneseq
        %v2257 = vshrl.u32 %v2256, 7
        %v2258 = vsub.s32 %v2255, %v2257
        %v2259 = vrot.slane %v2229, %v2258
        %v2261 = vunpack.c.l.s4 1983009808
        %v2262 = vunpack.c.0.s8 %v2261
        %v2263 = vlaneseq
        %v2264 = vshrl.u32 %v2263, 7
        %v2265 = vsub.s32 %v2262, %v2264
        %v2266 = vrot.slane %v2237, %v2265
        %v2268 = vunpack.c.l.s4 1983009808
        %v2269 = vunpack.c.0.s8 %v2268
        %v2270 = vlaneseq
        %v2271 = vshrl.u32 %v2270, 7
        %v2272 = vsub.s32 %v2269, %v2271
        %v2273 = vrot.slane %v2245, %v2272
        %v2274 = vunpack.c.l.b16 %v2252
        %v2275 = vunpack.c.l.b16 %v2259
        %v2276 = vunpack.c.l.b16 %v2266
        %v2277 = vunpack.c.l.b16 %v2273
        %v2278 = vrot.slane %v2274, 1
        %v2279 = vsel %vm500, %v2275, %v2278
        %v2280 = vrot.slane %v2276, 7
        %v2281 = vsel %vm503, %v2280, %v2279
        %v2282 = vrot.slane %v2277, 6
        %v2283 = vsel %vm506, %v2282, %v2281
        %v2284 = vpack.c.b16 %v2283, %v2283
        %v2286 = vunpack.c.l.s4 1983009808
        %v2287 = vunpack.c.0.s8 %v2286
        %v2288 = vlaneseq
        %v2289 = vshrl.u32 %v2288, 7
        %v2290 = vsub.s32 %v2287, %v2289
        %v2291 = vrot.slane %v2284, %v2290
        %2292 = vrot.lane.b32.xlu0 %v2291, 125
        %v2293 = vpop.permute.xlu0 %2292
        %v2294 = vrot.slane %v2293, 6
        %vm2295 = vcmask 1022976
        %v2296 = vsel %vm2295, %v2294, %v2293
        %vm2298 = vcmask 1042408
        %vm2299 = vcmask 101378
        %vm2300 = vmor %vm2299, %vm2298
        %2301 = vst.msk [vmem:[#allocation2 + $0x2] sm:$0xf] %vm2300, %v2296
        %v2302 = vrot.slane %v2172, 1
        %v2303 = vsel %vm500, %v2173, %v2302
        %v2304 = vrot.slane %v2174, 7
        %v2305 = vsel %vm503, %v2304, %v2303
        %v2306 = vrot.slane %v2175, 6
        %v2307 = vsel %vm506, %v2306, %v2305
        %v2308 = vpack.c.b16 %v2307, %v2307
        %v2310 = vunpack.c.l.s4 1983009808
        %v2311 = vunpack.c.0.s8 %v2310
        %v2312 = vlaneseq
        %v2313 = vshrl.u32 %v2312, 7
        %v2314 = vsub.s32 %v2311, %v2313
        %v2315 = vrot.slane %v2308, %v2314
        %2316 = vrot.lane.b32.xlu0 %v2315, 125
        %v2317 = vpop.permute.xlu0 %2316
        %v2318 = vrot.slane %v2317, 6
        %v2319 = vsel %vm2295, %v2318, %v2317
        %2321 = vst.msk [vmem:[#allocation3 + $0x2] sm:$0xf] %vm2300, %v2319
        %v2322 = vmul.f32 %v381, %v402
        %v2323 = vmul.f32 %v383, %v403
        %v2324 = vmul.f32 %v385, %v970
        %v2325 = vmul.f32 %v387, %v849
        %v2326 = vadd.f32 %v2322, %v417
        %v2327 = vadd.f32 %v2323, %v418
        %v2328 = vadd.f32 %v2324, %v976
        %v2329 = vadd.f32 %v2325, %v855
        %v2330 = vmax.f32 %v2326, 0.0
        %v2331 = vmax.f32 %v2327, 0.0
        %v2332 = vmax.f32 %v2328, 0.0
        %v2333 = vmax.f32 %v2329, 0.0
        %v2334 = vpack.c.bf16 %v2330, %v2330
        %v2335 = vpack.c.bf16 %v2331, %v2331
        %v2336 = vpack.c.bf16 %v2332, %v2332
        %v2337 = vpack.c.bf16 %v2333, %v2333
        %v2343 = vunpack.c.l.s4 1983009808
        %v2344 = vunpack.c.0.s8 %v2343
        %v2345 = vlaneseq
        %v2346 = vshrl.u32 %v2345, 7
        %v2347 = vsub.s32 %v2344, %v2346
        %v2348 = vrot.slane %v2334, %v2347
        %v2349 = vcombine.high %v2348, %v2348
        %v2351 = vunpack.c.l.s4 1983009808
        %v2352 = vunpack.c.0.s8 %v2351
        %v2353 = vlaneseq
        %v2354 = vshrl.u32 %v2353, 7
        %v2355 = vsub.s32 %v2352, %v2354
        %v2356 = vrot.slane %v2335, %v2355
        %v2357 = vcombine.high %v2356, %v2356
        %v2359 = vunpack.c.l.s4 1983009808
        %v2360 = vunpack.c.0.s8 %v2359
        %v2361 = vlaneseq
        %v2362 = vshrl.u32 %v2361, 7
        %v2363 = vsub.s32 %v2360, %v2362
        %v2364 = vrot.slane %v2336, %v2363
        %v2365 = vcombine.high %v2364, %v2364
        %v2367 = vunpack.c.l.s4 1983009808
        %v2368 = vunpack.c.0.s8 %v2367
        %v2369 = vlaneseq
        %v2370 = vshrl.u32 %v2369, 7
        %v2371 = vsub.s32 %v2368, %v2370
        %v2372 = vrot.slane %v2337, %v2371
        %v2373 = vcombine.high %v2372, %v2372
        %v2375 = vunpack.c.l.s4 1983009808
        %v2376 = vunpack.c.0.s8 %v2375
        %v2377 = vlaneseq
        %v2378 = vshrl.u32 %v2377, 7
        %v2379 = vsub.s32 %v2376, %v2378
        %v2380 = vrot.slane %v2349, %v2379
        %v2382 = vunpack.c.l.s4 1983009808
        %v2383 = vunpack.c.0.s8 %v2382
        %v2384 = vlaneseq
        %v2385 = vshrl.u32 %v2384, 7
        %v2386 = vsub.s32 %v2383, %v2385
        %v2387 = vrot.slane %v2357, %v2386
        %v2389 = vunpack.c.l.s4 1983009808
        %v2390 = vunpack.c.0.s8 %v2389
        %v2391 = vlaneseq
        %v2392 = vshrl.u32 %v2391, 7
        %v2393 = vsub.s32 %v2390, %v2392
        %v2394 = vrot.slane %v2365, %v2393
        %v2396 = vunpack.c.l.s4 1983009808
        %v2397 = vunpack.c.0.s8 %v2396
        %v2398 = vlaneseq
        %v2399 = vshrl.u32 %v2398, 7
        %v2400 = vsub.s32 %v2397, %v2399
        %v2401 = vrot.slane %v2373, %v2400
        %v2402 = vunpack.c.l.b16 %v2380
        %v2403 = vunpack.c.l.b16 %v2387
        %v2404 = vunpack.c.l.b16 %v2394
        %v2405 = vunpack.c.l.b16 %v2401
        %v2406 = vrot.slane %v2402, 2
        %v2407 = vrot.slane %v2403, 1
        %v2408 = vsel %vm500, %v2407, %v2406
        %v2409 = vsel %vm503, %v2404, %v2408
        %v2410 = vrot.slane %v2405, 7
        %v2411 = vsel %vm506, %v2410, %v2409
        %v2412 = vpack.c.b16 %v2411, %v2411
        %v2414 = vunpack.c.l.s4 1983009808
        %v2415 = vunpack.c.0.s8 %v2414
        %v2416 = vlaneseq
        %v2417 = vshrl.u32 %v2416, 7
        %v2418 = vsub.s32 %v2415, %v2417
        %v2419 = vrot.slane %v2412, %v2418
        %2420 = vrot.lane.b32.xlu0 %v2419, 15
        %v2421 = vpop.permute.xlu0 %2420
        %vm2423 = vcmask 246904
        %2424 = vst.msk [vmem:[#allocation2 + $0x4] sm:$0x3] %vm2423, %v2421
        %v2425 = vrot.slane %v2172, 2
        %v2426 = vrot.slane %v2173, 1
        %v2427 = vsel %vm500, %v2426, %v2425
        %v2428 = vsel %vm503, %v2174, %v2427
        %v2429 = vrot.slane %v2175, 7
        %v2430 = vsel %vm506, %v2429, %v2428
        %v2431 = vpack.c.b16 %v2430, %v2430
        %v2433 = vunpack.c.l.s4 1983009808
        %v2434 = vunpack.c.0.s8 %v2433
        %v2435 = vlaneseq
        %v2436 = vshrl.u32 %v2435, 7
        %v2437 = vsub.s32 %v2434, %v2436
        %v2438 = vrot.slane %v2431, %v2437
        %2439 = vrot.lane.b32.xlu0 %v2438, 15
        %v2440 = vpop.permute.xlu0 %2439
        %2442 = vst.msk [vmem:[#allocation3 + $0x4] sm:$0x3] %vm2423, %v2440
        %v2443 = vmul.f32 %v381, %v401
        %v2444 = vmul.f32 %v383, %v402
        %v2445 = vmul.f32 %v385, %v403
        %v2446 = vmul.f32 %v387, %v970
        %v2447 = vadd.f32 %v2443, %v416
        %v2448 = vadd.f32 %v2444, %v417
        %v2449 = vadd.f32 %v2445, %v418
        %v2450 = vadd.f32 %v2446, %v976
        %v2451 = vmax.f32 %v2447, 0.0
        %v2452 = vmax.f32 %v2448, 0.0
        %v2453 = vmax.f32 %v2449, 0.0
        %v2454 = vmax.f32 %v2450, 0.0
        %v2455 = vpack.c.bf16 %v2451, %v2451
        %v2456 = vpack.c.bf16 %v2452, %v2452
        %v2457 = vpack.c.bf16 %v2453, %v2453
        %v2458 = vpack.c.bf16 %v2454, %v2454
        %v2464 = vunpack.c.l.s4 1983009808
        %v2465 = vunpack.c.0.s8 %v2464
        %v2466 = vlaneseq
        %v2467 = vshrl.u32 %v2466, 7
        %v2468 = vsub.s32 %v2465, %v2467
        %v2469 = vrot.slane %v2455, %v2468
        %v2470 = vcombine.high %v2469, %v2469
        %v2472 = vunpack.c.l.s4 1983009808
        %v2473 = vunpack.c.0.s8 %v2472
        %v2474 = vlaneseq
        %v2475 = vshrl.u32 %v2474, 7
        %v2476 = vsub.s32 %v2473, %v2475
        %v2477 = vrot.slane %v2456, %v2476
        %v2478 = vcombine.high %v2477, %v2477
        %v2480 = vunpack.c.l.s4 1983009808
        %v2481 = vunpack.c.0.s8 %v2480
        %v2482 = vlaneseq
        %v2483 = vshrl.u32 %v2482, 7
        %v2484 = vsub.s32 %v2481, %v2483
        %v2485 = vrot.slane %v2457, %v2484
        %v2486 = vcombine.high %v2485, %v2485
        %v2488 = vunpack.c.l.s4 1983009808
        %v2489 = vunpack.c.0.s8 %v2488
        %v2490 = vlaneseq
        %v2491 = vshrl.u32 %v2490, 7
        %v2492 = vsub.s32 %v2489, %v2491
        %v2493 = vrot.slane %v2458, %v2492
        %v2494 = vcombine.high %v2493, %v2493
        %v2496 = vunpack.c.l.s4 1983009808
        %v2497 = vunpack.c.0.s8 %v2496
        %v2498 = vlaneseq
        %v2499 = vshrl.u32 %v2498, 7
        %v2500 = vsub.s32 %v2497, %v2499
        %v2501 = vrot.slane %v2470, %v2500
        %v2503 = vunpack.c.l.s4 1983009808
        %v2504 = vunpack.c.0.s8 %v2503
        %v2505 = vlaneseq
        %v2506 = vshrl.u32 %v2505, 7
        %v2507 = vsub.s32 %v2504, %v2506
        %v2508 = vrot.slane %v2478, %v2507
        %v2510 = vunpack.c.l.s4 1983009808
        %v2511 = vunpack.c.0.s8 %v2510
        %v2512 = vlaneseq
        %v2513 = vshrl.u32 %v2512, 7
        %v2514 = vsub.s32 %v2511, %v2513
        %v2515 = vrot.slane %v2486, %v2514
        %v2517 = vunpack.c.l.s4 1983009808
        %v2518 = vunpack.c.0.s8 %v2517
        %v2519 = vlaneseq
        %v2520 = vshrl.u32 %v2519, 7
        %v2521 = vsub.s32 %v2518, %v2520
        %v2522 = vrot.slane %v2494, %v2521
        %v2523 = vunpack.c.l.b16 %v2501
        %v2524 = vunpack.c.l.b16 %v2508
        %v2525 = vunpack.c.l.b16 %v2515
        %v2526 = vunpack.c.l.b16 %v2522
        %v2527 = vrot.slane %v2523, 3
        %v2528 = vrot.slane %v2524, 2
        %v2529 = vsel %vm500, %v2528, %v2527
        %v2530 = vrot.slane %v2525, 1
        %v2531 = vsel %vm503, %v2530, %v2529
        %v2532 = vsel %vm506, %v2526, %v2531
        %v2533 = vpack.c.b16 %v2532, %v2532
        %v2535 = vunpack.c.l.s4 1983009808
        %v2536 = vunpack.c.0.s8 %v2535
        %v2537 = vlaneseq
        %v2538 = vshrl.u32 %v2537, 7
        %v2539 = vsub.s32 %v2536, %v2538
        %v2540 = vrot.slane %v2533, %v2539
        %2541 = vrot.lane.b32.xlu0 %v2540, 33
        %v2542 = vpop.permute.xlu0 %2541
        %vm2544 = vcmask 394504
        %2545 = vst.msk [vmem:[#allocation2 + $0x4] sm:$0x3] %vm2544, %v2542
        %v2546 = vrot.slane %v2172, 3
        %v2547 = vrot.slane %v2173, 2
        %v2548 = vsel %vm500, %v2547, %v2546
        %v2549 = vrot.slane %v2174, 1
        %v2550 = vsel %vm503, %v2549, %v2548
        %v2551 = vsel %vm506, %v2175, %v2550
        %v2552 = vpack.c.b16 %v2551, %v2551
        %v2554 = vunpack.c.l.s4 1983009808
        %v2555 = vunpack.c.0.s8 %v2554
        %v2556 = vlaneseq
        %v2557 = vshrl.u32 %v2556, 7
        %v2558 = vsub.s32 %v2555, %v2557
        %v2559 = vrot.slane %v2552, %v2558
        %2560 = vrot.lane.b32.xlu0 %v2559, 33
        %v2561 = vpop.permute.xlu0 %2560
        %2563 = vst.msk [vmem:[#allocation3 + $0x4] sm:$0x3] %vm2544, %v2561
        %v2564 = vld [vmem:[#allocation2] sm:$0x3f]
        %v2565 = vld [vmem:[#allocation3] sm:$0x3f]
        %v2566 = vld [vmem:[%s1] sm:$0xf]
        %v2567 = vld [vmem:[%s5] sm:$0xf]
        %s2568 = scalar_lea.vmem %s1, 4
        %v2569 = vld [vmem:[%s2568] sm:$0xf]
        %v2571 = vcombine.high %v2564, %v2564
        %v2573 = vunpack.c.l.s4 1983009808
        %v2574 = vunpack.c.0.s8 %v2573
        %v2575 = vlaneseq
        %v2576 = vshrl.u32 %v2575, 7
        %v2577 = vsub.s32 %v2574, %v2576
        %v2578 = vrot.slane %v2564, %v2577
        %v2580 = vunpack.c.l.s4 1983009808
        %v2581 = vunpack.c.0.s8 %v2580
        %v2582 = vlaneseq
        %v2583 = vshrl.u32 %v2582, 7
        %v2584 = vsub.s32 %v2581, %v2583
        %v2585 = vrot.slane %v2571, %v2584
        %v2586 = vcombine.high %v2578, %v2578
        %2587 = vrot.lane.b32.xlu0 %v2578, 127
        %v2588 = vpop.permute.xlu0 %2587
        %2589 = vrot.lane.b32.xlu0 %v2586, 127
        %v2590 = vpop.permute.xlu0 %2589
        %2591 = vrot.lane.b32.xlu0 %v2585, 127
        %v2592 = vpop.permute.xlu0 %2591
        %v2593 = vsel %vm1353, %v2588, %v2590
        %v2594 = vsel %vm1353, %v2590, %v2592
        %vm2595 = vcmask 31744
        %v2597 = vsel %vm2595, %v2569, 0
        %v2600 = vsel %vm390, %v2593, 0
        %v2603 = vsel %vm390, %v2594, 0
        %v2606 = vsel %vm390, %v2592, 0
        %2608 = vmatprep.subr.bf16.mxu0 %v2603
        %2609 = vmatpush1.bf16.msra.mxu0 %v2600
        %2610 = vmatprep.subr.bf16.mxu0 0
        %2611 = vmatpush1.bf16.msra.mxu0 0
        %2612 = vmatprep.subr.bf16.mxu0 0
        %2613 = vmatpush1.bf16.msra.mxu0 0
        %2614 = vmatprep.subr.bf16.mxu0 0
        %2615 = vmatpush1.bf16.msra.mxu0 0
        %2616 = vmatprep.subr.bf16.mxu0 0
        %2617 = vmatpush1.bf16.msra.mxu0 0
        %2618 = vmatprep.subr.bf16.mxu0 0
        %2619 = vmatpush1.bf16.msra.mxu0 0
        %2620 = vmatprep.subr.bf16.mxu0 0
        %2621 = vmatpush1.bf16.msra.mxu0 0
        %2622 = vmatprep.subr.bf16.mxu0 0
        %2623 = vmatpush1.bf16.msra.mxu0 0
        %2624 = vmatprep.subr.bf16.mxu0 0
        %2625 = vmatpush1.bf16.msra.mxu0 0
        %2626 = vmatprep.subr.bf16.mxu0 0
        %2627 = vmatpush1.bf16.msra.mxu0 0
        %2628 = vmatprep.subr.bf16.mxu0 0
        %2629 = vmatpush1.bf16.msra.mxu0 0
        %2630 = vmatprep.subr.bf16.mxu0 0
        %2631 = vmatpush1.bf16.msra.mxu0 0
        %2632 = vmatprep.subr.bf16.mxu0 0
        %2633 = vmatpush1.bf16.msra.mxu0 0
        %2634 = vmatprep.subr.bf16.mxu0 0
        %2635 = vmatpush1.bf16.msra.mxu0 0
        %2636 = vmatprep.subr.bf16.mxu0 0
        %2637 = vmatpush1.bf16.msra.mxu0 0
        %2638 = vmatprep.subr.bf16.mxu0 0
        %2639 = vmatpush1.bf16.msra.mxu0 0
        %2640 = vmatprep.mubr.bf16.mxu0 0
        %2641 = vmatmul.mubr.bf16.gmra.mrb[0].mxu0 %v2597
        %v2642 = vpop.f32.mrb[0].mxu0
        %v2643 = vadd.f32 0.0, %v2642
        %v2644 = vpop.f32.mrb[0].mxu0
        %v2645 = vadd.f32 0.0, %v2644
        %v2646 = vpop.f32.mrb[0].mxu0
        %v2647 = vpop.f32.mrb[0].mxu0
        %2648 = vdwg.mxu0
        %2649 = vmatprep.subr.bf16.mxu0 0
        %2650 = vmatpush1.bf16.msra.mxu0 %v2606
        %2651 = vmatprep.subr.bf16.mxu0 0
        %2652 = vmatpush1.bf16.msra.mxu0 0
        %2653 = vmatprep.subr.bf16.mxu0 0
        %2654 = vmatpush1.bf16.msra.mxu0 0
        %2655 = vmatprep.subr.bf16.mxu0 0
        %2656 = vmatpush1.bf16.msra.mxu0 0
        %2657 = vmatprep.subr.bf16.mxu0 0
        %2658 = vmatpush1.bf16.msra.mxu0 0
        %2659 = vmatprep.subr.bf16.mxu0 0
        %2660 = vmatpush1.bf16.msra.mxu0 0
        %2661 = vmatprep.subr.bf16.mxu0 0
        %2662 = vmatpush1.bf16.msra.mxu0 0
        %2663 = vmatprep.subr.bf16.mxu0 0
        %2664 = vmatpush1.bf16.msra.mxu0 0
        %2665 = vmatprep.subr.bf16.mxu0 0
        %2666 = vmatpush1.bf16.msra.mxu0 0
        %2667 = vmatprep.subr.bf16.mxu0 0
        %2668 = vmatpush1.bf16.msra.mxu0 0
        %2669 = vmatprep.subr.bf16.mxu0 0
        %2670 = vmatpush1.bf16.msra.mxu0 0
        %2671 = vmatprep.subr.bf16.mxu0 0
        %2672 = vmatpush1.bf16.msra.mxu0 0
        %2673 = vmatprep.subr.bf16.mxu0 0
        %2674 = vmatpush1.bf16.msra.mxu0 0
        %2675 = vmatprep.subr.bf16.mxu0 0
        %2676 = vmatpush1.bf16.msra.mxu0 0
        %2677 = vmatprep.subr.bf16.mxu0 0
        %2678 = vmatpush1.bf16.msra.mxu0 0
        %2679 = vmatprep.subr.bf16.mxu0 0
        %2680 = vmatpush1.bf16.msra.mxu0 0
        %2681 = vmatprep.mubr.bf16.mxu0 0
        %2682 = vmatmul.mubr.bf16.gmra.mrb[0].mxu0 %v2597
        %v2683 = vpop.f32.mrb[0].mxu0
        %v2684 = vadd.f32 0.0, %v2683
        %v2685 = vpop.f32.mrb[0].mxu0
        %v2686 = vpop.f32.mrb[0].mxu0
        %v2687 = vpop.f32.mrb[0].mxu0
        %2688 = vdwg.mxu0
        %v2690 = vsel %vm2595, %v2566, 0
        %v2693 = vsel %vm390, %v2578, 0
        %v2696 = vsel %vm390, %v2586, 0
        %v2699 = vsel %vm390, %v2585, 0
        %2701 = vmatprep.subr.bf16.mxu0 %v2696
        %2702 = vmatpush1.bf16.msra.mxu0 %v2693
        %2703 = vmatprep.subr.bf16.mxu0 0
        %2704 = vmatpush1.bf16.msra.mxu0 0
        %2705 = vmatprep.subr.bf16.mxu0 0
        %2706 = vmatpush1.bf16.msra.mxu0 0
        %2707 = vmatprep.subr.bf16.mxu0 0
        %2708 = vmatpush1.bf16.msra.mxu0 0
        %2709 = vmatprep.subr.bf16.mxu0 0
        %2710 = vmatpush1.bf16.msra.mxu0 0
        %2711 = vmatprep.subr.bf16.mxu0 0
        %2712 = vmatpush1.bf16.msra.mxu0 0
        %2713 = vmatprep.subr.bf16.mxu0 0
        %2714 = vmatpush1.bf16.msra.mxu0 0
        %2715 = vmatprep.subr.bf16.mxu0 0
        %2716 = vmatpush1.bf16.msra.mxu0 0
        %2717 = vmatprep.subr.bf16.mxu0 0
        %2718 = vmatpush1.bf16.msra.mxu0 0
        %2719 = vmatprep.subr.bf16.mxu0 0
        %2720 = vmatpush1.bf16.msra.mxu0 0
        %2721 = vmatprep.subr.bf16.mxu0 0
        %2722 = vmatpush1.bf16.msra.mxu0 0
        %2723 = vmatprep.subr.bf16.mxu0 0
        %2724 = vmatpush1.bf16.msra.mxu0 0
        %2725 = vmatprep.subr.bf16.mxu0 0
        %2726 = vmatpush1.bf16.msra.mxu0 0
        %2727 = vmatprep.subr.bf16.mxu0 0
        %2728 = vmatpush1.bf16.msra.mxu0 0
        %2729 = vmatprep.subr.bf16.mxu0 0
        %2730 = vmatpush1.bf16.msra.mxu0 0
        %2731 = vmatprep.subr.bf16.mxu0 0
        %2732 = vmatpush1.bf16.msra.mxu0 0
        %2733 = vmatprep.mubr.bf16.mxu0 0
        %2734 = vmatmul.mubr.bf16.gmra.mrb[0].mxu0 %v2690
        %v2735 = vpop.f32.mrb[0].mxu0
        %v2736 = vadd.f32 %v2643, %v2735
        %v2737 = vpop.f32.mrb[0].mxu0
        %v2738 = vadd.f32 %v2645, %v2737
        %v2739 = vpop.f32.mrb[0].mxu0
        %v2740 = vpop.f32.mrb[0].mxu0
        %2741 = vdwg.mxu0
        %2742 = vmatprep.subr.bf16.mxu0 0
        %2743 = vmatpush1.bf16.msra.mxu0 %v2699
        %2744 = vmatprep.subr.bf16.mxu0 0
        %2745 = vmatpush1.bf16.msra.mxu0 0
        %2746 = vmatprep.subr.bf16.mxu0 0
        %2747 = vmatpush1.bf16.msra.mxu0 0
        %2748 = vmatprep.subr.bf16.mxu0 0
        %2749 = vmatpush1.bf16.msra.mxu0 0
        %2750 = vmatprep.subr.bf16.mxu0 0
        %2751 = vmatpush1.bf16.msra.mxu0 0
        %2752 = vmatprep.subr.bf16.mxu0 0
        %2753 = vmatpush1.bf16.msra.mxu0 0
        %2754 = vmatprep.subr.bf16.mxu0 0
        %2755 = vmatpush1.bf16.msra.mxu0 0
        %2756 = vmatprep.subr.bf16.mxu0 0
        %2757 = vmatpush1.bf16.msra.mxu0 0
        %2758 = vmatprep.subr.bf16.mxu0 0
        %2759 = vmatpush1.bf16.msra.mxu0 0
        %2760 = vmatprep.subr.bf16.mxu0 0
        %2761 = vmatpush1.bf16.msra.mxu0 0
        %2762 = vmatprep.subr.bf16.mxu0 0
        %2763 = vmatpush1.bf16.msra.mxu0 0
        %2764 = vmatprep.subr.bf16.mxu0 0
        %2765 = vmatpush1.bf16.msra.mxu0 0
        %2766 = vmatprep.subr.bf16.mxu0 0
        %2767 = vmatpush1.bf16.msra.mxu0 0
        %2768 = vmatprep.subr.bf16.mxu0 0
        %2769 = vmatpush1.bf16.msra.mxu0 0
        %2770 = vmatprep.subr.bf16.mxu0 0
        %2771 = vmatpush1.bf16.msra.mxu0 0
        %2772 = vmatprep.subr.bf16.mxu0 0
        %2773 = vmatpush1.bf16.msra.mxu0 0
        %2774 = vmatprep.mubr.bf16.mxu0 0
        %2775 = vmatmul.mubr.bf16.gmra.mrb[0].mxu0 %v2690
        %v2776 = vpop.f32.mrb[0].mxu0
        %v2777 = vadd.f32 %v2684, %v2776
        %v2778 = vpop.f32.mrb[0].mxu0
        %v2779 = vpop.f32.mrb[0].mxu0
        %v2780 = vpop.f32.mrb[0].mxu0
        %2781 = vdwg.mxu0
        %s2782 = scalar_lea.vmem %s5, 4
        %v2783 = vld [vmem:[%s2782] sm:$0xf]
        %v2785 = vcombine.high %v2565, %v2565
        %v2787 = vunpack.c.l.s4 1983009808
        %v2788 = vunpack.c.0.s8 %v2787
        %v2789 = vlaneseq
        %v2790 = vshrl.u32 %v2789, 7
        %v2791 = vsub.s32 %v2788, %v2790
        %v2792 = vrot.slane %v2565, %v2791
        %v2794 = vunpack.c.l.s4 1983009808
        %v2795 = vunpack.c.0.s8 %v2794
        %v2796 = vlaneseq
        %v2797 = vshrl.u32 %v2796, 7
        %v2798 = vsub.s32 %v2795, %v2797
        %v2799 = vrot.slane %v2785, %v2798
        %v2800 = vcombine.high %v2792, %v2792
        %2801 = vrot.lane.b32.xlu0 %v2792, 127
        %v2802 = vpop.permute.xlu0 %2801
        %2803 = vrot.lane.b32.xlu0 %v2800, 127
        %v2804 = vpop.permute.xlu0 %2803
        %2805 = vrot.lane.b32.xlu0 %v2799, 127
        %v2806 = vpop.permute.xlu0 %2805
        %v2807 = vsel %vm1353, %v2802, %v2804
        %v2808 = vsel %vm1353, %v2804, %v2806
        %v2810 = vsel %vm2595, %v2783, 0
        %v2813 = vsel %vm390, %v2807, 0
        %v2816 = vsel %vm390, %v2808, 0
        %v2819 = vsel %vm390, %v2806, 0
        %2821 = vmatprep.subr.bf16.mxu0 %v2816
        %2822 = vmatpush1.bf16.msra.mxu0 %v2813
        %2823 = vmatprep.subr.bf16.mxu0 0
        %2824 = vmatpush1.bf16.msra.mxu0 0
        %2825 = vmatprep.subr.bf16.mxu0 0
        %2826 = vmatpush1.bf16.msra.mxu0 0
        %2827 = vmatprep.subr.bf16.mxu0 0
        %2828 = vmatpush1.bf16.msra.mxu0 0
        %2829 = vmatprep.subr.bf16.mxu0 0
        %2830 = vmatpush1.bf16.msra.mxu0 0
        %2831 = vmatprep.subr.bf16.mxu0 0
        %2832 = vmatpush1.bf16.msra.mxu0 0
        %2833 = vmatprep.subr.bf16.mxu0 0
        %2834 = vmatpush1.bf16.msra.mxu0 0
        %2835 = vmatprep.subr.bf16.mxu0 0
        %2836 = vmatpush1.bf16.msra.mxu0 0
        %2837 = vmatprep.subr.bf16.mxu0 0
        %2838 = vmatpush1.bf16.msra.mxu0 0
        %2839 = vmatprep.subr.bf16.mxu0 0
        %2840 = vmatpush1.bf16.msra.mxu0 0
        %2841 = vmatprep.subr.bf16.mxu0 0
        %2842 = vmatpush1.bf16.msra.mxu0 0
        %2843 = vmatprep.subr.bf16.mxu0 0
        %2844 = vmatpush1.bf16.msra.mxu0 0
        %2845 = vmatprep.subr.bf16.mxu0 0
        %2846 = vmatpush1.bf16.msra.mxu0 0
        %2847 = vmatprep.subr.bf16.mxu0 0
        %2848 = vmatpush1.bf16.msra.mxu0 0
        %2849 = vmatprep.subr.bf16.mxu0 0
        %2850 = vmatpush1.bf16.msra.mxu0 0
        %2851 = vmatprep.subr.bf16.mxu0 0
        %2852 = vmatpush1.bf16.msra.mxu0 0
        %2853 = vmatprep.mubr.bf16.mxu0 0
        %2854 = vmatmul.mubr.bf16.gmra.mrb[0].mxu0 %v2810
        %v2855 = vpop.f32.mrb[0].mxu0
        %v2856 = vadd.f32 0.0, %v2855
        %v2857 = vpop.f32.mrb[0].mxu0
        %v2858 = vadd.f32 0.0, %v2857
        %v2859 = vpop.f32.mrb[0].mxu0
        %v2860 = vpop.f32.mrb[0].mxu0
        %2861 = vdwg.mxu0
        %2862 = vmatprep.subr.bf16.mxu0 0
        %2863 = vmatpush1.bf16.msra.mxu0 %v2819
        %2864 = vmatprep.subr.bf16.mxu0 0
        %2865 = vmatpush1.bf16.msra.mxu0 0
        %2866 = vmatprep.subr.bf16.mxu0 0
        %2867 = vmatpush1.bf16.msra.mxu0 0
        %2868 = vmatprep.subr.bf16.mxu0 0
        %2869 = vmatpush1.bf16.msra.mxu0 0
        %2870 = vmatprep.subr.bf16.mxu0 0
        %2871 = vmatpush1.bf16.msra.mxu0 0
        %2872 = vmatprep.subr.bf16.mxu0 0
        %2873 = vmatpush1.bf16.msra.mxu0 0
        %2874 = vmatprep.subr.bf16.mxu0 0
        %2875 = vmatpush1.bf16.msra.mxu0 0
        %2876 = vmatprep.subr.bf16.mxu0 0
        %2877 = vmatpush1.bf16.msra.mxu0 0
        %2878 = vmatprep.subr.bf16.mxu0 0
        %2879 = vmatpush1.bf16.msra.mxu0 0
        %2880 = vmatprep.subr.bf16.mxu0 0
        %2881 = vmatpush1.bf16.msra.mxu0 0
        %2882 = vmatprep.subr.bf16.mxu0 0
        %2883 = vmatpush1.bf16.msra.mxu0 0
        %2884 = vmatprep.subr.bf16.mxu0 0
        %2885 = vmatpush1.bf16.msra.mxu0 0
        %2886 = vmatprep.subr.bf16.mxu0 0
        %2887 = vmatpush1.bf16.msra.mxu0 0
        %2888 = vmatprep.subr.bf16.mxu0 0
        %2889 = vmatpush1.bf16.msra.mxu0 0
        %2890 = vmatprep.subr.bf16.mxu0 0
        %2891 = vmatpush1.bf16.msra.mxu0 0
        %2892 = vmatprep.subr.bf16.mxu0 0
        %2893 = vmatpush1.bf16.msra.mxu0 0
        %2894 = vmatprep.mubr.bf16.mxu0 0
        %2895 = vmatmul.mubr.bf16.gmra.mrb[0].mxu0 %v2810
        %v2896 = vpop.f32.mrb[0].mxu0
        %v2897 = vadd.f32 0.0, %v2896
        %v2898 = vpop.f32.mrb[0].mxu0
        %v2899 = vpop.f32.mrb[0].mxu0
        %v2900 = vpop.f32.mrb[0].mxu0
        %2901 = vdwg.mxu0
        %v2903 = vsel %vm2595, %v2567, 0
        %v2906 = vsel %vm390, %v2792, 0
        %v2909 = vsel %vm390, %v2800, 0
        %v2912 = vsel %vm390, %v2799, 0
        %2914 = vmatprep.subr.bf16.mxu0 %v2909
        %2915 = vmatpush1.bf16.msra.mxu0 %v2906
        %2916 = vmatprep.subr.bf16.mxu0 0
        %2917 = vmatpush1.bf16.msra.mxu0 0
        %2918 = vmatprep.subr.bf16.mxu0 0
        %2919 = vmatpush1.bf16.msra.mxu0 0
        %2920 = vmatprep.subr.bf16.mxu0 0
        %2921 = vmatpush1.bf16.msra.mxu0 0
        %2922 = vmatprep.subr.bf16.mxu0 0
        %2923 = vmatpush1.bf16.msra.mxu0 0
        %2924 = vmatprep.subr.bf16.mxu0 0
        %2925 = vmatpush1.bf16.msra.mxu0 0
        %2926 = vmatprep.subr.bf16.mxu0 0
        %2927 = vmatpush1.bf16.msra.mxu0 0
        %2928 = vmatprep.subr.bf16.mxu0 0
        %2929 = vmatpush1.bf16.msra.mxu0 0
        %2930 = vmatprep.subr.bf16.mxu0 0
        %2931 = vmatpush1.bf16.msra.mxu0 0
        %2932 = vmatprep.subr.bf16.mxu0 0
        %2933 = vmatpush1.bf16.msra.mxu0 0
        %2934 = vmatprep.subr.bf16.mxu0 0
        %2935 = vmatpush1.bf16.msra.mxu0 0
        %2936 = vmatprep.subr.bf16.mxu0 0
        %2937 = vmatpush1.bf16.msra.mxu0 0
        %2938 = vmatprep.subr.bf16.mxu0 0
        %2939 = vmatpush1.bf16.msra.mxu0 0
        %2940 = vmatprep.subr.bf16.mxu0 0
        %2941 = vmatpush1.bf16.msra.mxu0 0
        %2942 = vmatprep.subr.bf16.mxu0 0
        %2943 = vmatpush1.bf16.msra.mxu0 0
        %2944 = vmatprep.subr.bf16.mxu0 0
        %2945 = vmatpush1.bf16.msra.mxu0 0
        %2946 = vmatprep.mubr.bf16.mxu0 0
        %2947 = vmatmul.mubr.bf16.gmra.mrb[0].mxu0 %v2903
        %v2948 = vpop.f32.mrb[0].mxu0
        %v2949 = vadd.f32 %v2856, %v2948
        %v2950 = vpop.f32.mrb[0].mxu0
        %v2951 = vadd.f32 %v2858, %v2950
        %v2952 = vpop.f32.mrb[0].mxu0
        %v2953 = vpop.f32.mrb[0].mxu0
        %2954 = vdwg.mxu0
        %2955 = vmatprep.subr.bf16.mxu0 0
        %2956 = vmatpush1.bf16.msra.mxu0 %v2912
        %2957 = vmatprep.subr.bf16.mxu0 0
        %2958 = vmatpush1.bf16.msra.mxu0 0
        %2959 = vmatprep.subr.bf16.mxu0 0
        %2960 = vmatpush1.bf16.msra.mxu0 0
        %2961 = vmatprep.subr.bf16.mxu0 0
        %2962 = vmatpush1.bf16.msra.mxu0 0
        %2963 = vmatprep.subr.bf16.mxu0 0
        %2964 = vmatpush1.bf16.msra.mxu0 0
        %2965 = vmatprep.subr.bf16.mxu0 0
        %2966 = vmatpush1.bf16.msra.mxu0 0
        %2967 = vmatprep.subr.bf16.mxu0 0
        %2968 = vmatpush1.bf16.msra.mxu0 0
        %2969 = vmatprep.subr.bf16.mxu0 0
        %2970 = vmatpush1.bf16.msra.mxu0 0
        %2971 = vmatprep.subr.bf16.mxu0 0
        %2972 = vmatpush1.bf16.msra.mxu0 0
        %2973 = vmatprep.subr.bf16.mxu0 0
        %2974 = vmatpush1.bf16.msra.mxu0 0
        %2975 = vmatprep.subr.bf16.mxu0 0
        %2976 = vmatpush1.bf16.msra.mxu0 0
        %2977 = vmatprep.subr.bf16.mxu0 0
        %2978 = vmatpush1.bf16.msra.mxu0 0
        %2979 = vmatprep.subr.bf16.mxu0 0
        %2980 = vmatpush1.bf16.msra.mxu0 0
        %2981 = vmatprep.subr.bf16.mxu0 0
        %2982 = vmatpush1.bf16.msra.mxu0 0
        %2983 = vmatprep.subr.bf16.mxu0 0
        %2984 = vmatpush1.bf16.msra.mxu0 0
        %2985 = vmatprep.subr.bf16.mxu0 0
        %2986 = vmatpush1.bf16.msra.mxu0 0
        %2987 = vmatprep.mubr.bf16.mxu0 0
        %2988 = vmatmul.mubr.bf16.gmra.mrb[0].mxu0 %v2903
        %v2989 = vpop.f32.mrb[0].mxu0
        %v2990 = vadd.f32 %v2897, %v2989
        %v2991 = vpop.f32.mrb[0].mxu0
        %v2992 = vpop.f32.mrb[0].mxu0
        %v2993 = vpop.f32.mrb[0].mxu0
        %2994 = vdwg.mxu0
        %v2995 = vld [vmem:[#allocation2] sm:$0x3f]
        %v2996 = vld [vmem:[#allocation3] sm:$0x3f]
        %s2997 = scalar_lea.vmem %s1, 8
        %v2998 = vld [vmem:[%s2997] sm:$0xf]
        %v3000 = vcombine.high %v2995, %v2995
        %v3002 = vunpack.c.l.s4 1983009808
        %v3003 = vunpack.c.0.s8 %v3002
        %v3004 = vlaneseq
        %v3005 = vshrl.u32 %v3004, 7
        %v3006 = vsub.s32 %v3003, %v3005
        %v3007 = vrot.slane %v2995, %v3006
        %v3009 = vunpack.c.l.s4 1983009808
        %v3010 = vunpack.c.0.s8 %v3009
        %v3011 = vlaneseq
        %v3012 = vshrl.u32 %v3011, 7
        %v3013 = vsub.s32 %v3010, %v3012
        %v3014 = vrot.slane %v3000, %v3013
        %v3015 = vcombine.high %v3007, %v3007
        %3016 = vrot.lane.b32.xlu0 %v3007, 126
        %v3017 = vpop.permute.xlu0 %3016
        %3018 = vrot.lane.b32.xlu0 %v3015, 126
        %v3019 = vpop.permute.xlu0 %3018
        %3020 = vrot.lane.b32.xlu0 %v3014, 126
        %v3021 = vpop.permute.xlu0 %3020
        %vm3022 = vcmask 1031168
        %v3023 = vsel %vm3022, %v3017, %v3019
        %v3024 = vsel %vm3022, %v3019, %v3021
        %v3026 = vsel %vm2595, %v2998, 0
        %v3029 = vsel %vm390, %v3023, 0
        %v3032 = vsel %vm390, %v3024, 0
        %v3035 = vsel %vm390, %v3021, 0
        %3037 = vmatprep.subr.bf16.mxu0 %v3032
        %3038 = vmatpush1.bf16.msra.mxu0 %v3029
        %3039 = vmatprep.subr.bf16.mxu0 0
        %3040 = vmatpush1.bf16.msra.mxu0 0
        %3041 = vmatprep.subr.bf16.mxu0 0
        %3042 = vmatpush1.bf16.msra.mxu0 0
        %3043 = vmatprep.subr.bf16.mxu0 0
        %3044 = vmatpush1.bf16.msra.mxu0 0
        %3045 = vmatprep.subr.bf16.mxu0 0
        %3046 = vmatpush1.bf16.msra.mxu0 0
        %3047 = vmatprep.subr.bf16.mxu0 0
        %3048 = vmatpush1.bf16.msra.mxu0 0
        %3049 = vmatprep.subr.bf16.mxu0 0
        %3050 = vmatpush1.bf16.msra.mxu0 0
        %3051 = vmatprep.subr.bf16.mxu0 0
        %3052 = vmatpush1.bf16.msra.mxu0 0
        %3053 = vmatprep.subr.bf16.mxu0 0
        %3054 = vmatpush1.bf16.msra.mxu0 0
        %3055 = vmatprep.subr.bf16.mxu0 0
        %3056 = vmatpush1.bf16.msra.mxu0 0
        %3057 = vmatprep.subr.bf16.mxu0 0
        %3058 = vmatpush1.bf16.msra.mxu0 0
        %3059 = vmatprep.subr.bf16.mxu0 0
        %3060 = vmatpush1.bf16.msra.mxu0 0
        %3061 = vmatprep.subr.bf16.mxu0 0
        %3062 = vmatpush1.bf16.msra.mxu0 0
        %3063 = vmatprep.subr.bf16.mxu0 0
        %3064 = vmatpush1.bf16.msra.mxu0 0
        %3065 = vmatprep.subr.bf16.mxu0 0
        %3066 = vmatpush1.bf16.msra.mxu0 0
        %3067 = vmatprep.subr.bf16.mxu0 0
        %3068 = vmatpush1.bf16.msra.mxu0 0
        %3069 = vmatprep.mubr.bf16.mxu0 0
        %3070 = vmatmul.mubr.bf16.gmra.mrb[0].mxu0 %v3026
        %v3071 = vpop.f32.mrb[0].mxu0
        %v3072 = vadd.f32 0.0, %v3071
        %v3073 = vpop.f32.mrb[0].mxu0
        %v3074 = vadd.f32 0.0, %v3073
        %v3075 = vpop.f32.mrb[0].mxu0
        %v3076 = vpop.f32.mrb[0].mxu0
        %3077 = vdwg.mxu0
        %3078 = vmatprep.subr.bf16.mxu0 0
        %3079 = vmatpush1.bf16.msra.mxu0 %v3035
        %3080 = vmatprep.subr.bf16.mxu0 0
        %3081 = vmatpush1.bf16.msra.mxu0 0
        %3082 = vmatprep.subr.bf16.mxu0 0
        %3083 = vmatpush1.bf16.msra.mxu0 0
        %3084 = vmatprep.subr.bf16.mxu0 0
        %3085 = vmatpush1.bf16.msra.mxu0 0
        %3086 = vmatprep.subr.bf16.mxu0 0
        %3087 = vmatpush1.bf16.msra.mxu0 0
        %3088 = vmatprep.subr.bf16.mxu0 0
        %3089 = vmatpush1.bf16.msra.mxu0 0
        %3090 = vmatprep.subr.bf16.mxu0 0
        %3091 = vmatpush1.bf16.msra.mxu0 0
        %3092 = vmatprep.subr.bf16.mxu0 0
        %3093 = vmatpush1.bf16.msra.mxu0 0
        %3094 = vmatprep.subr.bf16.mxu0 0
        %3095 = vmatpush1.bf16.msra.mxu0 0
        %3096 = vmatprep.subr.bf16.mxu0 0
        %3097 = vmatpush1.bf16.msra.mxu0 0
        %3098 = vmatprep.subr.bf16.mxu0 0
        %3099 = vmatpush1.bf16.msra.mxu0 0
        %3100 = vmatprep.subr.bf16.mxu0 0
        %3101 = vmatpush1.bf16.msra.mxu0 0
        %3102 = vmatprep.subr.bf16.mxu0 0
        %3103 = vmatpush1.bf16.msra.mxu0 0
        %3104 = vmatprep.subr.bf16.mxu0 0
        %3105 = vmatpush1.bf16.msra.mxu0 0
        %3106 = vmatprep.subr.bf16.mxu0 0
        %3107 = vmatpush1.bf16.msra.mxu0 0
        %3108 = vmatprep.subr.bf16.mxu0 0
        %3109 = vmatpush1.bf16.msra.mxu0 0
        %3110 = vmatprep.mubr.bf16.mxu0 0
        %3111 = vmatmul.mubr.bf16.gmra.mrb[0].mxu0 %v3026
        %v3112 = vpop.f32.mrb[0].mxu0
        %v3113 = vadd.f32 0.0, %v3112
        %v3114 = vpop.f32.mrb[0].mxu0
        %v3115 = vpop.f32.mrb[0].mxu0
        %v3116 = vpop.f32.mrb[0].mxu0
        %3117 = vdwg.mxu0
        %v3118 = vadd.f32 %v2736, %v3072
        %v3119 = vadd.f32 %v2738, %v3074
        %v3120 = vadd.f32 %v2777, %v3113
        %s3121 = scalar_lea.vmem %s5, 8
        %v3122 = vld [vmem:[%s3121] sm:$0xf]
        %v3124 = vcombine.high %v2996, %v2996
        %v3126 = vunpack.c.l.s4 1983009808
        %v3127 = vunpack.c.0.s8 %v3126
        %v3128 = vlaneseq
        %v3129 = vshrl.u32 %v3128, 7
        %v3130 = vsub.s32 %v3127, %v3129
        %v3131 = vrot.slane %v2996, %v3130
        %v3133 = vunpack.c.l.s4 1983009808
        %v3134 = vunpack.c.0.s8 %v3133
        %v3135 = vlaneseq
        %v3136 = vshrl.u32 %v3135, 7
        %v3137 = vsub.s32 %v3134, %v3136
        %v3138 = vrot.slane %v3124, %v3137
        %v3139 = vcombine.high %v3131, %v3131
        %3140 = vrot.lane.b32.xlu0 %v3131, 126
        %v3141 = vpop.permute.xlu0 %3140
        %3142 = vrot.lane.b32.xlu0 %v3139, 126
        %v3143 = vpop.permute.xlu0 %3142
        %3144 = vrot.lane.b32.xlu0 %v3138, 126
        %v3145 = vpop.permute.xlu0 %3144
        %v3146 = vsel %vm3022, %v3141, %v3143
        %v3147 = vsel %vm3022, %v3143, %v3145
        %v3149 = vsel %vm2595, %v3122, 0
        %v3152 = vsel %vm390, %v3146, 0
        %v3155 = vsel %vm390, %v3147, 0
        %v3158 = vsel %vm390, %v3145, 0
        %3160 = vmatprep.subr.bf16.mxu0 %v3155
        %3161 = vmatpush1.bf16.msra.mxu0 %v3152
        %3162 = vmatprep.subr.bf16.mxu0 0
        %3163 = vmatpush1.bf16.msra.mxu0 0
        %3164 = vmatprep.subr.bf16.mxu0 0
        %3165 = vmatpush1.bf16.msra.mxu0 0
        %3166 = vmatprep.subr.bf16.mxu0 0
        %3167 = vmatpush1.bf16.msra.mxu0 0
        %3168 = vmatprep.subr.bf16.mxu0 0
        %3169 = vmatpush1.bf16.msra.mxu0 0
        %3170 = vmatprep.subr.bf16.mxu0 0
        %3171 = vmatpush1.bf16.msra.mxu0 0
        %3172 = vmatprep.subr.bf16.mxu0 0
        %3173 = vmatpush1.bf16.msra.mxu0 0
        %3174 = vmatprep.subr.bf16.mxu0 0
        %3175 = vmatpush1.bf16.msra.mxu0 0
        %3176 = vmatprep.subr.bf16.mxu0 0
        %3177 = vmatpush1.bf16.msra.mxu0 0
        %3178 = vmatprep.subr.bf16.mxu0 0
        %3179 = vmatpush1.bf16.msra.mxu0 0
        %3180 = vmatprep.subr.bf16.mxu0 0
        %3181 = vmatpush1.bf16.msra.mxu0 0
        %3182 = vmatprep.subr.bf16.mxu0 0
        %3183 = vmatpush1.bf16.msra.mxu0 0
        %3184 = vmatprep.subr.bf16.mxu0 0
        %3185 = vmatpush1.bf16.msra.mxu0 0
        %3186 = vmatprep.subr.bf16.mxu0 0
        %3187 = vmatpush1.bf16.msra.mxu0 0
        %3188 = vmatprep.subr.bf16.mxu0 0
        %3189 = vmatpush1.bf16.msra.mxu0 0
        %3190 = vmatprep.subr.bf16.mxu0 0
        %3191 = vmatpush1.bf16.msra.mxu0 0
        %3192 = vmatprep.mubr.bf16.mxu0 0
        %3193 = vmatmul.mubr.bf16.gmra.mrb[0].mxu0 %v3149
        %v3194 = vpop.f32.mrb[0].mxu0
        %v3195 = vadd.f32 0.0, %v3194
        %v3196 = vpop.f32.mrb[0].mxu0
        %v3197 = vadd.f32 0.0, %v3196
        %v3198 = vpop.f32.mrb[0].mxu0
        %v3199 = vpop.f32.mrb[0].mxu0
        %3200 = vdwg.mxu0
        %3201 = vmatprep.subr.bf16.mxu0 0
        %3202 = vmatpush1.bf16.msra.mxu0 %v3158
        %3203 = vmatprep.subr.bf16.mxu0 0
        %3204 = vmatpush1.bf16.msra.mxu0 0
        %3205 = vmatprep.subr.bf16.mxu0 0
        %3206 = vmatpush1.bf16.msra.mxu0 0
        %3207 = vmatprep.subr.bf16.mxu0 0
        %3208 = vmatpush1.bf16.msra.mxu0 0
        %3209 = vmatprep.subr.bf16.mxu0 0
        %3210 = vmatpush1.bf16.msra.mxu0 0
        %3211 = vmatprep.subr.bf16.mxu0 0
        %3212 = vmatpush1.bf16.msra.mxu0 0
        %3213 = vmatprep.subr.bf16.mxu0 0
        %3214 = vmatpush1.bf16.msra.mxu0 0
        %3215 = vmatprep.subr.bf16.mxu0 0
        %3216 = vmatpush1.bf16.msra.mxu0 0
        %3217 = vmatprep.subr.bf16.mxu0 0
        %3218 = vmatpush1.bf16.msra.mxu0 0
        %3219 = vmatprep.subr.bf16.mxu0 0
        %3220 = vmatpush1.bf16.msra.mxu0 0
        %3221 = vmatprep.subr.bf16.mxu0 0
        %3222 = vmatpush1.bf16.msra.mxu0 0
        %3223 = vmatprep.subr.bf16.mxu0 0
        %3224 = vmatpush1.bf16.msra.mxu0 0
        %3225 = vmatprep.subr.bf16.mxu0 0
        %3226 = vmatpush1.bf16.msra.mxu0 0
        %3227 = vmatprep.subr.bf16.mxu0 0
        %3228 = vmatpush1.bf16.msra.mxu0 0
        %3229 = vmatprep.subr.bf16.mxu0 0
        %3230 = vmatpush1.bf16.msra.mxu0 0
        %3231 = vmatprep.subr.bf16.mxu0 0
        %3232 = vmatpush1.bf16.msra.mxu0 0
        %3233 = vmatprep.mubr.bf16.mxu0 0
        %3234 = vmatmul.mubr.bf16.gmra.mrb[0].mxu0 %v3149
        %v3235 = vpop.f32.mrb[0].mxu0
        %v3236 = vadd.f32 0.0, %v3235
        %v3237 = vpop.f32.mrb[0].mxu0
        %v3238 = vpop.f32.mrb[0].mxu0
        %v3239 = vpop.f32.mrb[0].mxu0
        %3240 = vdwg.mxu0
        %v3241 = vadd.f32 %v2949, %v3195
        %v3242 = vadd.f32 %v2951, %v3197
        %v3243 = vadd.f32 %v2990, %v3236
        %v3244 = vld [vmem:[#allocation2] sm:$0x3f]
        %v3245 = vld [vmem:[#allocation3] sm:$0x3f]
        %s3246 = scalar_lea.vmem %s1, 12
        %v3247 = vld [vmem:[%s3246] sm:$0xf]
        %v3249 = vcombine.high %v3244, %v3244
        %v3251 = vunpack.c.l.s4 1983009808
        %v3252 = vunpack.c.0.s8 %v3251
        %v3253 = vlaneseq
        %v3254 = vshrl.u32 %v3253, 7
        %v3255 = vsub.s32 %v3252, %v3254
        %v3256 = vrot.slane %v3244, %v3255
        %v3258 = vunpack.c.l.s4 1983009808
        %v3259 = vunpack.c.0.s8 %v3258
        %v3260 = vlaneseq
        %v3261 = vshrl.u32 %v3260, 7
        %v3262 = vsub.s32 %v3259, %v3261
        %v3263 = vrot.slane %v3249, %v3262
        %v3264 = vcombine.high %v3256, %v3256
        %3265 = vrot.lane.b32.xlu0 %v3256, 110
        %v3266 = vpop.permute.xlu0 %3265
        %3267 = vrot.lane.b32.xlu0 %v3264, 110
        %v3268 = vpop.permute.xlu0 %3267
        %3269 = vrot.lane.b32.xlu0 %v3263, 110
        %v3270 = vpop.permute.xlu0 %3269
        %vm3271 = vcmask 900096
        %v3272 = vsel %vm3271, %v3266, %v3268
        %v3273 = vsel %vm3271, %v3268, %v3270
        %v3275 = vsel %vm2595, %v3247, 0
        %v3278 = vsel %vm390, %v3272, 0
        %v3281 = vsel %vm390, %v3273, 0
        %v3284 = vsel %vm390, %v3270, 0
        %3286 = vmatprep.subr.bf16.mxu0 %v3281
        %3287 = vmatpush1.bf16.msra.mxu0 %v3278
        %3288 = vmatprep.subr.bf16.mxu0 0
        %3289 = vmatpush1.bf16.msra.mxu0 0
        %3290 = vmatprep.subr.bf16.mxu0 0
        %3291 = vmatpush1.bf16.msra.mxu0 0
        %3292 = vmatprep.subr.bf16.mxu0 0
        %3293 = vmatpush1.bf16.msra.mxu0 0
        %3294 = vmatprep.subr.bf16.mxu0 0
        %3295 = vmatpush1.bf16.msra.mxu0 0
        %3296 = vmatprep.subr.bf16.mxu0 0
        %3297 = vmatpush1.bf16.msra.mxu0 0
        %3298 = vmatprep.subr.bf16.mxu0 0
        %3299 = vmatpush1.bf16.msra.mxu0 0
        %3300 = vmatprep.subr.bf16.mxu0 0
        %3301 = vmatpush1.bf16.msra.mxu0 0
        %3302 = vmatprep.subr.bf16.mxu0 0
        %3303 = vmatpush1.bf16.msra.mxu0 0
        %3304 = vmatprep.subr.bf16.mxu0 0
        %3305 = vmatpush1.bf16.msra.mxu0 0
        %3306 = vmatprep.subr.bf16.mxu0 0
        %3307 = vmatpush1.bf16.msra.mxu0 0
        %3308 = vmatprep.subr.bf16.mxu0 0
        %3309 = vmatpush1.bf16.msra.mxu0 0
        %3310 = vmatprep.subr.bf16.mxu0 0
        %3311 = vmatpush1.bf16.msra.mxu0 0
        %3312 = vmatprep.subr.bf16.mxu0 0
        %3313 = vmatpush1.bf16.msra.mxu0 0
        %3314 = vmatprep.subr.bf16.mxu0 0
        %3315 = vmatpush1.bf16.msra.mxu0 0
        %3316 = vmatprep.subr.bf16.mxu0 0
        %3317 = vmatpush1.bf16.msra.mxu0 0
        %3318 = vmatprep.mubr.bf16.mxu0 0
        %3319 = vmatmul.mubr.bf16.gmra.mrb[0].mxu0 %v3275
        %v3320 = vpop.f32.mrb[0].mxu0
        %v3321 = vadd.f32 0.0, %v3320
        %v3322 = vpop.f32.mrb[0].mxu0
        %v3323 = vadd.f32 0.0, %v3322
        %v3324 = vpop.f32.mrb[0].mxu0
        %v3325 = vpop.f32.mrb[0].mxu0
        %3326 = vdwg.mxu0
        %3327 = vmatprep.subr.bf16.mxu0 0
        %3328 = vmatpush1.bf16.msra.mxu0 %v3284
        %3329 = vmatprep.subr.bf16.mxu0 0
        %3330 = vmatpush1.bf16.msra.mxu0 0
        %3331 = vmatprep.subr.bf16.mxu0 0
        %3332 = vmatpush1.bf16.msra.mxu0 0
        %3333 = vmatprep.subr.bf16.mxu0 0
        %3334 = vmatpush1.bf16.msra.mxu0 0
        %3335 = vmatprep.subr.bf16.mxu0 0
        %3336 = vmatpush1.bf16.msra.mxu0 0
        %3337 = vmatprep.subr.bf16.mxu0 0
        %3338 = vmatpush1.bf16.msra.mxu0 0
        %3339 = vmatprep.subr.bf16.mxu0 0
        %3340 = vmatpush1.bf16.msra.mxu0 0
        %3341 = vmatprep.subr.bf16.mxu0 0
        %3342 = vmatpush1.bf16.msra.mxu0 0
        %3343 = vmatprep.subr.bf16.mxu0 0
        %3344 = vmatpush1.bf16.msra.mxu0 0
        %3345 = vmatprep.subr.bf16.mxu0 0
        %3346 = vmatpush1.bf16.msra.mxu0 0
        %3347 = vmatprep.subr.bf16.mxu0 0
        %3348 = vmatpush1.bf16.msra.mxu0 0
        %3349 = vmatprep.subr.bf16.mxu0 0
        %3350 = vmatpush1.bf16.msra.mxu0 0
        %3351 = vmatprep.subr.bf16.mxu0 0
        %3352 = vmatpush1.bf16.msra.mxu0 0
        %3353 = vmatprep.subr.bf16.mxu0 0
        %3354 = vmatpush1.bf16.msra.mxu0 0
        %3355 = vmatprep.subr.bf16.mxu0 0
        %3356 = vmatpush1.bf16.msra.mxu0 0
        %3357 = vmatprep.subr.bf16.mxu0 0
        %3358 = vmatpush1.bf16.msra.mxu0 0
        %3359 = vmatprep.mubr.bf16.mxu0 0
        %3360 = vmatmul.mubr.bf16.gmra.mrb[0].mxu0 %v3275
        %v3361 = vpop.f32.mrb[0].mxu0
        %v3362 = vadd.f32 0.0, %v3361
        %v3363 = vpop.f32.mrb[0].mxu0
        %v3364 = vpop.f32.mrb[0].mxu0
        %v3365 = vpop.f32.mrb[0].mxu0
        %3366 = vdwg.mxu0
        %v3367 = vadd.f32 %v3118, %v3321
        %v3368 = vadd.f32 %v3119, %v3323
        %v3369 = vadd.f32 %v3120, %v3362
        %s3370 = scalar_lea.vmem %s5, 12
        %v3371 = vld [vmem:[%s3370] sm:$0xf]
        %v3373 = vcombine.high %v3245, %v3245
        %v3375 = vunpack.c.l.s4 1983009808
        %v3376 = vunpack.c.0.s8 %v3375
        %v3377 = vlaneseq
        %v3378 = vshrl.u32 %v3377, 7
        %v3379 = vsub.s32 %v3376, %v3378
        %v3380 = vrot.slane %v3245, %v3379
        %v3382 = vunpack.c.l.s4 1983009808
        %v3383 = vunpack.c.0.s8 %v3382
        %v3384 = vlaneseq
        %v3385 = vshrl.u32 %v3384, 7
        %v3386 = vsub.s32 %v3383, %v3385
        %v3387 = vrot.slane %v3373, %v3386
        %v3388 = vcombine.high %v3380, %v3380
        %3389 = vrot.lane.b32.xlu0 %v3380, 110
        %v3390 = vpop.permute.xlu0 %3389
        %3391 = vrot.lane.b32.xlu0 %v3388, 110
        %v3392 = vpop.permute.xlu0 %3391
        %3393 = vrot.lane.b32.xlu0 %v3387, 110
        %v3394 = vpop.permute.xlu0 %3393
        %v3395 = vsel %vm3271, %v3390, %v3392
        %v3396 = vsel %vm3271, %v3392, %v3394
        %v3398 = vsel %vm2595, %v3371, 0
        %v3401 = vsel %vm390, %v3395, 0
        %v3404 = vsel %vm390, %v3396, 0
        %v3407 = vsel %vm390, %v3394, 0
        %3409 = vmatprep.subr.bf16.mxu0 %v3404
        %3410 = vmatpush1.bf16.msra.mxu0 %v3401
        %3411 = vmatprep.subr.bf16.mxu0 0
        %3412 = vmatpush1.bf16.msra.mxu0 0
        %3413 = vmatprep.subr.bf16.mxu0 0
        %3414 = vmatpush1.bf16.msra.mxu0 0
        %3415 = vmatprep.subr.bf16.mxu0 0
        %3416 = vmatpush1.bf16.msra.mxu0 0
        %3417 = vmatprep.subr.bf16.mxu0 0
        %3418 = vmatpush1.bf16.msra.mxu0 0
        %3419 = vmatprep.subr.bf16.mxu0 0
        %3420 = vmatpush1.bf16.msra.mxu0 0
        %3421 = vmatprep.subr.bf16.mxu0 0
        %3422 = vmatpush1.bf16.msra.mxu0 0
        %3423 = vmatprep.subr.bf16.mxu0 0
        %3424 = vmatpush1.bf16.msra.mxu0 0
        %3425 = vmatprep.subr.bf16.mxu0 0
        %3426 = vmatpush1.bf16.msra.mxu0 0
        %3427 = vmatprep.subr.bf16.mxu0 0
        %3428 = vmatpush1.bf16.msra.mxu0 0
        %3429 = vmatprep.subr.bf16.mxu0 0
        %3430 = vmatpush1.bf16.msra.mxu0 0
        %3431 = vmatprep.subr.bf16.mxu0 0
        %3432 = vmatpush1.bf16.msra.mxu0 0
        %3433 = vmatprep.subr.bf16.mxu0 0
        %3434 = vmatpush1.bf16.msra.mxu0 0
        %3435 = vmatprep.subr.bf16.mxu0 0
        %3436 = vmatpush1.bf16.msra.mxu0 0
        %3437 = vmatprep.subr.bf16.mxu0 0
        %3438 = vmatpush1.bf16.msra.mxu0 0
        %3439 = vmatprep.subr.bf16.mxu0 0
        %3440 = vmatpush1.bf16.msra.mxu0 0
        %3441 = vmatprep.mubr.bf16.mxu0 0
        %3442 = vmatmul.mubr.bf16.gmra.mrb[0].mxu0 %v3398
        %v3443 = vpop.f32.mrb[0].mxu0
        %v3444 = vadd.f32 0.0, %v3443
        %v3445 = vpop.f32.mrb[0].mxu0
        %v3446 = vadd.f32 0.0, %v3445
        %v3447 = vpop.f32.mrb[0].mxu0
        %v3448 = vpop.f32.mrb[0].mxu0
        %3449 = vdwg.mxu0
        %3450 = vmatprep.subr.bf16.mxu0 0
        %3451 = vmatpush1.bf16.msra.mxu0 %v3407
        %3452 = vmatprep.subr.bf16.mxu0 0
        %3453 = vmatpush1.bf16.msra.mxu0 0
        %3454 = vmatprep.subr.bf16.mxu0 0
        %3455 = vmatpush1.bf16.msra.mxu0 0
        %3456 = vmatprep.subr.bf16.mxu0 0
        %3457 = vmatpush1.bf16.msra.mxu0 0
        %3458 = vmatprep.subr.bf16.mxu0 0
        %3459 = vmatpush1.bf16.msra.mxu0 0
        %3460 = vmatprep.subr.bf16.mxu0 0
        %3461 = vmatpush1.bf16.msra.mxu0 0
        %3462 = vmatprep.subr.bf16.mxu0 0
        %3463 = vmatpush1.bf16.msra.mxu0 0
        %3464 = vmatprep.subr.bf16.mxu0 0
        %3465 = vmatpush1.bf16.msra.mxu0 0
        %3466 = vmatprep.subr.bf16.mxu0 0
        %3467 = vmatpush1.bf16.msra.mxu0 0
        %3468 = vmatprep.subr.bf16.mxu0 0
        %3469 = vmatpush1.bf16.msra.mxu0 0
        %3470 = vmatprep.subr.bf16.mxu0 0
        %3471 = vmatpush1.bf16.msra.mxu0 0
        %3472 = vmatprep.subr.bf16.mxu0 0
        %3473 = vmatpush1.bf16.msra.mxu0 0
        %3474 = vmatprep.subr.bf16.mxu0 0
        %3475 = vmatpush1.bf16.msra.mxu0 0
        %3476 = vmatprep.subr.bf16.mxu0 0
        %3477 = vmatpush1.bf16.msra.mxu0 0
        %3478 = vmatprep.subr.bf16.mxu0 0
        %3479 = vmatpush1.bf16.msra.mxu0 0
        %3480 = vmatprep.subr.bf16.mxu0 0
        %3481 = vmatpush1.bf16.msra.mxu0 0
        %3482 = vmatprep.mubr.bf16.mxu0 0
        %3483 = vmatmul.mubr.bf16.gmra.mrb[0].mxu0 %v3398
        %v3484 = vpop.f32.mrb[0].mxu0
        %v3485 = vadd.f32 0.0, %v3484
        %v3486 = vpop.f32.mrb[0].mxu0
        %v3487 = vpop.f32.mrb[0].mxu0
        %v3488 = vpop.f32.mrb[0].mxu0
        %3489 = vdwg.mxu0
        %v3490 = vadd.f32 %v3241, %v3444
        %v3491 = vadd.f32 %v3242, %v3446
        %v3492 = vadd.f32 %v3243, %v3485
        %v3493 = vld [vmem:[#allocation2] sm:$0x3f]
        %v3494 = vld [vmem:[#allocation3] sm:$0x3f]
        %s3495 = scalar_lea.vmem %s1, 16
        %v3496 = vld [vmem:[%s3495] sm:$0xf]
        %v3498 = vcombine.high %v3493, %v3493
        %v3500 = vunpack.c.l.s4 1983009808
        %v3501 = vunpack.c.0.s8 %v3500
        %v3502 = vlaneseq
        %v3503 = vshrl.u32 %v3502, 7
        %v3504 = vsub.s32 %v3501, %v3503
        %v3505 = vrot.slane %v3493, %v3504
        %v3507 = vunpack.c.l.s4 1983009808
        %v3508 = vunpack.c.0.s8 %v3507
        %v3509 = vlaneseq
        %v3510 = vshrl.u32 %v3509, 7
        %v3511 = vsub.s32 %v3508, %v3510
        %v3512 = vrot.slane %v3498, %v3511
        %v3513 = vcombine.high %v3505, %v3505
        %3514 = vrot.lane.b32.xlu0 %v3505, 109
        %v3515 = vpop.permute.xlu0 %3514
        %3516 = vrot.lane.b32.xlu0 %v3513, 109
        %v3517 = vpop.permute.xlu0 %3516
        %3518 = vrot.lane.b32.xlu0 %v3512, 109
        %v3519 = vpop.permute.xlu0 %3518
        %vm3520 = vcmask 891904
        %v3521 = vsel %vm3520, %v3515, %v3517
        %v3522 = vsel %vm3520, %v3517, %v3519
        %v3524 = vsel %vm2595, %v3496, 0
        %v3527 = vsel %vm390, %v3521, 0
        %v3530 = vsel %vm390, %v3522, 0
        %v3533 = vsel %vm390, %v3519, 0
        %3535 = vmatprep.subr.bf16.mxu0 %v3530
        %3536 = vmatpush1.bf16.msra.mxu0 %v3527
        %3537 = vmatprep.subr.bf16.mxu0 0
        %3538 = vmatpush1.bf16.msra.mxu0 0
        %3539 = vmatprep.subr.bf16.mxu0 0
        %3540 = vmatpush1.bf16.msra.mxu0 0
        %3541 = vmatprep.subr.bf16.mxu0 0
        %3542 = vmatpush1.bf16.msra.mxu0 0
        %3543 = vmatprep.subr.bf16.mxu0 0
        %3544 = vmatpush1.bf16.msra.mxu0 0
        %3545 = vmatprep.subr.bf16.mxu0 0
        %3546 = vmatpush1.bf16.msra.mxu0 0
        %3547 = vmatprep.subr.bf16.mxu0 0
        %3548 = vmatpush1.bf16.msra.mxu0 0
        %3549 = vmatprep.subr.bf16.mxu0 0
        %3550 = vmatpush1.bf16.msra.mxu0 0
        %3551 = vmatprep.subr.bf16.mxu0 0
        %3552 = vmatpush1.bf16.msra.mxu0 0
        %3553 = vmatprep.subr.bf16.mxu0 0
        %3554 = vmatpush1.bf16.msra.mxu0 0
        %3555 = vmatprep.subr.bf16.mxu0 0
        %3556 = vmatpush1.bf16.msra.mxu0 0
        %3557 = vmatprep.subr.bf16.mxu0 0
        %3558 = vmatpush1.bf16.msra.mxu0 0
        %3559 = vmatprep.subr.bf16.mxu0 0
        %3560 = vmatpush1.bf16.msra.mxu0 0
        %3561 = vmatprep.subr.bf16.mxu0 0
        %3562 = vmatpush1.bf16.msra.mxu0 0
        %3563 = vmatprep.subr.bf16.mxu0 0
        %3564 = vmatpush1.bf16.msra.mxu0 0
        %3565 = vmatprep.subr.bf16.mxu0 0
        %3566 = vmatpush1.bf16.msra.mxu0 0
        %3567 = vmatprep.mubr.bf16.mxu0 0
        %3568 = vmatmul.mubr.bf16.gmra.mrb[0].mxu0 %v3524
        %v3569 = vpop.f32.mrb[0].mxu0
        %v3570 = vadd.f32 0.0, %v3569
        %v3571 = vpop.f32.mrb[0].mxu0
        %v3572 = vadd.f32 0.0, %v3571
        %v3573 = vpop.f32.mrb[0].mxu0
        %v3574 = vpop.f32.mrb[0].mxu0
        %3575 = vdwg.mxu0
        %3576 = vmatprep.subr.bf16.mxu0 0
        %3577 = vmatpush1.bf16.msra.mxu0 %v3533
        %3578 = vmatprep.subr.bf16.mxu0 0
        %3579 = vmatpush1.bf16.msra.mxu0 0
        %3580 = vmatprep.subr.bf16.mxu0 0
        %3581 = vmatpush1.bf16.msra.mxu0 0
        %3582 = vmatprep.subr.bf16.mxu0 0
        %3583 = vmatpush1.bf16.msra.mxu0 0
        %3584 = vmatprep.subr.bf16.mxu0 0
        %3585 = vmatpush1.bf16.msra.mxu0 0
        %3586 = vmatprep.subr.bf16.mxu0 0
        %3587 = vmatpush1.bf16.msra.mxu0 0
        %3588 = vmatprep.subr.bf16.mxu0 0
        %3589 = vmatpush1.bf16.msra.mxu0 0
        %3590 = vmatprep.subr.bf16.mxu0 0
        %3591 = vmatpush1.bf16.msra.mxu0 0
        %3592 = vmatprep.subr.bf16.mxu0 0
        %3593 = vmatpush1.bf16.msra.mxu0 0
        %3594 = vmatprep.subr.bf16.mxu0 0
        %3595 = vmatpush1.bf16.msra.mxu0 0
        %3596 = vmatprep.subr.bf16.mxu0 0
        %3597 = vmatpush1.bf16.msra.mxu0 0
        %3598 = vmatprep.subr.bf16.mxu0 0
        %3599 = vmatpush1.bf16.msra.mxu0 0
        %3600 = vmatprep.subr.bf16.mxu0 0
        %3601 = vmatpush1.bf16.msra.mxu0 0
        %3602 = vmatprep.subr.bf16.mxu0 0
        %3603 = vmatpush1.bf16.msra.mxu0 0
        %3604 = vmatprep.subr.bf16.mxu0 0
        %3605 = vmatpush1.bf16.msra.mxu0 0
        %3606 = vmatprep.subr.bf16.mxu0 0
        %3607 = vmatpush1.bf16.msra.mxu0 0
        %3608 = vmatprep.mubr.bf16.mxu0 0
        %3609 = vmatmul.mubr.bf16.gmra.mrb[0].mxu0 %v3524
        %v3610 = vpop.f32.mrb[0].mxu0
        %v3611 = vadd.f32 0.0, %v3610
        %v3612 = vpop.f32.mrb[0].mxu0
        %v3613 = vpop.f32.mrb[0].mxu0
        %v3614 = vpop.f32.mrb[0].mxu0
        %3615 = vdwg.mxu0
        %v3616 = vadd.f32 %v3367, %v3570
        %v3617 = vadd.f32 %v3368, %v3572
        %v3618 = vadd.f32 %v3369, %v3611
        %s3619 = scalar_lea.vmem %s5, 16
        %v3620 = vld [vmem:[%s3619] sm:$0xf]
        %v3622 = vcombine.high %v3494, %v3494
        %v3624 = vunpack.c.l.s4 1983009808
        %v3625 = vunpack.c.0.s8 %v3624
        %v3626 = vlaneseq
        %v3627 = vshrl.u32 %v3626, 7
        %v3628 = vsub.s32 %v3625, %v3627
        %v3629 = vrot.slane %v3494, %v3628
        %v3631 = vunpack.c.l.s4 1983009808
        %v3632 = vunpack.c.0.s8 %v3631
        %v3633 = vlaneseq
        %v3634 = vshrl.u32 %v3633, 7
        %v3635 = vsub.s32 %v3632, %v3634
        %v3636 = vrot.slane %v3622, %v3635
        %v3637 = vcombine.high %v3629, %v3629
        %3638 = vrot.lane.b32.xlu0 %v3629, 109
        %v3639 = vpop.permute.xlu0 %3638
        %3640 = vrot.lane.b32.xlu0 %v3637, 109
        %v3641 = vpop.permute.xlu0 %3640
        %3642 = vrot.lane.b32.xlu0 %v3636, 109
        %v3643 = vpop.permute.xlu0 %3642
        %v3644 = vsel %vm3520, %v3639, %v3641
        %v3645 = vsel %vm3520, %v3641, %v3643
        %v3647 = vsel %vm2595, %v3620, 0
        %v3650 = vsel %vm390, %v3644, 0
        %v3653 = vsel %vm390, %v3645, 0
        %v3656 = vsel %vm390, %v3643, 0
        %3658 = vmatprep.subr.bf16.mxu0 %v3653
        %3659 = vmatpush1.bf16.msra.mxu0 %v3650
        %3660 = vmatprep.subr.bf16.mxu0 0
        %3661 = vmatpush1.bf16.msra.mxu0 0
        %3662 = vmatprep.subr.bf16.mxu0 0
        %3663 = vmatpush1.bf16.msra.mxu0 0
        %3664 = vmatprep.subr.bf16.mxu0 0
        %3665 = vmatpush1.bf16.msra.mxu0 0
        %3666 = vmatprep.subr.bf16.mxu0 0
        %3667 = vmatpush1.bf16.msra.mxu0 0
        %3668 = vmatprep.subr.bf16.mxu0 0
        %3669 = vmatpush1.bf16.msra.mxu0 0
        %3670 = vmatprep.subr.bf16.mxu0 0
        %3671 = vmatpush1.bf16.msra.mxu0 0
        %3672 = vmatprep.subr.bf16.mxu0 0
        %3673 = vmatpush1.bf16.msra.mxu0 0
        %3674 = vmatprep.subr.bf16.mxu0 0
        %3675 = vmatpush1.bf16.msra.mxu0 0
        %3676 = vmatprep.subr.bf16.mxu0 0
        %3677 = vmatpush1.bf16.msra.mxu0 0
        %3678 = vmatprep.subr.bf16.mxu0 0
        %3679 = vmatpush1.bf16.msra.mxu0 0
        %3680 = vmatprep.subr.bf16.mxu0 0
        %3681 = vmatpush1.bf16.msra.mxu0 0
        %3682 = vmatprep.subr.bf16.mxu0 0
        %3683 = vmatpush1.bf16.msra.mxu0 0
        %3684 = vmatprep.subr.bf16.mxu0 0
        %3685 = vmatpush1.bf16.msra.mxu0 0
        %3686 = vmatprep.subr.bf16.mxu0 0
        %3687 = vmatpush1.bf16.msra.mxu0 0
        %3688 = vmatprep.subr.bf16.mxu0 0
        %3689 = vmatpush1.bf16.msra.mxu0 0
        %3690 = vmatprep.mubr.bf16.mxu0 0
        %3691 = vmatmul.mubr.bf16.gmra.mrb[0].mxu0 %v3647
        %v3692 = vpop.f32.mrb[0].mxu0
        %v3693 = vadd.f32 0.0, %v3692
        %v3694 = vpop.f32.mrb[0].mxu0
        %v3695 = vadd.f32 0.0, %v3694
        %v3696 = vpop.f32.mrb[0].mxu0
        %v3697 = vpop.f32.mrb[0].mxu0
        %3698 = vdwg.mxu0
        %3699 = vmatprep.subr.bf16.mxu0 0
        %3700 = vmatpush1.bf16.msra.mxu0 %v3656
        %3701 = vmatprep.subr.bf16.mxu0 0
        %3702 = vmatpush1.bf16.msra.mxu0 0
        %3703 = vmatprep.subr.bf16.mxu0 0
        %3704 = vmatpush1.bf16.msra.mxu0 0
        %3705 = vmatprep.subr.bf16.mxu0 0
        %3706 = vmatpush1.bf16.msra.mxu0 0
        %3707 = vmatprep.subr.bf16.mxu0 0
        %3708 = vmatpush1.bf16.msra.mxu0 0
        %3709 = vmatprep.subr.bf16.mxu0 0
        %3710 = vmatpush1.bf16.msra.mxu0 0
        %3711 = vmatprep.subr.bf16.mxu0 0
        %3712 = vmatpush1.bf16.msra.mxu0 0
        %3713 = vmatprep.subr.bf16.mxu0 0
        %3714 = vmatpush1.bf16.msra.mxu0 0
        %3715 = vmatprep.subr.bf16.mxu0 0
        %3716 = vmatpush1.bf16.msra.mxu0 0
        %3717 = vmatprep.subr.bf16.mxu0 0
        %3718 = vmatpush1.bf16.msra.mxu0 0
        %3719 = vmatprep.subr.bf16.mxu0 0
        %3720 = vmatpush1.bf16.msra.mxu0 0
        %3721 = vmatprep.subr.bf16.mxu0 0
        %3722 = vmatpush1.bf16.msra.mxu0 0
        %3723 = vmatprep.subr.bf16.mxu0 0
        %3724 = vmatpush1.bf16.msra.mxu0 0
        %3725 = vmatprep.subr.bf16.mxu0 0
        %3726 = vmatpush1.bf16.msra.mxu0 0
        %3727 = vmatprep.subr.bf16.mxu0 0
        %3728 = vmatpush1.bf16.msra.mxu0 0
        %3729 = vmatprep.subr.bf16.mxu0 0
        %3730 = vmatpush1.bf16.msra.mxu0 0
        %3731 = vmatprep.mubr.bf16.mxu0 0
        %3732 = vmatmul.mubr.bf16.gmra.mrb[0].mxu0 %v3647
        %v3733 = vpop.f32.mrb[0].mxu0
        %v3734 = vadd.f32 0.0, %v3733
        %v3735 = vpop.f32.mrb[0].mxu0
        %v3736 = vpop.f32.mrb[0].mxu0
        %v3737 = vpop.f32.mrb[0].mxu0
        %3738 = vdwg.mxu0
        %v3739 = vadd.f32 %v3490, %v3693
        %v3740 = vadd.f32 %v3491, %v3695
        %v3741 = vadd.f32 %v3492, %v3734
        %v3742 = vld [vmem:[#allocation2] sm:$0x3f]
        %v3743 = vld [vmem:[#allocation3] sm:$0x3f]
        %s3744 = scalar_lea.vmem %s1, 20
        %v3745 = vld [vmem:[%s3744] sm:$0xf]
        %v3747 = vcombine.high %v3742, %v3742
        %v3749 = vunpack.c.l.s4 1983009808
        %v3750 = vunpack.c.0.s8 %v3749
        %v3751 = vlaneseq
        %v3752 = vshrl.u32 %v3751, 7
        %v3753 = vsub.s32 %v3750, %v3752
        %v3754 = vrot.slane %v3742, %v3753
        %v3756 = vunpack.c.l.s4 1983009808
        %v3757 = vunpack.c.0.s8 %v3756
        %v3758 = vlaneseq
        %v3759 = vshrl.u32 %v3758, 7
        %v3760 = vsub.s32 %v3757, %v3759
        %v3761 = vrot.slane %v3747, %v3760
        %v3762 = vcombine.high %v3754, %v3754
        %3763 = vrot.lane.b32.xlu0 %v3754, 108
        %v3764 = vpop.permute.xlu0 %3763
        %3765 = vrot.lane.b32.xlu0 %v3762, 108
        %v3766 = vpop.permute.xlu0 %3765
        %3767 = vrot.lane.b32.xlu0 %v3761, 108
        %v3768 = vpop.permute.xlu0 %3767
        %vm3769 = vcmask 883712
        %v3770 = vsel %vm3769, %v3764, %v3766
        %v3771 = vsel %vm3769, %v3766, %v3768
        %v3773 = vsel %vm2595, %v3745, 0
        %v3776 = vsel %vm390, %v3770, 0
        %v3779 = vsel %vm390, %v3771, 0
        %v3782 = vsel %vm390, %v3768, 0
        %3784 = vmatprep.subr.bf16.mxu0 %v3779
        %3785 = vmatpush1.bf16.msra.mxu0 %v3776
        %3786 = vmatprep.subr.bf16.mxu0 0
        %3787 = vmatpush1.bf16.msra.mxu0 0
        %3788 = vmatprep.subr.bf16.mxu0 0
        %3789 = vmatpush1.bf16.msra.mxu0 0
        %3790 = vmatprep.subr.bf16.mxu0 0
        %3791 = vmatpush1.bf16.msra.mxu0 0
        %3792 = vmatprep.subr.bf16.mxu0 0
        %3793 = vmatpush1.bf16.msra.mxu0 0
        %3794 = vmatprep.subr.bf16.mxu0 0
        %3795 = vmatpush1.bf16.msra.mxu0 0
        %3796 = vmatprep.subr.bf16.mxu0 0
        %3797 = vmatpush1.bf16.msra.mxu0 0
        %3798 = vmatprep.subr.bf16.mxu0 0
        %3799 = vmatpush1.bf16.msra.mxu0 0
        %3800 = vmatprep.subr.bf16.mxu0 0
        %3801 = vmatpush1.bf16.msra.mxu0 0
        %3802 = vmatprep.subr.bf16.mxu0 0
        %3803 = vmatpush1.bf16.msra.mxu0 0
        %3804 = vmatprep.subr.bf16.mxu0 0
        %3805 = vmatpush1.bf16.msra.mxu0 0
        %3806 = vmatprep.subr.bf16.mxu0 0
        %3807 = vmatpush1.bf16.msra.mxu0 0
        %3808 = vmatprep.subr.bf16.mxu0 0
        %3809 = vmatpush1.bf16.msra.mxu0 0
        %3810 = vmatprep.subr.bf16.mxu0 0
        %3811 = vmatpush1.bf16.msra.mxu0 0
        %3812 = vmatprep.subr.bf16.mxu0 0
        %3813 = vmatpush1.bf16.msra.mxu0 0
        %3814 = vmatprep.subr.bf16.mxu0 0
        %3815 = vmatpush1.bf16.msra.mxu0 0
        %3816 = vmatprep.mubr.bf16.mxu0 0
        %3817 = vmatmul.mubr.bf16.gmra.mrb[0].mxu0 %v3773
        %v3818 = vpop.f32.mrb[0].mxu0
        %v3819 = vadd.f32 0.0, %v3818
        %v3820 = vpop.f32.mrb[0].mxu0
        %v3821 = vadd.f32 0.0, %v3820
        %v3822 = vpop.f32.mrb[0].mxu0
        %v3823 = vpop.f32.mrb[0].mxu0
        %3824 = vdwg.mxu0
        %3825 = vmatprep.subr.bf16.mxu0 0
        %3826 = vmatpush1.bf16.msra.mxu0 %v3782
        %3827 = vmatprep.subr.bf16.mxu0 0
        %3828 = vmatpush1.bf16.msra.mxu0 0
        %3829 = vmatprep.subr.bf16.mxu0 0
        %3830 = vmatpush1.bf16.msra.mxu0 0
        %3831 = vmatprep.subr.bf16.mxu0 0
        %3832 = vmatpush1.bf16.msra.mxu0 0
        %3833 = vmatprep.subr.bf16.mxu0 0
        %3834 = vmatpush1.bf16.msra.mxu0 0
        %3835 = vmatprep.subr.bf16.mxu0 0
        %3836 = vmatpush1.bf16.msra.mxu0 0
        %3837 = vmatprep.subr.bf16.mxu0 0
        %3838 = vmatpush1.bf16.msra.mxu0 0
        %3839 = vmatprep.subr.bf16.mxu0 0
        %3840 = vmatpush1.bf16.msra.mxu0 0
        %3841 = vmatprep.subr.bf16.mxu0 0
        %3842 = vmatpush1.bf16.msra.mxu0 0
        %3843 = vmatprep.subr.bf16.mxu0 0
        %3844 = vmatpush1.bf16.msra.mxu0 0
        %3845 = vmatprep.subr.bf16.mxu0 0
        %3846 = vmatpush1.bf16.msra.mxu0 0
        %3847 = vmatprep.subr.bf16.mxu0 0
        %3848 = vmatpush1.bf16.msra.mxu0 0
        %3849 = vmatprep.subr.bf16.mxu0 0
        %3850 = vmatpush1.bf16.msra.mxu0 0
        %3851 = vmatprep.subr.bf16.mxu0 0
        %3852 = vmatpush1.bf16.msra.mxu0 0
        %3853 = vmatprep.subr.bf16.mxu0 0
        %3854 = vmatpush1.bf16.msra.mxu0 0
        %3855 = vmatprep.subr.bf16.mxu0 0
        %3856 = vmatpush1.bf16.msra.mxu0 0
        %3857 = vmatprep.mubr.bf16.mxu0 0
        %3858 = vmatmul.mubr.bf16.gmra.mrb[0].mxu0 %v3773
        %v3859 = vpop.f32.mrb[0].mxu0
        %v3860 = vadd.f32 0.0, %v3859
        %v3861 = vpop.f32.mrb[0].mxu0
        %v3862 = vpop.f32.mrb[0].mxu0
        %v3863 = vpop.f32.mrb[0].mxu0
        %3864 = vdwg.mxu0
        %v3865 = vadd.f32 %v3616, %v3819
        %v3866 = vadd.f32 %v3617, %v3821
        %v3867 = vadd.f32 %v3618, %v3860
        %s3868 = scalar_lea.vmem %s5, 20
        %v3869 = vld [vmem:[%s3868] sm:$0xf]
        %v3871 = vcombine.high %v3743, %v3743
        %v3873 = vunpack.c.l.s4 1983009808
        %v3874 = vunpack.c.0.s8 %v3873
        %v3875 = vlaneseq
        %v3876 = vshrl.u32 %v3875, 7
        %v3877 = vsub.s32 %v3874, %v3876
        %v3878 = vrot.slane %v3743, %v3877
        %v3880 = vunpack.c.l.s4 1983009808
        %v3881 = vunpack.c.0.s8 %v3880
        %v3882 = vlaneseq
        %v3883 = vshrl.u32 %v3882, 7
        %v3884 = vsub.s32 %v3881, %v3883
        %v3885 = vrot.slane %v3871, %v3884
        %v3886 = vcombine.high %v3878, %v3878
        %3887 = vrot.lane.b32.xlu0 %v3878, 108
        %v3888 = vpop.permute.xlu0 %3887
        %3889 = vrot.lane.b32.xlu0 %v3886, 108
        %v3890 = vpop.permute.xlu0 %3889
        %3891 = vrot.lane.b32.xlu0 %v3885, 108
        %v3892 = vpop.permute.xlu0 %3891
        %v3893 = vsel %vm3769, %v3888, %v3890
        %v3894 = vsel %vm3769, %v3890, %v3892
        %v3896 = vsel %vm2595, %v3869, 0
        %v3899 = vsel %vm390, %v3893, 0
        %v3902 = vsel %vm390, %v3894, 0
        %v3905 = vsel %vm390, %v3892, 0
        %3907 = vmatprep.subr.bf16.mxu0 %v3902
        %3908 = vmatpush1.bf16.msra.mxu0 %v3899
        %3909 = vmatprep.subr.bf16.mxu0 0
        %3910 = vmatpush1.bf16.msra.mxu0 0
        %3911 = vmatprep.subr.bf16.mxu0 0
        %3912 = vmatpush1.bf16.msra.mxu0 0
        %3913 = vmatprep.subr.bf16.mxu0 0
        %3914 = vmatpush1.bf16.msra.mxu0 0
        %3915 = vmatprep.subr.bf16.mxu0 0
        %3916 = vmatpush1.bf16.msra.mxu0 0
        %3917 = vmatprep.subr.bf16.mxu0 0
        %3918 = vmatpush1.bf16.msra.mxu0 0
        %3919 = vmatprep.subr.bf16.mxu0 0
        %3920 = vmatpush1.bf16.msra.mxu0 0
        %3921 = vmatprep.subr.bf16.mxu0 0
        %3922 = vmatpush1.bf16.msra.mxu0 0
        %3923 = vmatprep.subr.bf16.mxu0 0
        %3924 = vmatpush1.bf16.msra.mxu0 0
        %3925 = vmatprep.subr.bf16.mxu0 0
        %3926 = vmatpush1.bf16.msra.mxu0 0
        %3927 = vmatprep.subr.bf16.mxu0 0
        %3928 = vmatpush1.bf16.msra.mxu0 0
        %3929 = vmatprep.subr.bf16.mxu0 0
        %3930 = vmatpush1.bf16.msra.mxu0 0
        %3931 = vmatprep.subr.bf16.mxu0 0
        %3932 = vmatpush1.bf16.msra.mxu0 0
        %3933 = vmatprep.subr.bf16.mxu0 0
        %3934 = vmatpush1.bf16.msra.mxu0 0
        %3935 = vmatprep.subr.bf16.mxu0 0
        %3936 = vmatpush1.bf16.msra.mxu0 0
        %3937 = vmatprep.subr.bf16.mxu0 0
        %3938 = vmatpush1.bf16.msra.mxu0 0
        %3939 = vmatprep.mubr.bf16.mxu0 0
        %3940 = vmatmul.mubr.bf16.gmra.mrb[0].mxu0 %v3896
        %v3941 = vpop.f32.mrb[0].mxu0
        %v3942 = vadd.f32 0.0, %v3941
        %v3943 = vpop.f32.mrb[0].mxu0
        %v3944 = vadd.f32 0.0, %v3943
        %v3945 = vpop.f32.mrb[0].mxu0
        %v3946 = vpop.f32.mrb[0].mxu0
        %3947 = vdwg.mxu0
        %3948 = vmatprep.subr.bf16.mxu0 0
        %3949 = vmatpush1.bf16.msra.mxu0 %v3905
        %3950 = vmatprep.subr.bf16.mxu0 0
        %3951 = vmatpush1.bf16.msra.mxu0 0
        %3952 = vmatprep.subr.bf16.mxu0 0
        %3953 = vmatpush1.bf16.msra.mxu0 0
        %3954 = vmatprep.subr.bf16.mxu0 0
        %3955 = vmatpush1.bf16.msra.mxu0 0
        %3956 = vmatprep.subr.bf16.mxu0 0
        %3957 = vmatpush1.bf16.msra.mxu0 0
        %3958 = vmatprep.subr.bf16.mxu0 0
        %3959 = vmatpush1.bf16.msra.mxu0 0
        %3960 = vmatprep.subr.bf16.mxu0 0
        %3961 = vmatpush1.bf16.msra.mxu0 0
        %3962 = vmatprep.subr.bf16.mxu0 0
        %3963 = vmatpush1.bf16.msra.mxu0 0
        %3964 = vmatprep.subr.bf16.mxu0 0
        %3965 = vmatpush1.bf16.msra.mxu0 0
        %3966 = vmatprep.subr.bf16.mxu0 0
        %3967 = vmatpush1.bf16.msra.mxu0 0
        %3968 = vmatprep.subr.bf16.mxu0 0
        %3969 = vmatpush1.bf16.msra.mxu0 0
        %3970 = vmatprep.subr.bf16.mxu0 0
        %3971 = vmatpush1.bf16.msra.mxu0 0
        %3972 = vmatprep.subr.bf16.mxu0 0
        %3973 = vmatpush1.bf16.msra.mxu0 0
        %3974 = vmatprep.subr.bf16.mxu0 0
        %3975 = vmatpush1.bf16.msra.mxu0 0
        %3976 = vmatprep.subr.bf16.mxu0 0
        %3977 = vmatpush1.bf16.msra.mxu0 0
        %3978 = vmatprep.subr.bf16.mxu0 0
        %3979 = vmatpush1.bf16.msra.mxu0 0
        %3980 = vmatprep.mubr.bf16.mxu0 0
        %3981 = vmatmul.mubr.bf16.gmra.mrb[0].mxu0 %v3896
        %v3982 = vpop.f32.mrb[0].mxu0
        %v3983 = vadd.f32 0.0, %v3982
        %v3984 = vpop.f32.mrb[0].mxu0
        %v3985 = vpop.f32.mrb[0].mxu0
        %v3986 = vpop.f32.mrb[0].mxu0
        %3987 = vdwg.mxu0
        %v3988 = vadd.f32 %v3739, %v3942
        %v3989 = vadd.f32 %v3740, %v3944
        %v3990 = vadd.f32 %v3741, %v3983
        %v3991 = vld [vmem:[#allocation2] sm:$0x3f]
        %v3992 = vld [vmem:[#allocation3] sm:$0x3f]
        %s3993 = scalar_lea.vmem %s1, 24
        %v3994 = vld [vmem:[%s3993] sm:$0xf]
        %v3996 = vcombine.high %v3991, %v3991
        %v3998 = vunpack.c.l.s4 1983009808
        %v3999 = vunpack.c.0.s8 %v3998
        %v4000 = vlaneseq
        %v4001 = vshrl.u32 %v4000, 7
        %v4002 = vsub.s32 %v3999, %v4001
        %v4003 = vrot.slane %v3991, %v4002
        %v4005 = vunpack.c.l.s4 1983009808
        %v4006 = vunpack.c.0.s8 %v4005
        %v4007 = vlaneseq
        %v4008 = vshrl.u32 %v4007, 7
        %v4009 = vsub.s32 %v4006, %v4008
        %v4010 = vrot.slane %v3996, %v4009
        %v4011 = vcombine.high %v4003, %v4003
        %4012 = vrot.lane.b32.xlu0 %v4003, 92
        %v4013 = vpop.permute.xlu0 %4012
        %4014 = vrot.lane.b32.xlu0 %v4011, 92
        %v4015 = vpop.permute.xlu0 %4014
        %4016 = vrot.lane.b32.xlu0 %v4010, 92
        %v4017 = vpop.permute.xlu0 %4016
        %vm4018 = vcmask 752640
        %v4019 = vsel %vm4018, %v4013, %v4015
        %v4020 = vsel %vm4018, %v4015, %v4017
        %v4022 = vsel %vm2595, %v3994, 0
        %v4025 = vsel %vm390, %v4019, 0
        %v4028 = vsel %vm390, %v4020, 0
        %v4031 = vsel %vm390, %v4017, 0
        %4033 = vmatprep.subr.bf16.mxu0 %v4028
        %4034 = vmatpush1.bf16.msra.mxu0 %v4025
        %4035 = vmatprep.subr.bf16.mxu0 0
        %4036 = vmatpush1.bf16.msra.mxu0 0
        %4037 = vmatprep.subr.bf16.mxu0 0
        %4038 = vmatpush1.bf16.msra.mxu0 0
        %4039 = vmatprep.subr.bf16.mxu0 0
        %4040 = vmatpush1.bf16.msra.mxu0 0
        %4041 = vmatprep.subr.bf16.mxu0 0
        %4042 = vmatpush1.bf16.msra.mxu0 0
        %4043 = vmatprep.subr.bf16.mxu0 0
        %4044 = vmatpush1.bf16.msra.mxu0 0
        %4045 = vmatprep.subr.bf16.mxu0 0
        %4046 = vmatpush1.bf16.msra.mxu0 0
        %4047 = vmatprep.subr.bf16.mxu0 0
        %4048 = vmatpush1.bf16.msra.mxu0 0
        %4049 = vmatprep.subr.bf16.mxu0 0
        %4050 = vmatpush1.bf16.msra.mxu0 0
        %4051 = vmatprep.subr.bf16.mxu0 0
        %4052 = vmatpush1.bf16.msra.mxu0 0
        %4053 = vmatprep.subr.bf16.mxu0 0
        %4054 = vmatpush1.bf16.msra.mxu0 0
        %4055 = vmatprep.subr.bf16.mxu0 0
        %4056 = vmatpush1.bf16.msra.mxu0 0
        %4057 = vmatprep.subr.bf16.mxu0 0
        %4058 = vmatpush1.bf16.msra.mxu0 0
        %4059 = vmatprep.subr.bf16.mxu0 0
        %4060 = vmatpush1.bf16.msra.mxu0 0
        %4061 = vmatprep.subr.bf16.mxu0 0
        %4062 = vmatpush1.bf16.msra.mxu0 0
        %4063 = vmatprep.subr.bf16.mxu0 0
        %4064 = vmatpush1.bf16.msra.mxu0 0
        %4065 = vmatprep.mubr.bf16.mxu0 0
        %4066 = vmatmul.mubr.bf16.gmra.mrb[0].mxu0 %v4022
        %v4067 = vpop.f32.mrb[0].mxu0
        %v4068 = vadd.f32 0.0, %v4067
        %v4069 = vpop.f32.mrb[0].mxu0
        %v4070 = vadd.f32 0.0, %v4069
        %v4071 = vpop.f32.mrb[0].mxu0
        %v4072 = vpop.f32.mrb[0].mxu0
        %4073 = vdwg.mxu0
        %4074 = vmatprep.subr.bf16.mxu0 0
        %4075 = vmatpush1.bf16.msra.mxu0 %v4031
        %4076 = vmatprep.subr.bf16.mxu0 0
        %4077 = vmatpush1.bf16.msra.mxu0 0
        %4078 = vmatprep.subr.bf16.mxu0 0
        %4079 = vmatpush1.bf16.msra.mxu0 0
        %4080 = vmatprep.subr.bf16.mxu0 0
        %4081 = vmatpush1.bf16.msra.mxu0 0
        %4082 = vmatprep.subr.bf16.mxu0 0
        %4083 = vmatpush1.bf16.msra.mxu0 0
        %4084 = vmatprep.subr.bf16.mxu0 0
        %4085 = vmatpush1.bf16.msra.mxu0 0
        %4086 = vmatprep.subr.bf16.mxu0 0
        %4087 = vmatpush1.bf16.msra.mxu0 0
        %4088 = vmatprep.subr.bf16.mxu0 0
        %4089 = vmatpush1.bf16.msra.mxu0 0
        %4090 = vmatprep.subr.bf16.mxu0 0
        %4091 = vmatpush1.bf16.msra.mxu0 0
        %4092 = vmatprep.subr.bf16.mxu0 0
        %4093 = vmatpush1.bf16.msra.mxu0 0
        %4094 = vmatprep.subr.bf16.mxu0 0
        %4095 = vmatpush1.bf16.msra.mxu0 0
        %4096 = vmatprep.subr.bf16.mxu0 0
        %4097 = vmatpush1.bf16.msra.mxu0 0
        %4098 = vmatprep.subr.bf16.mxu0 0
        %4099 = vmatpush1.bf16.msra.mxu0 0
        %4100 = vmatprep.subr.bf16.mxu0 0
        %4101 = vmatpush1.bf16.msra.mxu0 0
        %4102 = vmatprep.subr.bf16.mxu0 0
        %4103 = vmatpush1.bf16.msra.mxu0 0
        %4104 = vmatprep.subr.bf16.mxu0 0
        %4105 = vmatpush1.bf16.msra.mxu0 0
        %4106 = vmatprep.mubr.bf16.mxu0 0
        %4107 = vmatmul.mubr.bf16.gmra.mrb[0].mxu0 %v4022
        %v4108 = vpop.f32.mrb[0].mxu0
        %v4109 = vadd.f32 0.0, %v4108
        %v4110 = vpop.f32.mrb[0].mxu0
        %v4111 = vpop.f32.mrb[0].mxu0
        %v4112 = vpop.f32.mrb[0].mxu0
        %4113 = vdwg.mxu0
        %v4114 = vadd.f32 %v3865, %v4068
        %v4115 = vadd.f32 %v3866, %v4070
        %v4116 = vadd.f32 %v3867, %v4109
        %s4117 = scalar_lea.vmem %s5, 24
        %v4118 = vld [vmem:[%s4117] sm:$0xf]
        %v4120 = vcombine.high %v3992, %v3992
        %v4122 = vunpack.c.l.s4 1983009808
        %v4123 = vunpack.c.0.s8 %v4122
        %v4124 = vlaneseq
        %v4125 = vshrl.u32 %v4124, 7
        %v4126 = vsub.s32 %v4123, %v4125
        %v4127 = vrot.slane %v3992, %v4126
        %v4129 = vunpack.c.l.s4 1983009808
        %v4130 = vunpack.c.0.s8 %v4129
        %v4131 = vlaneseq
        %v4132 = vshrl.u32 %v4131, 7
        %v4133 = vsub.s32 %v4130, %v4132
        %v4134 = vrot.slane %v4120, %v4133
        %v4135 = vcombine.high %v4127, %v4127
        %4136 = vrot.lane.b32.xlu0 %v4127, 92
        %v4137 = vpop.permute.xlu0 %4136
        %4138 = vrot.lane.b32.xlu0 %v4135, 92
        %v4139 = vpop.permute.xlu0 %4138
        %4140 = vrot.lane.b32.xlu0 %v4134, 92
        %v4141 = vpop.permute.xlu0 %4140
        %v4142 = vsel %vm4018, %v4137, %v4139
        %v4143 = vsel %vm4018, %v4139, %v4141
        %v4145 = vsel %vm2595, %v4118, 0
        %v4148 = vsel %vm390, %v4142, 0
        %v4151 = vsel %vm390, %v4143, 0
        %v4154 = vsel %vm390, %v4141, 0
        %4156 = vmatprep.subr.bf16.mxu0 %v4151
        %4157 = vmatpush1.bf16.msra.mxu0 %v4148
        %4158 = vmatprep.subr.bf16.mxu0 0
        %4159 = vmatpush1.bf16.msra.mxu0 0
        %4160 = vmatprep.subr.bf16.mxu0 0
        %4161 = vmatpush1.bf16.msra.mxu0 0
        %4162 = vmatprep.subr.bf16.mxu0 0
        %4163 = vmatpush1.bf16.msra.mxu0 0
        %4164 = vmatprep.subr.bf16.mxu0 0
        %4165 = vmatpush1.bf16.msra.mxu0 0
        %4166 = vmatprep.subr.bf16.mxu0 0
        %4167 = vmatpush1.bf16.msra.mxu0 0
        %4168 = vmatprep.subr.bf16.mxu0 0
        %4169 = vmatpush1.bf16.msra.mxu0 0
        %4170 = vmatprep.subr.bf16.mxu0 0
        %4171 = vmatpush1.bf16.msra.mxu0 0
        %4172 = vmatprep.subr.bf16.mxu0 0
        %4173 = vmatpush1.bf16.msra.mxu0 0
        %4174 = vmatprep.subr.bf16.mxu0 0
        %4175 = vmatpush1.bf16.msra.mxu0 0
        %4176 = vmatprep.subr.bf16.mxu0 0
        %4177 = vmatpush1.bf16.msra.mxu0 0
        %4178 = vmatprep.subr.bf16.mxu0 0
        %4179 = vmatpush1.bf16.msra.mxu0 0
        %4180 = vmatprep.subr.bf16.mxu0 0
        %4181 = vmatpush1.bf16.msra.mxu0 0
        %4182 = vmatprep.subr.bf16.mxu0 0
        %4183 = vmatpush1.bf16.msra.mxu0 0
        %4184 = vmatprep.subr.bf16.mxu0 0
        %4185 = vmatpush1.bf16.msra.mxu0 0
        %4186 = vmatprep.subr.bf16.mxu0 0
        %4187 = vmatpush1.bf16.msra.mxu0 0
        %4188 = vmatprep.mubr.bf16.mxu0 0
        %4189 = vmatmul.mubr.bf16.gmra.mrb[0].mxu0 %v4145
        %v4190 = vpop.f32.mrb[0].mxu0
        %v4191 = vadd.f32 0.0, %v4190
        %v4192 = vpop.f32.mrb[0].mxu0
        %v4193 = vadd.f32 0.0, %v4192
        %v4194 = vpop.f32.mrb[0].mxu0
        %v4195 = vpop.f32.mrb[0].mxu0
        %4196 = vdwg.mxu0
        %4197 = vmatprep.subr.bf16.mxu0 0
        %4198 = vmatpush1.bf16.msra.mxu0 %v4154
        %4199 = vmatprep.subr.bf16.mxu0 0
        %4200 = vmatpush1.bf16.msra.mxu0 0
        %4201 = vmatprep.subr.bf16.mxu0 0
        %4202 = vmatpush1.bf16.msra.mxu0 0
        %4203 = vmatprep.subr.bf16.mxu0 0
        %4204 = vmatpush1.bf16.msra.mxu0 0
        %4205 = vmatprep.subr.bf16.mxu0 0
        %4206 = vmatpush1.bf16.msra.mxu0 0
        %4207 = vmatprep.subr.bf16.mxu0 0
        %4208 = vmatpush1.bf16.msra.mxu0 0
        %4209 = vmatprep.subr.bf16.mxu0 0
        %4210 = vmatpush1.bf16.msra.mxu0 0
        %4211 = vmatprep.subr.bf16.mxu0 0
        %4212 = vmatpush1.bf16.msra.mxu0 0
        %4213 = vmatprep.subr.bf16.mxu0 0
        %4214 = vmatpush1.bf16.msra.mxu0 0
        %4215 = vmatprep.subr.bf16.mxu0 0
        %4216 = vmatpush1.bf16.msra.mxu0 0
        %4217 = vmatprep.subr.bf16.mxu0 0
        %4218 = vmatpush1.bf16.msra.mxu0 0
        %4219 = vmatprep.subr.bf16.mxu0 0
        %4220 = vmatpush1.bf16.msra.mxu0 0
        %4221 = vmatprep.subr.bf16.mxu0 0
        %4222 = vmatpush1.bf16.msra.mxu0 0
        %4223 = vmatprep.subr.bf16.mxu0 0
        %4224 = vmatpush1.bf16.msra.mxu0 0
        %4225 = vmatprep.subr.bf16.mxu0 0
        %4226 = vmatpush1.bf16.msra.mxu0 0
        %4227 = vmatprep.subr.bf16.mxu0 0
        %4228 = vmatpush1.bf16.msra.mxu0 0
        %4229 = vmatprep.mubr.bf16.mxu0 0
        %4230 = vmatmul.mubr.bf16.gmra.mrb[0].mxu0 %v4145
        %v4231 = vpop.f32.mrb[0].mxu0
        %v4232 = vadd.f32 0.0, %v4231
        %v4233 = vpop.f32.mrb[0].mxu0
        %v4234 = vpop.f32.mrb[0].mxu0
        %v4235 = vpop.f32.mrb[0].mxu0
        %4236 = vdwg.mxu0
        %v4237 = vadd.f32 %v3988, %v4191
        %v4238 = vadd.f32 %v3989, %v4193
        %v4239 = vadd.f32 %v3990, %v4232
        %v4240 = vld [vmem:[#allocation2] sm:$0x3f]
        %v4241 = vld [vmem:[#allocation3] sm:$0x3f]
        %s4242 = scalar_lea.vmem %s1, 28
        %v4243 = vld [vmem:[%s4242] sm:$0xf]
        %v4245 = vcombine.high %v4240, %v4240
        %v4247 = vunpack.c.l.s4 1983009808
        %v4248 = vunpack.c.0.s8 %v4247
        %v4249 = vlaneseq
        %v4250 = vshrl.u32 %v4249, 7
        %v4251 = vsub.s32 %v4248, %v4250
        %v4252 = vrot.slane %v4240, %v4251
        %v4254 = vunpack.c.l.s4 1983009808
        %v4255 = vunpack.c.0.s8 %v4254
        %v4256 = vlaneseq
        %v4257 = vshrl.u32 %v4256, 7
        %v4258 = vsub.s32 %v4255, %v4257
        %v4259 = vrot.slane %v4245, %v4258
        %v4260 = vcombine.high %v4252, %v4252
        %4261 = vrot.lane.b32.xlu0 %v4252, 91
        %v4262 = vpop.permute.xlu0 %4261
        %4263 = vrot.lane.b32.xlu0 %v4260, 91
        %v4264 = vpop.permute.xlu0 %4263
        %4265 = vrot.lane.b32.xlu0 %v4259, 91
        %v4266 = vpop.permute.xlu0 %4265
        %vm4267 = vcmask 744448
        %v4268 = vsel %vm4267, %v4262, %v4264
        %v4269 = vsel %vm4267, %v4264, %v4266
        %v4271 = vsel %vm2595, %v4243, 0
        %v4274 = vsel %vm390, %v4268, 0
        %v4277 = vsel %vm390, %v4269, 0
        %v4280 = vsel %vm390, %v4266, 0
        %4282 = vmatprep.subr.bf16.mxu0 %v4277
        %4283 = vmatpush1.bf16.msra.mxu0 %v4274
        %4284 = vmatprep.subr.bf16.mxu0 0
        %4285 = vmatpush1.bf16.msra.mxu0 0
        %4286 = vmatprep.subr.bf16.mxu0 0
        %4287 = vmatpush1.bf16.msra.mxu0 0
        %4288 = vmatprep.subr.bf16.mxu0 0
        %4289 = vmatpush1.bf16.msra.mxu0 0
        %4290 = vmatprep.subr.bf16.mxu0 0
        %4291 = vmatpush1.bf16.msra.mxu0 0
        %4292 = vmatprep.subr.bf16.mxu0 0
        %4293 = vmatpush1.bf16.msra.mxu0 0
        %4294 = vmatprep.subr.bf16.mxu0 0
        %4295 = vmatpush1.bf16.msra.mxu0 0
        %4296 = vmatprep.subr.bf16.mxu0 0
        %4297 = vmatpush1.bf16.msra.mxu0 0
        %4298 = vmatprep.subr.bf16.mxu0 0
        %4299 = vmatpush1.bf16.msra.mxu0 0
        %4300 = vmatprep.subr.bf16.mxu0 0
        %4301 = vmatpush1.bf16.msra.mxu0 0
        %4302 = vmatprep.subr.bf16.mxu0 0
        %4303 = vmatpush1.bf16.msra.mxu0 0
        %4304 = vmatprep.subr.bf16.mxu0 0
        %4305 = vmatpush1.bf16.msra.mxu0 0
        %4306 = vmatprep.subr.bf16.mxu0 0
        %4307 = vmatpush1.bf16.msra.mxu0 0
        %4308 = vmatprep.subr.bf16.mxu0 0
        %4309 = vmatpush1.bf16.msra.mxu0 0
        %4310 = vmatprep.subr.bf16.mxu0 0
        %4311 = vmatpush1.bf16.msra.mxu0 0
        %4312 = vmatprep.subr.bf16.mxu0 0
        %4313 = vmatpush1.bf16.msra.mxu0 0
        %4314 = vmatprep.mubr.bf16.mxu0 0
        %4315 = vmatmul.mubr.bf16.gmra.mrb[0].mxu0 %v4271
        %v4316 = vpop.f32.mrb[0].mxu0
        %v4317 = vadd.f32 0.0, %v4316
        %v4318 = vpop.f32.mrb[0].mxu0
        %v4319 = vadd.f32 0.0, %v4318
        %v4320 = vpop.f32.mrb[0].mxu0
        %v4321 = vpop.f32.mrb[0].mxu0
        %4322 = vdwg.mxu0
        %4323 = vmatprep.subr.bf16.mxu0 0
        %4324 = vmatpush1.bf16.msra.mxu0 %v4280
        %4325 = vmatprep.subr.bf16.mxu0 0
        %4326 = vmatpush1.bf16.msra.mxu0 0
        %4327 = vmatprep.subr.bf16.mxu0 0
        %4328 = vmatpush1.bf16.msra.mxu0 0
        %4329 = vmatprep.subr.bf16.mxu0 0
        %4330 = vmatpush1.bf16.msra.mxu0 0
        %4331 = vmatprep.subr.bf16.mxu0 0
        %4332 = vmatpush1.bf16.msra.mxu0 0
        %4333 = vmatprep.subr.bf16.mxu0 0
        %4334 = vmatpush1.bf16.msra.mxu0 0
        %4335 = vmatprep.subr.bf16.mxu0 0
        %4336 = vmatpush1.bf16.msra.mxu0 0
        %4337 = vmatprep.subr.bf16.mxu0 0
        %4338 = vmatpush1.bf16.msra.mxu0 0
        %4339 = vmatprep.subr.bf16.mxu0 0
        %4340 = vmatpush1.bf16.msra.mxu0 0
        %4341 = vmatprep.subr.bf16.mxu0 0
        %4342 = vmatpush1.bf16.msra.mxu0 0
        %4343 = vmatprep.subr.bf16.mxu0 0
        %4344 = vmatpush1.bf16.msra.mxu0 0
        %4345 = vmatprep.subr.bf16.mxu0 0
        %4346 = vmatpush1.bf16.msra.mxu0 0
        %4347 = vmatprep.subr.bf16.mxu0 0
        %4348 = vmatpush1.bf16.msra.mxu0 0
        %4349 = vmatprep.subr.bf16.mxu0 0
        %4350 = vmatpush1.bf16.msra.mxu0 0
        %4351 = vmatprep.subr.bf16.mxu0 0
        %4352 = vmatpush1.bf16.msra.mxu0 0
        %4353 = vmatprep.subr.bf16.mxu0 0
        %4354 = vmatpush1.bf16.msra.mxu0 0
        %4355 = vmatprep.mubr.bf16.mxu0 0
        %4356 = vmatmul.mubr.bf16.gmra.mrb[0].mxu0 %v4271
        %v4357 = vpop.f32.mrb[0].mxu0
        %v4358 = vadd.f32 0.0, %v4357
        %v4359 = vpop.f32.mrb[0].mxu0
        %v4360 = vpop.f32.mrb[0].mxu0
        %v4361 = vpop.f32.mrb[0].mxu0
        %4362 = vdwg.mxu0
        %v4363 = vadd.f32 %v4114, %v4317
        %v4364 = vadd.f32 %v4115, %v4319
        %v4365 = vadd.f32 %v4116, %v4358
        %s4366 = scalar_lea.vmem %s5, 28
        %v4367 = vld [vmem:[%s4366] sm:$0xf]
        %v4369 = vcombine.high %v4241, %v4241
        %v4371 = vunpack.c.l.s4 1983009808
        %v4372 = vunpack.c.0.s8 %v4371
        %v4373 = vlaneseq
        %v4374 = vshrl.u32 %v4373, 7
        %v4375 = vsub.s32 %v4372, %v4374
        %v4376 = vrot.slane %v4241, %v4375
        %v4378 = vunpack.c.l.s4 1983009808
        %v4379 = vunpack.c.0.s8 %v4378
        %v4380 = vlaneseq
        %v4381 = vshrl.u32 %v4380, 7
        %v4382 = vsub.s32 %v4379, %v4381
        %v4383 = vrot.slane %v4369, %v4382
        %v4384 = vcombine.high %v4376, %v4376
        %4385 = vrot.lane.b32.xlu0 %v4376, 91
        %v4386 = vpop.permute.xlu0 %4385
        %4387 = vrot.lane.b32.xlu0 %v4384, 91
        %v4388 = vpop.permute.xlu0 %4387
        %4389 = vrot.lane.b32.xlu0 %v4383, 91
        %v4390 = vpop.permute.xlu0 %4389
        %v4391 = vsel %vm4267, %v4386, %v4388
        %v4392 = vsel %vm4267, %v4388, %v4390
        %v4394 = vsel %vm2595, %v4367, 0
        %v4397 = vsel %vm390, %v4391, 0
        %v4400 = vsel %vm390, %v4392, 0
        %v4403 = vsel %vm390, %v4390, 0
        %4405 = vmatprep.subr.bf16.mxu0 %v4400
        %4406 = vmatpush1.bf16.msra.mxu0 %v4397
        %4407 = vmatprep.subr.bf16.mxu0 0
        %4408 = vmatpush1.bf16.msra.mxu0 0
        %4409 = vmatprep.subr.bf16.mxu0 0
        %4410 = vmatpush1.bf16.msra.mxu0 0
        %4411 = vmatprep.subr.bf16.mxu0 0
        %4412 = vmatpush1.bf16.msra.mxu0 0
        %4413 = vmatprep.subr.bf16.mxu0 0
        %4414 = vmatpush1.bf16.msra.mxu0 0
        %4415 = vmatprep.subr.bf16.mxu0 0
        %4416 = vmatpush1.bf16.msra.mxu0 0
        %4417 = vmatprep.subr.bf16.mxu0 0
        %4418 = vmatpush1.bf16.msra.mxu0 0
        %4419 = vmatprep.subr.bf16.mxu0 0
        %4420 = vmatpush1.bf16.msra.mxu0 0
        %4421 = vmatprep.subr.bf16.mxu0 0
        %4422 = vmatpush1.bf16.msra.mxu0 0
        %4423 = vmatprep.subr.bf16.mxu0 0
        %4424 = vmatpush1.bf16.msra.mxu0 0
        %4425 = vmatprep.subr.bf16.mxu0 0
        %4426 = vmatpush1.bf16.msra.mxu0 0
        %4427 = vmatprep.subr.bf16.mxu0 0
        %4428 = vmatpush1.bf16.msra.mxu0 0
        %4429 = vmatprep.subr.bf16.mxu0 0
        %4430 = vmatpush1.bf16.msra.mxu0 0
        %4431 = vmatprep.subr.bf16.mxu0 0
        %4432 = vmatpush1.bf16.msra.mxu0 0
        %4433 = vmatprep.subr.bf16.mxu0 0
        %4434 = vmatpush1.bf16.msra.mxu0 0
        %4435 = vmatprep.subr.bf16.mxu0 0
        %4436 = vmatpush1.bf16.msra.mxu0 0
        %4437 = vmatprep.mubr.bf16.mxu0 0
        %4438 = vmatmul.mubr.bf16.gmra.mrb[0].mxu0 %v4394
        %v4439 = vpop.f32.mrb[0].mxu0
        %v4440 = vadd.f32 0.0, %v4439
        %v4441 = vpop.f32.mrb[0].mxu0
        %v4442 = vadd.f32 0.0, %v4441
        %v4443 = vpop.f32.mrb[0].mxu0
        %v4444 = vpop.f32.mrb[0].mxu0
        %4445 = vdwg.mxu0
        %4446 = vmatprep.subr.bf16.mxu0 0
        %4447 = vmatpush1.bf16.msra.mxu0 %v4403
        %4448 = vmatprep.subr.bf16.mxu0 0
        %4449 = vmatpush1.bf16.msra.mxu0 0
        %4450 = vmatprep.subr.bf16.mxu0 0
        %4451 = vmatpush1.bf16.msra.mxu0 0
        %4452 = vmatprep.subr.bf16.mxu0 0
        %4453 = vmatpush1.bf16.msra.mxu0 0
        %4454 = vmatprep.subr.bf16.mxu0 0
        %4455 = vmatpush1.bf16.msra.mxu0 0
        %4456 = vmatprep.subr.bf16.mxu0 0
        %4457 = vmatpush1.bf16.msra.mxu0 0
        %4458 = vmatprep.subr.bf16.mxu0 0
        %4459 = vmatpush1.bf16.msra.mxu0 0
        %4460 = vmatprep.subr.bf16.mxu0 0
        %4461 = vmatpush1.bf16.msra.mxu0 0
        %4462 = vmatprep.subr.bf16.mxu0 0
        %4463 = vmatpush1.bf16.msra.mxu0 0
        %4464 = vmatprep.subr.bf16.mxu0 0
        %4465 = vmatpush1.bf16.msra.mxu0 0
        %4466 = vmatprep.subr.bf16.mxu0 0
        %4467 = vmatpush1.bf16.msra.mxu0 0
        %4468 = vmatprep.subr.bf16.mxu0 0
        %4469 = vmatpush1.bf16.msra.mxu0 0
        %4470 = vmatprep.subr.bf16.mxu0 0
        %4471 = vmatpush1.bf16.msra.mxu0 0
        %4472 = vmatprep.subr.bf16.mxu0 0
        %4473 = vmatpush1.bf16.msra.mxu0 0
        %4474 = vmatprep.subr.bf16.mxu0 0
        %4475 = vmatpush1.bf16.msra.mxu0 0
        %4476 = vmatprep.subr.bf16.mxu0 0
        %4477 = vmatpush1.bf16.msra.mxu0 0
        %4478 = vmatprep.mubr.bf16.mxu0 0
        %4479 = vmatmul.mubr.bf16.gmra.mrb[0].mxu0 %v4394
        %v4480 = vpop.f32.mrb[0].mxu0
        %v4481 = vadd.f32 0.0, %v4480
        %v4482 = vpop.f32.mrb[0].mxu0
        %v4483 = vpop.f32.mrb[0].mxu0
        %v4484 = vpop.f32.mrb[0].mxu0
        %4485 = vdwg.mxu0
        %v4486 = vadd.f32 %v4237, %v4440
        %v4487 = vadd.f32 %v4238, %v4442
        %v4488 = vadd.f32 %v4239, %v4481
        %v4489 = vld [vmem:[#allocation2] sm:$0x3f]
        %v4490 = vld [vmem:[#allocation3] sm:$0x3f]
        %s4491 = scalar_lea.vmem %s1, 32
        %v4492 = vld [vmem:[%s4491] sm:$0xf]
        %v4494 = vcombine.high %v4489, %v4489
        %v4496 = vunpack.c.l.s4 1983009808
        %v4497 = vunpack.c.0.s8 %v4496
        %v4498 = vlaneseq
        %v4499 = vshrl.u32 %v4498, 7
        %v4500 = vsub.s32 %v4497, %v4499
        %v4501 = vrot.slane %v4489, %v4500
        %v4503 = vunpack.c.l.s4 1983009808
        %v4504 = vunpack.c.0.s8 %v4503
        %v4505 = vlaneseq
        %v4506 = vshrl.u32 %v4505, 7
        %v4507 = vsub.s32 %v4504, %v4506
        %v4508 = vrot.slane %v4494, %v4507
        %v4509 = vcombine.high %v4501, %v4501
        %4510 = vrot.lane.b32.xlu0 %v4501, 90
        %v4511 = vpop.permute.xlu0 %4510
        %4512 = vrot.lane.b32.xlu0 %v4509, 90
        %v4513 = vpop.permute.xlu0 %4512
        %4514 = vrot.lane.b32.xlu0 %v4508, 90
        %v4515 = vpop.permute.xlu0 %4514
        %vm4516 = vcmask 736256
        %v4517 = vsel %vm4516, %v4511, %v4513
        %v4518 = vsel %vm4516, %v4513, %v4515
        %v4520 = vsel %vm2595, %v4492, 0
        %v4523 = vsel %vm390, %v4517, 0
        %v4526 = vsel %vm390, %v4518, 0
        %v4529 = vsel %vm390, %v4515, 0
        %4531 = vmatprep.subr.bf16.mxu0 %v4526
        %4532 = vmatpush1.bf16.msra.mxu0 %v4523
        %4533 = vmatprep.subr.bf16.mxu0 0
        %4534 = vmatpush1.bf16.msra.mxu0 0
        %4535 = vmatprep.subr.bf16.mxu0 0
        %4536 = vmatpush1.bf16.msra.mxu0 0
        %4537 = vmatprep.subr.bf16.mxu0 0
        %4538 = vmatpush1.bf16.msra.mxu0 0
        %4539 = vmatprep.subr.bf16.mxu0 0
        %4540 = vmatpush1.bf16.msra.mxu0 0
        %4541 = vmatprep.subr.bf16.mxu0 0
        %4542 = vmatpush1.bf16.msra.mxu0 0
        %4543 = vmatprep.subr.bf16.mxu0 0
        %4544 = vmatpush1.bf16.msra.mxu0 0
        %4545 = vmatprep.subr.bf16.mxu0 0
        %4546 = vmatpush1.bf16.msra.mxu0 0
        %4547 = vmatprep.subr.bf16.mxu0 0
        %4548 = vmatpush1.bf16.msra.mxu0 0
        %4549 = vmatprep.subr.bf16.mxu0 0
        %4550 = vmatpush1.bf16.msra.mxu0 0
        %4551 = vmatprep.subr.bf16.mxu0 0
        %4552 = vmatpush1.bf16.msra.mxu0 0
        %4553 = vmatprep.subr.bf16.mxu0 0
        %4554 = vmatpush1.bf16.msra.mxu0 0
        %4555 = vmatprep.subr.bf16.mxu0 0
        %4556 = vmatpush1.bf16.msra.mxu0 0
        %4557 = vmatprep.subr.bf16.mxu0 0
        %4558 = vmatpush1.bf16.msra.mxu0 0
        %4559 = vmatprep.subr.bf16.mxu0 0
        %4560 = vmatpush1.bf16.msra.mxu0 0
        %4561 = vmatprep.subr.bf16.mxu0 0
        %4562 = vmatpush1.bf16.msra.mxu0 0
        %4563 = vmatprep.mubr.bf16.mxu0 0
        %4564 = vmatmul.mubr.bf16.gmra.mrb[0].mxu0 %v4520
        %v4565 = vpop.f32.mrb[0].mxu0
        %v4566 = vadd.f32 0.0, %v4565
        %v4567 = vpop.f32.mrb[0].mxu0
        %v4568 = vadd.f32 0.0, %v4567
        %v4569 = vpop.f32.mrb[0].mxu0
        %v4570 = vpop.f32.mrb[0].mxu0
        %4571 = vdwg.mxu0
        %4572 = vmatprep.subr.bf16.mxu0 0
        %4573 = vmatpush1.bf16.msra.mxu0 %v4529
        %4574 = vmatprep.subr.bf16.mxu0 0
        %4575 = vmatpush1.bf16.msra.mxu0 0
        %4576 = vmatprep.subr.bf16.mxu0 0
        %4577 = vmatpush1.bf16.msra.mxu0 0
        %4578 = vmatprep.subr.bf16.mxu0 0
        %4579 = vmatpush1.bf16.msra.mxu0 0
        %4580 = vmatprep.subr.bf16.mxu0 0
        %4581 = vmatpush1.bf16.msra.mxu0 0
        %4582 = vmatprep.subr.bf16.mxu0 0
        %4583 = vmatpush1.bf16.msra.mxu0 0
        %4584 = vmatprep.subr.bf16.mxu0 0
        %4585 = vmatpush1.bf16.msra.mxu0 0
        %4586 = vmatprep.subr.bf16.mxu0 0
        %4587 = vmatpush1.bf16.msra.mxu0 0
        %4588 = vmatprep.subr.bf16.mxu0 0
        %4589 = vmatpush1.bf16.msra.mxu0 0
        %4590 = vmatprep.subr.bf16.mxu0 0
        %4591 = vmatpush1.bf16.msra.mxu0 0
        %4592 = vmatprep.subr.bf16.mxu0 0
        %4593 = vmatpush1.bf16.msra.mxu0 0
        %4594 = vmatprep.subr.bf16.mxu0 0
        %4595 = vmatpush1.bf16.msra.mxu0 0
        %4596 = vmatprep.subr.bf16.mxu0 0
        %4597 = vmatpush1.bf16.msra.mxu0 0
        %4598 = vmatprep.subr.bf16.mxu0 0
        %4599 = vmatpush1.bf16.msra.mxu0 0
        %4600 = vmatprep.subr.bf16.mxu0 0
        %4601 = vmatpush1.bf16.msra.mxu0 0
        %4602 = vmatprep.subr.bf16.mxu0 0
        %4603 = vmatpush1.bf16.msra.mxu0 0
        %4604 = vmatprep.mubr.bf16.mxu0 0
        %4605 = vmatmul.mubr.bf16.gmra.mrb[0].mxu0 %v4520
        %v4606 = vpop.f32.mrb[0].mxu0
        %v4607 = vadd.f32 0.0, %v4606
        %v4608 = vpop.f32.mrb[0].mxu0
        %v4609 = vpop.f32.mrb[0].mxu0
        %v4610 = vpop.f32.mrb[0].mxu0
        %4611 = vdwg.mxu0
        %v4612 = vadd.f32 %v4363, %v4566
        %v4613 = vadd.f32 %v4364, %v4568
        %v4614 = vadd.f32 %v4365, %v4607
        %s4615 = scalar_lea.vmem %s5, 32
        %v4616 = vld [vmem:[%s4615] sm:$0xf]
        %v4618 = vcombine.high %v4490, %v4490
        %v4620 = vunpack.c.l.s4 1983009808
        %v4621 = vunpack.c.0.s8 %v4620
        %v4622 = vlaneseq
        %v4623 = vshrl.u32 %v4622, 7
        %v4624 = vsub.s32 %v4621, %v4623
        %v4625 = vrot.slane %v4490, %v4624
        %v4627 = vunpack.c.l.s4 1983009808
        %v4628 = vunpack.c.0.s8 %v4627
        %v4629 = vlaneseq
        %v4630 = vshrl.u32 %v4629, 7
        %v4631 = vsub.s32 %v4628, %v4630
        %v4632 = vrot.slane %v4618, %v4631
        %v4633 = vcombine.high %v4625, %v4625
        %4634 = vrot.lane.b32.xlu0 %v4625, 90
        %v4635 = vpop.permute.xlu0 %4634
        %4636 = vrot.lane.b32.xlu0 %v4633, 90
        %v4637 = vpop.permute.xlu0 %4636
        %4638 = vrot.lane.b32.xlu0 %v4632, 90
        %v4639 = vpop.permute.xlu0 %4638
        %v4640 = vsel %vm4516, %v4635, %v4637
        %v4641 = vsel %vm4516, %v4637, %v4639
        %v4643 = vsel %vm2595, %v4616, 0
        %v4646 = vsel %vm390, %v4640, 0
        %v4649 = vsel %vm390, %v4641, 0
        %v4652 = vsel %vm390, %v4639, 0
        %4654 = vmatprep.subr.bf16.mxu0 %v4649
        %4655 = vmatpush1.bf16.msra.mxu0 %v4646
        %4656 = vmatprep.subr.bf16.mxu0 0
        %4657 = vmatpush1.bf16.msra.mxu0 0
        %4658 = vmatprep.subr.bf16.mxu0 0
        %4659 = vmatpush1.bf16.msra.mxu0 0
        %4660 = vmatprep.subr.bf16.mxu0 0
        %4661 = vmatpush1.bf16.msra.mxu0 0
        %4662 = vmatprep.subr.bf16.mxu0 0
        %4663 = vmatpush1.bf16.msra.mxu0 0
        %4664 = vmatprep.subr.bf16.mxu0 0
        %4665 = vmatpush1.bf16.msra.mxu0 0
        %4666 = vmatprep.subr.bf16.mxu0 0
        %4667 = vmatpush1.bf16.msra.mxu0 0
        %4668 = vmatprep.subr.bf16.mxu0 0
        %4669 = vmatpush1.bf16.msra.mxu0 0
        %4670 = vmatprep.subr.bf16.mxu0 0
        %4671 = vmatpush1.bf16.msra.mxu0 0
        %4672 = vmatprep.subr.bf16.mxu0 0
        %4673 = vmatpush1.bf16.msra.mxu0 0
        %4674 = vmatprep.subr.bf16.mxu0 0
        %4675 = vmatpush1.bf16.msra.mxu0 0
        %4676 = vmatprep.subr.bf16.mxu0 0
        %4677 = vmatpush1.bf16.msra.mxu0 0
        %4678 = vmatprep.subr.bf16.mxu0 0
        %4679 = vmatpush1.bf16.msra.mxu0 0
        %4680 = vmatprep.subr.bf16.mxu0 0
        %4681 = vmatpush1.bf16.msra.mxu0 0
        %4682 = vmatprep.subr.bf16.mxu0 0
        %4683 = vmatpush1.bf16.msra.mxu0 0
        %4684 = vmatprep.subr.bf16.mxu0 0
        %4685 = vmatpush1.bf16.msra.mxu0 0
        %4686 = vmatprep.mubr.bf16.mxu0 0
        %4687 = vmatmul.mubr.bf16.gmra.mrb[0].mxu0 %v4643
        %v4688 = vpop.f32.mrb[0].mxu0
        %v4689 = vadd.f32 0.0, %v4688
        %v4690 = vpop.f32.mrb[0].mxu0
        %v4691 = vadd.f32 0.0, %v4690
        %v4692 = vpop.f32.mrb[0].mxu0
        %v4693 = vpop.f32.mrb[0].mxu0
        %4694 = vdwg.mxu0
        %4695 = vmatprep.subr.bf16.mxu0 0
        %4696 = vmatpush1.bf16.msra.mxu0 %v4652
        %4697 = vmatprep.subr.bf16.mxu0 0
        %4698 = vmatpush1.bf16.msra.mxu0 0
        %4699 = vmatprep.subr.bf16.mxu0 0
        %4700 = vmatpush1.bf16.msra.mxu0 0
        %4701 = vmatprep.subr.bf16.mxu0 0
        %4702 = vmatpush1.bf16.msra.mxu0 0
        %4703 = vmatprep.subr.bf16.mxu0 0
        %4704 = vmatpush1.bf16.msra.mxu0 0
        %4705 = vmatprep.subr.bf16.mxu0 0
        %4706 = vmatpush1.bf16.msra.mxu0 0
        %4707 = vmatprep.subr.bf16.mxu0 0
        %4708 = vmatpush1.bf16.msra.mxu0 0
        %4709 = vmatprep.subr.bf16.mxu0 0
        %4710 = vmatpush1.bf16.msra.mxu0 0
        %4711 = vmatprep.subr.bf16.mxu0 0
        %4712 = vmatpush1.bf16.msra.mxu0 0
        %4713 = vmatprep.subr.bf16.mxu0 0
        %4714 = vmatpush1.bf16.msra.mxu0 0
        %4715 = vmatprep.subr.bf16.mxu0 0
        %4716 = vmatpush1.bf16.msra.mxu0 0
        %4717 = vmatprep.subr.bf16.mxu0 0
        %4718 = vmatpush1.bf16.msra.mxu0 0
        %4719 = vmatprep.subr.bf16.mxu0 0
        %4720 = vmatpush1.bf16.msra.mxu0 0
        %4721 = vmatprep.subr.bf16.mxu0 0
        %4722 = vmatpush1.bf16.msra.mxu0 0
        %4723 = vmatprep.subr.bf16.mxu0 0
        %4724 = vmatpush1.bf16.msra.mxu0 0
        %4725 = vmatprep.subr.bf16.mxu0 0
        %4726 = vmatpush1.bf16.msra.mxu0 0
        %4727 = vmatprep.mubr.bf16.mxu0 0
        %4728 = vmatmul.mubr.bf16.gmra.mrb[0].mxu0 %v4643
        %v4729 = vpop.f32.mrb[0].mxu0
        %v4730 = vadd.f32 0.0, %v4729
        %v4731 = vpop.f32.mrb[0].mxu0
        %v4732 = vpop.f32.mrb[0].mxu0
        %v4733 = vpop.f32.mrb[0].mxu0
        %4734 = vdwg.mxu0
        %v4735 = vadd.f32 %v4486, %v4689
        %v4736 = vadd.f32 %v4487, %v4691
        %v4737 = vadd.f32 %v4488, %v4730
        %v4738 = vld [vmem:[%s2] sm:$0xff]
        %4740 = vset.pattern.permute.xlu0 0
        %4741 = vperm.xlu0 %4740, %v4738
        %v4742 = vpop.permute.xlu0 %4741
        %v4744 = vadd.f32 %v4612, %v4742
        %v4745 = vadd.f32 %v4613, %v4742
        %v4746 = vadd.f32 %v4614, %v4742
        %v4747 = vld [vmem:[%s7] sm:$0x7]
        %v4749 = vlaneseq
        %v4750 = vshrl.u32 %v4749, 7
        %v4751 = vsub.s32 0, %v4750
        %v4752 = vrot.slane %v4747, %v4751
        %v4753 = vlaneseq
        %v4754 = vshrl.u32 %v4753, 7
        %v4755 = vsub.s32 1, %v4754
        %v4756 = vrot.slane %v4747, %v4755
        %v4757 = vlaneseq
        %v4758 = vshrl.u32 %v4757, 7
        %v4759 = vsub.s32 2, %v4758
        %v4760 = vrot.slane %v4747, %v4759
        %v4764 = vmul.f32 %v4744, %v4752
        %v4765 = vmul.f32 %v4745, %v4756
        %v4766 = vmul.f32 %v4746, %v4760
        %v4767 = vld [vmem:[%s6] sm:$0xff]
        %4769 = vset.pattern.permute.xlu0 0
        %4770 = vperm.xlu0 %4769, %v4767
        %v4771 = vpop.permute.xlu0 %4770
        %v4773 = vadd.f32 %v4735, %v4771
        %v4774 = vadd.f32 %v4736, %v4771
        %v4775 = vadd.f32 %v4737, %v4771
        %v4776 = vmul.f32 %v4773, %v4752
        %v4777 = vmul.f32 %v4774, %v4756
        %v4778 = vmul.f32 %v4775, %v4760
        %v4779 = vadd.f32 %v4764, %v4765
        %vm4780 = vcmask 261120
        %v4781 = vsel %vm4780, %v4766, 0.0
        %v4782 = vadd.f32 %v4779, %v4781
        %4783 = vadd.xlane.f32.xlu0 %v4782
        %v4784 = vpop.xlane.xlu0 %4783
        %v4785 = vmul.f32 %v4764, %v4764
        %v4786 = vmul.f32 %v4765, %v4765
        %v4787 = vmul.f32 %v4766, %v4766
        %v4788 = vadd.f32 %v4785, %v4786
        %v4789 = vsel %vm4780, %v4787, 0.0
        %v4790 = vadd.f32 %v4788, %v4789
        %4791 = vadd.xlane.f32.xlu0 %v4790
        %v4792 = vpop.xlane.xlu0 %4791
        %v4793 = vadd.f32 %v4776, %v4777
        %v4794 = vsel %vm4780, %v4778, 0.0
        %v4795 = vadd.f32 %v4793, %v4794
        %4796 = vadd.xlane.f32.xlu0 %v4795
        %v4797 = vpop.xlane.xlu0 %4796
        %v4798 = vmul.f32 %v4776, %v4776
        %v4799 = vmul.f32 %v4777, %v4777
        %v4800 = vmul.f32 %v4778, %v4778
        %v4801 = vadd.f32 %v4798, %v4799
        %v4802 = vsel %vm4780, %v4800, 0.0
        %v4803 = vadd.f32 %v4801, %v4802
        %4804 = vadd.xlane.f32.xlu0 %v4803
        %v4805 = vpop.xlane.xlu0 %4804
        %vm4806 = vcmask 7168
        %v4807 = vsel %vm4806, %v4784, %v4792
        %vm4808 = vcmask 15360
        %v4809 = vsel %vm4808, %v4807, %v4797
        %vm4810 = vcmask 23552
        %v4811 = vsel %vm4810, %v4809, %v4805
        %v4812 = vpack.c.bf16 %v4764, %v4764
        %v4813 = vpack.c.bf16 %v4765, %v4765
        %v4814 = vpack.c.bf16 %v4766, %v4766
        %v4818 = vunpack.c.l.b16 %v4812
        %v4819 = vunpack.c.l.b16 %v4813
        %v4820 = vunpack.c.l.b16 %v4814
        %v4821 = vpack.c.b16 %v4819, %v4818
        %v4822 = vpack.c.b16 %v4820, %v4820
        %4825 = vst [vmem:[%s356] sm:$0xff] %v4821
        %vm4826 = vcmask 257024
        %4827 = vst.msk [vmem:[%s356 + $0x8] sm:$0xf] %vm4826, %v4822
        %v4828 = vpack.c.bf16 %v4776, %v4776
        %v4829 = vpack.c.bf16 %v4777, %v4777
        %v4830 = vpack.c.bf16 %v4778, %v4778
        %v4834 = vunpack.c.l.b16 %v4828
        %v4835 = vunpack.c.l.b16 %v4829
        %v4836 = vunpack.c.l.b16 %v4830
        %v4837 = vpack.c.b16 %v4835, %v4834
        %v4838 = vpack.c.b16 %v4836, %v4836
        %4841 = vst [vmem:[%s363] sm:$0xff] %v4837
        %4842 = vst.msk [vmem:[%s363 + $0x8] sm:$0xf] %vm4826, %v4838
        %4843 = vst.msk [vmem:[%s378] sm:$0xff] %vm2595, %v4811
        %s4844 = sand.u32 %s209, 1
        %s4845 = scalar_lea.sflag [#allocation5], %s4844
        %s4846 = sand.u32 %s209, 1
        %s4847 = smul.addr %s4846, 12
        %s4848 = scalar_lea.vmem [#allocation4], %s4847
        %s4849 = sand.u32 %s235, 1
        %s4850 = scalar_lea.sflag [#allocation7], %s4849
        %s4851 = sand.u32 %s235, 1
        %s4852 = smul.addr %s4851, 12
        %s4853 = scalar_lea.vmem [#allocation6], %s4852
        %p4854 = scmp.lt.s32.totalorder %s28, 1
        %s4855 = scalar_select %p4854, %s28, 1
        %s4856 = smul.addr %s4855, 8
        %s4857 = scalar_lea.vmem %s10, %s4856
        // Predicated region
        $region53: #{tpu_custom_call.1} parent=51 // pred_check
          %p4858 = pneg %p219
        $region54: #{tpu_custom_call.1} parent=51 // pred_check_branch
          %4860 = sbr.rel (%p4858) target = $region56
        $region55: #{tpu_custom_call.1} parent=51 // pred_region
          %s4862 = ssub.s32 192, 192
          %4863 = vsyncadd %s4845, %s4862
          %s4864 = smul.addr %s28, 3
          %s4865 = smul.addr %s4864, 64
          %s4866 = scalar_lea.hbm %s8, %s4865
          %s4868 = sshll.u32 %s4848, 4
          %s4869 = int_to_ptr.vmem [resolvable:$true] %s4868
          %4871 = dma.vmem_to_hbm [thread:$0]  %s4869, 192, %s4866, %s4845
        $region56: #{tpu_custom_call.1} parent=51 // pred_fallthru
          _
        // Predicated region
        $region57: #{tpu_custom_call.1} parent=51 // pred_check
          %p4872 = pneg %p245
        $region58: #{tpu_custom_call.1} parent=51 // pred_check_branch
          %4874 = sbr.rel (%p4872) target = $region60
        $region59: #{tpu_custom_call.1} parent=51 // pred_region
          %s4876 = ssub.s32 192, 192
          %4877 = vsyncadd %s4850, %s4876
          %s4878 = smul.addr %s28, 3
          %s4879 = smul.addr %s4878, 64
          %s4880 = scalar_lea.hbm %s9, %s4879
          %s4882 = sshll.u32 %s4853, 4
          %s4883 = int_to_ptr.vmem [resolvable:$true] %s4882
          %4885 = dma.vmem_to_hbm [thread:$0]  %s4883, 192, %s4880, %s4850
        $region60: #{tpu_custom_call.1} parent=51 // pred_fallthru
          _
        // Predicated region
        $region61: #{tpu_custom_call.1} parent=51 // pred_check
          %p4886 = pneg %p271
        $region62: #{tpu_custom_call.1} parent=51 // pred_check_branch
          %4888 = sbr.rel (%p4886) target = $region64
        $region63: #{tpu_custom_call.1} parent=51 // pred_region
          _
        $region64: #{tpu_custom_call.1} parent=51 // pred_fallthru
          _
      $region52: #{tpu_custom_call.1} parent=5 // pred_fallthru
        _
      %p4889 = scmp.le.s32.totalorder 2, %s23
      // Predicated region
      $region65: #{tpu_custom_call.1} parent=5 // pred_check
        %p4890 = pneg %p4889
      $region66: #{tpu_custom_call.1} parent=5 // pred_check_branch
        %4892 = sbr.rel (%p4890) target = $region68
      $region67: #{tpu_custom_call.1} parent=5 // pred_region
        %s4893 = ssub.s32 %s23, 2
        // Predicated region
        $region69: #{tpu_custom_call.1} parent=67 // pred_check
          %p4894 = pneg %p225
        $region70: #{tpu_custom_call.1} parent=67 // pred_check_branch
          %4896 = sbr.rel (%p4894) target = $region72
        $region71: #{tpu_custom_call.1} parent=67 // pred_region
          %s4897 = sand.u32 %s210, 1
          %s4898 = scalar_lea.sflag [#allocation5], %s4897
          %s4899 = sand.u32 %s210, 1
          %s4900 = smul.addr %s4899, 12
          %s4901 = scalar_lea.vmem [#allocation4], %s4900
          %4902 = dma.done %s4898, 192
        $region72: #{tpu_custom_call.1} parent=67 // pred_fallthru
          _
        // Predicated region
        $region73: #{tpu_custom_call.1} parent=67 // pred_check
          %p4903 = pneg %p251
        $region74: #{tpu_custom_call.1} parent=67 // pred_check_branch
          %4905 = sbr.rel (%p4903) target = $region76
        $region75: #{tpu_custom_call.1} parent=67 // pred_region
          %s4906 = sand.u32 %s236, 1
          %s4907 = scalar_lea.sflag [#allocation7], %s4906
          %s4908 = sand.u32 %s236, 1
          %s4909 = smul.addr %s4908, 12
          %s4910 = scalar_lea.vmem [#allocation6], %s4909
          %4911 = dma.done %s4907, 192
        $region76: #{tpu_custom_call.1} parent=67 // pred_fallthru
          _
        // Predicated region
        $region77: #{tpu_custom_call.1} parent=67 // pred_check
          %p4912 = pneg %p277
        $region78: #{tpu_custom_call.1} parent=67 // pred_check_branch
          %4914 = sbr.rel (%p4912) target = $region80
        $region79: #{tpu_custom_call.1} parent=67 // pred_region
          %p4915 = scmp.lt.s32.totalorder %s29, 1
          %s4916 = scalar_select %p4915, %s29, 1
          %s4917 = smul.addr %s4916, 8
          %s4918 = scalar_lea.vmem %s10, %s4917
        $region80: #{tpu_custom_call.1} parent=67 // pred_fallthru
          _
      $region68: #{tpu_custom_call.1} parent=5 // pred_fallthru
        _
    $region6: #{tpu_custom_call.1} parent=1 // loop_footer
      %s27 = sadd.s32 1, %s23
    $region7: #{tpu_custom_call.1} parent=1 // loop_footer_branch
      %22 = sbr.rel target = $region3
    $region8: #{tpu_custom_call.1} parent=1 // loop_exit
      _
    %4919 = vsyncpa [#allocation5], 1
    %s4920 = scalar_lea.sflag [#allocation5], 1
    %4921 = vsyncpa %s4920, 1
    %4922 = vsyncpa [#allocation7], 1
    %s4923 = scalar_lea.sflag [#allocation7], 1
    %4924 = vsyncpa %s4923, 1

</llo_original>
